<compile_context>
chip_gen: v7x
topology: tpu7x:2x2x1
jax: 0.10.0
libtpu: 0.0.40
codegen_flags: <defaults>
</compile_context>

<pallas_src>
import functools

import numpy as np
import jax
import jax.numpy as jnp
from jax.experimental import pallas as pl
from jax.experimental.pallas import tpu as pltpu

KER = [16, 4]        # hard-coded in MLTN.__init__ (self.ker = [16, 4])
BOND_DIM = 4         # bond dimension D of every MPS
INIT_NOISE = 0.01


def _round_up(x, m):
    return ((x + m - 1) // m) * m


# ----------------------------------------------------------------------------- kernel
def _mps_chain_kernel(x_ref, a_ref, w_ref, o_ref, *, n_sites, feat, bond, label_site):
    """One batch tile (batch in lanes) of an open-boundary MPS contraction.

    x_ref : (N*F, bt)   bf16, rows site-major (s*F + f), batch in lanes
    a_ref : (N*DD, F)   bf16, per-site cores; block s is (DD, F) with row layout i*D+j for
                        s < label_site and j*D+i (pre-transposed) for s >= label_site
    w_ref : (D*O, D)    bf16, label core laid out W[o,i,j] -> [i*O + o, j]
    o_ref : (O, bt)     f32
    """
    D = bond
    DD = D * D
    F = feat
    O = o_ref.shape[0]
    bt = x_ref.shape[1]

    def site_matrix(s):
        # Bond indices in sublanes, batch in lanes: one lane-dense bf16 MXU dot, f32 acc.
        a_s = a_ref[s * DD:(s + 1) * DD, :]                               # (DD, F)
        x_s = x_ref[s * F:(s + 1) * F, :]                                 # (F, bt)
        return jnp.dot(a_s, x_s, preferred_element_type=jnp.float32)     # (DD, bt)

    def sweep_step(vec, m):
        # vec: (D, bt); m rows laid out k*D + l;  new[l,b] = sum_k vec[k,b] * m[k*D+l, b]
        acc = vec[0:1, :] * m[0:D, :]
        for k in range(1, D):
            acc = acc + vec[k:k + 1, :] * m[k * D:(k + 1) * D, :]
        return acc

    # Left sweep:  v = 1^T M_0 ... M_{c-1}      (blocks stored row-major over (i, j))
    v = jnp.ones((D, bt), jnp.float32)
    for s in range(label_site):
        v = sweep_step(v, site_matrix(s))

    # Right sweep: u = M_c ... M_{N-1} 1        (blocks stored pre-transposed over (j, i))
    u = jnp.ones((D, bt), jnp.float32)
    for s in range(n_sites - 1, label_site - 1, -1):
        u = sweep_step(u, site_matrix(s))
    # TODO(synk): for much larger n_sites convert the unrolled sweeps to
    #             lax.fori_loop(..., unroll=True) to bound trace size / vreg live ranges.

    # Label core: out[o,b] = sum_i v[i,b] * (W[o,i,:] @ u[:,b]);  w rows laid out i*O + o.
    t = jnp.dot(w_ref[...], u.astype(jnp.bfloat16),
                preferred_element_type=jnp.float32)                       # (D*O, bt)
    out = v[0:1, :] * t[0:O, :]
    for i in range(1, D):
        out = out + v[i:i + 1, :] * t[i * O:(i + 1) * O, :]
    o_ref[...] = out


def _mps_apply_pallas(x_sfb, plan):
    """x_sfb: (n_sites, feat, B) site-major with batch last -> (B, out_dim)."""
    N, F, B = x_sfb.shape
    D = plan["bond"]
    DD = D * D
    O = plan["out_dim"]
    NF = N * F

    # Lane dim must be a multiple of 128 (or full); 256 on large batches amortizes grid
    # overhead / MXU pushes (v5e) while keeping >= 2 grid steps for v7x's two TensorCores.
    bt = 256 if B >= 512 else 128
    Bp = _round_up(B, bt)

    x2 = x_sfb.reshape(NF, B).astype(jnp.bfloat16)
    if Bp != B:
        x2 = jnp.pad(x2, ((0, 0), (0, Bp - B)))      # padded batch cols computed, discarded

    kernel = functools.partial(_mps_chain_kernel, n_sites=N, feat=F, bond=D,
                               label_site=N // 2)

    # Honest VMEM budget: double-buffered x tile + (tiny) resident weights + out tile
    # + bound on in-kernel site matrices + headroom.  Weights no longer dominate, so the
    # default double-buffering of the constant-index operands is fine.
    vmem_bytes = (2 * NF * bt * 2            # x tile (bf16), double-buffered
                  + 2 * N * DD * F * 2       # cores slab (~130 KiB at level 0)
                  + 2 * D * O * D * 2        # label core
                  + 2 * O * bt * 4           # output tile (f32)
                  + N * DD * bt * 4          # in-kernel site matrices (upper bound)
                  + (4 << 20))               # compiler scratch headroom
    vmem_bytes = int(min(max(vmem_bytes, 8 << 20), 20 << 20))

    cost = pl.CostEstimate(
        flops=int(2 * Bp * N * DD * F + 2 * Bp * N * D * DD + 2 * Bp * DD * O),
        transcendentals=0,
        bytes_accessed=int(NF * Bp * 2 + N * DD * F * 2 + D * O * D * 2 + O * Bp * 4))

    out = pl.pallas_call(
        kernel,
        out_shape=jax.ShapeDtypeStruct((O, Bp), jnp.float32),
        grid=(Bp // bt,),
        in_specs=[
            pl.BlockSpec((NF, bt), lambda b: (0, b)),      # x: streamed batch tile (lanes)
            pl.BlockSpec((N * DD, F), lambda b: (0, 0)),   # per-site cores: resident
            pl.BlockSpec((D * O, D), lambda b: (0, 0)),    # label core: resident
        ],
        out_specs=pl.BlockSpec((O, bt), lambda b: (0, b)), # lane-dense output
        compiler_params=pltpu.CompilerParams(
            dimension_semantics=("parallel",),
            vmem_limit_bytes=vmem_bytes),
        cost_estimate=cost,
    )(x2, plan["a_cores"], plan["w_io"])
    return out[:, :B].T                                    # (B, O), one XLA transpose


def mps_apply(x_sfb, plan):
    """x_sfb: (n_sites, feature_dim, B) -> (B, output_dim)."""
    if plan["kind"] == "linear":
        # Single-site MPS collapses exactly to a linear map (see make_mps_plan).
        return jnp.einsum("fb,fo->bo", x_sfb[0].astype(jnp.float32), plan["linear_map"])
    return _mps_apply_pallas(x_sfb, plan)


# --------------------------------------------------------------------------- params
def _init_mps_raw(key, n_sites, feat, out_dim, D=BOND_DIM, noise=INIT_NOISE):
    k1, k2 = jax.random.split(key)
    eye = jnp.eye(D, dtype=jnp.float32)
    cores = (2.0 / feat) * eye[None, None] + noise * jax.random.normal(
        k1, (n_sites, feat, D, D), jnp.float32)
    out_core = eye[None] + noise * jax.random.normal(k2, (out_dim, D, D), jnp.float32)
    return cores, out_core


def make_mps_plan(key, n_sites, feat, out_dim, D=BOND_DIM, noise=INIT_NOISE):
    """Precompute kernel-side weight layouts once (no per-step re-layout)."""
    cores, out_core = _init_mps_raw(key, n_sites, feat, out_dim, D, noise)
    if n_sites == 1:
        # out[b,o] = sum_{i,j} W[o,i,j] * (M_0(b) @ 1)[j]  ==  x @ E  with
        # E[f,o] = sum_j (sum_k A[0,f,j,k]) * (sum_i W[o,i,j]).
        rowsum_a = jnp.sum(cores[0], axis=-1)            # (F, D)
        colsum_w = jnp.sum(out_core, axis=1)             # (O, D)
        return dict(kind="linear", n_sites=1, feat=feat, out_dim=out_dim,
                    linear_map=(rowsum_a @ colsum_w.T).astype(jnp.float32))

    c = n_sites // 2
    DD = D * D
    blocks = []
    for s in range(n_sites):
        blk = cores[s] if s < c else jnp.transpose(cores[s], (0, 2, 1))   # (F, D, D)
        blocks.append(jnp.transpose(blk.reshape(feat, DD)))               # (DD, F)
    a_cores = jnp.concatenate(blocks, axis=0)                             # (N*DD, F)
    w_io = jnp.transpose(out_core, (1, 0, 2)).reshape(D * out_dim, D)     # [i*O+o, j]
    return dict(kind="mps", n_sites=n_sites, feat=feat, out_dim=out_dim, bond=D,
                a_cores=a_cores.astype(jnp.bfloat16),
                w_io=w_io.astype(jnp.bfloat16),
                cores_raw=cores, out_core_raw=out_core)


def init_mltn_plans(key, input_hw, output_dim=1):
    H, W = input_hw
    keys = jax.random.split(key, len(KER) + 1)
    plans = []
    for i in range(len(KER)):
        kprod = int(np.prod(KER[:i + 1]))
        ph, pw = H // kprod, W // kprod                 # iDim
        assert ph == pw and ph >= 1, "torch unfold uses iDim[0] as size, iDim[1] as step"
        plans.append(make_mps_plan(keys[i], n_sites=ph * pw, feat=KER[i] ** 2,
                                   out_dim=ph * pw))
    kprod = int(np.prod(KER))
    n_final = (H // kprod) * (W // kprod)
    plans.append(make_mps_plan(keys[-1], n_sites=n_final, feat=1, out_dim=output_dim))
    return plans


# --------------------------------------------------------------------------- forward
def _unfold_to_sites(x, patch, n_feat):
    """torch: x.unfold(2,patch,patch).unfold(3,patch,patch).reshape(B, n_feat, -1),
    emitted directly in the kernel's (n_sites, n_feat, B) layout (site-major rows, batch
    in the minor dim) with a single fused transpose."""
    B, C, H, W = x.shape
    nh, nw = H // patch, W // patch
    assert C * nh * nw == n_feat
    x6 = x.reshape(B, C, nh, patch, nw, patch)
    return jnp.transpose(x6, (3, 5, 1, 2, 4, 0)).reshape(patch * patch, n_feat, B)


def mltn_forward(x, plans):
    """x: (B, C, H, W) NCHW, C must be 1 (as required by the module's reshape chain)."""
    B, C, H, W = x.shape
    assert C == 1, "MLTN reshape chain requires a single input channel"
    for i in range(len(KER)):
        kprod = int(np.prod(KER[:i + 1]))
        patch = H // kprod                               # iDim (size == step in unfold)
        x_sfb = _unfold_to_sites(x, patch, KER[i] ** 2)  # (n_sites, feat, B)
        y = mps_apply(x_sfb, plans[i])                   # (B, patch*patch)
        x = y.reshape(B, 1, patch, patch)                # newRes = (B, vdim=1, *iDim)
    x_sfb = x.reshape(B, -1).T[:, None, :]               # final MPS: (n_sites, lFeat=1, B)
    out = mps_apply(x_sfb, plans[-1])                    # (B, output_dim)
    return out.reshape(B)                                # x.view(b)   (output_dim == 1)


# ------------------------------------------------------------------------ reference
def _mps_reference(x_sfb, plan):
    """Plain-JAX open-boundary MPS contraction from the RAW cores (validates both the
    kernel math and the precomputed layouts); mirrors the kernel's bf16 quantization."""
    N, F, B = x_sfb.shape
    D = plan["bond"]
    c = N // 2
    x = x_sfb.astype(jnp.bfloat16).astype(jnp.float32)                   # (N, F, B)
    a = plan["cores_raw"].astype(jnp.bfloat16).astype(jnp.float32)       # (N, F, D, D)
    w = plan["out_core_raw"].astype(jnp.bfloat16).astype(jnp.float32)    # (O, D, D)
    m = jnp.einsum("nfb,nfij->nbij", x, a)                               # (N, B, D, D)
    v = jnp.ones((B, D), jnp.float32)
    for s in range(c):
        v = jnp.einsum("bi,bij->bj", v, m[s])
    u = jnp.ones((B, D), jnp.float32)
    for s in range(N - 1, c - 1, -1):
        u = jnp.einsum("bij,bj->bi", m[s], u)
    u = u.astype(jnp.bfloat16).astype(jnp.float32)       # kernel feeds u to a bf16 dot
    return jnp.einsum("oij,bi,bj->bo", w, v, u)


# ------------------------------------------------------------------------------ main
if __name__ == "__main__":
    key = jax.random.PRNGKey(0)
    kx, kp = jax.random.split(key)

    # ker = [16, 4] is hard-coded in the module, so the smallest consistent image is 64x64.
    B, C, H, W = 8, 1, 64, 64
    x = jax.random.uniform(kx, (B, C, H, W), dtype=jnp.float32)
    plans = init_mltn_plans(kp, (H, W), output_dim=1)

    fwd = jax.jit(lambda inp: mltn_forward(inp, plans))
    out = jax.block_until_ready(fwd(x))

    # correctness check of the Pallas path vs. a plain-JAX contraction from raw cores
    x0 = _unfold_to_sites(x, H // KER[0], KER[0] ** 2)
    np.testing.assert_allclose(np.asarray(mps_apply(x0, plans[0])),
                               np.asarray(_mps_reference(x0, plans[0])),
                               rtol=2e-2, atol=2e-3)

    assert out.shape == (B,), out.shape
    assert bool(jnp.all(jnp.isfinite(out)))
    print("KERNEL_OK")
</pallas_src>

<mosaic_0001>
module attributes {stable_mosaic.version = 11 : i64} {
  func.func @_mps_chain_kernel(%arg0: i32, %arg1: memref<4096x128xbf16, #tpu.memory_space<vmem>>, %arg2: memref<256x256xbf16, #tpu.memory_space<vmem>>, %arg3: memref<64x4xbf16, #tpu.memory_space<vmem>>, %arg4: memref<16x128xf32, #tpu.memory_space<vmem>>) attributes {dimension_semantics = [#tpu.dimension_semantics<parallel>], iteration_bounds = array<i64: 1>, scalar_prefetch = 0 : i64, scratch_operands = 0 : i64, tpu.core_type = #tpu.core_type<tc>, window_params = [{transform_indices = @transform_0, window_bounds = array<i64: 4096, 128>}, {pipeline_mode = #tpu.pipeline_mode<synchronous>, transform_indices = @transform_1, window_bounds = array<i64: 256, 256>}, {pipeline_mode = #tpu.pipeline_mode<synchronous>, transform_indices = @transform_2, window_bounds = array<i64: 64, 4>}, {transform_indices = @transform_3, window_bounds = array<i64: 16, 128>}]} {
    %cst = arith.constant 1.000000e+00 : f32
    %0 = vector.broadcast %cst : f32 to vector<4x128xf32>
    %c0 = arith.constant 0 : index
    %c0_0 = arith.constant 0 : index
    %1 = vector.load %arg2[%c0, %c0_0] : memref<256x256xbf16, #tpu.memory_space<vmem>>, vector<16x256xbf16>
    %c0_1 = arith.constant 0 : index
    %c0_2 = arith.constant 0 : index
    %2 = vector.load %arg1[%c0_1, %c0_2] : memref<4096x128xbf16, #tpu.memory_space<vmem>>, vector<256x128xbf16>
    %cst_3 = arith.constant dense<0.000000e+00> : vector<16x128xf32>
    %3 = tpu.matmul %1, %2, %cst_3 {dimension_numbers = #tpu.dot_dimension_numbers<[1], [0], [0], [1], [0, 0, 1, 1], [], []>} : vector<16x256xbf16>, vector<256x128xbf16>, vector<16x128xf32> -> vector<16x128xf32>
    %4 = vector.extract_strided_slice %0 {offsets = [0, 0], sizes = [1, 128], strides = [1, 1]} : vector<4x128xf32> to vector<1x128xf32>
    %5 = vector.extract_strided_slice %3 {offsets = [0, 0], sizes = [4, 128], strides = [1, 1]} : vector<16x128xf32> to vector<4x128xf32>
    %6 = vector.broadcast %4 : vector<1x128xf32> to vector<4x128xf32>
    %7 = arith.mulf %6, %5 : vector<4x128xf32>
    %8 = vector.extract_strided_slice %0 {offsets = [1, 0], sizes = [1, 128], strides = [1, 1]} : vector<4x128xf32> to vector<1x128xf32>
    %9 = vector.extract_strided_slice %3 {offsets = [4, 0], sizes = [4, 128], strides = [1, 1]} : vector<16x128xf32> to vector<4x128xf32>
    %10 = vector.broadcast %8 : vector<1x128xf32> to vector<4x128xf32>
    %11 = arith.mulf %10, %9 : vector<4x128xf32>
    %12 = arith.addf %7, %11 : vector<4x128xf32>
    %13 = vector.extract_strided_slice %0 {offsets = [2, 0], sizes = [1, 128], strides = [1, 1]} : vector<4x128xf32> to vector<1x128xf32>
    %14 = vector.extract_strided_slice %3 {offsets = [8, 0], sizes = [4, 128], strides = [1, 1]} : vector<16x128xf32> to vector<4x128xf32>
    %15 = vector.broadcast %13 : vector<1x128xf32> to vector<4x128xf32>
    %16 = arith.mulf %15, %14 : vector<4x128xf32>
    %17 = arith.addf %12, %16 : vector<4x128xf32>
    %18 = vector.extract_strided_slice %0 {offsets = [3, 0], sizes = [1, 128], strides = [1, 1]} : vector<4x128xf32> to vector<1x128xf32>
    %19 = vector.extract_strided_slice %3 {offsets = [12, 0], sizes = [4, 128], strides = [1, 1]} : vector<16x128xf32> to vector<4x128xf32>
    %20 = vector.broadcast %18 : vector<1x128xf32> to vector<4x128xf32>
    %21 = arith.mulf %20, %19 : vector<4x128xf32>
    %22 = arith.addf %17, %21 : vector<4x128xf32>
    %c16 = arith.constant 16 : index
    %c0_4 = arith.constant 0 : index
    %23 = vector.load %arg2[%c16, %c0_4] : memref<256x256xbf16, #tpu.memory_space<vmem>>, vector<16x256xbf16>
    %c256 = arith.constant 256 : index
    %c0_5 = arith.constant 0 : index
    %24 = vector.load %arg1[%c256, %c0_5] : memref<4096x128xbf16, #tpu.memory_space<vmem>>, vector<256x128xbf16>
    %cst_6 = arith.constant dense<0.000000e+00> : vector<16x128xf32>
    %25 = tpu.matmul %23, %24, %cst_6 {dimension_numbers = #tpu.dot_dimension_numbers<[1], [0], [0], [1], [0, 0, 1, 1], [], []>} : vector<16x256xbf16>, vector<256x128xbf16>, vector<16x128xf32> -> vector<16x128xf32>
    %26 = vector.extract_strided_slice %22 {offsets = [0, 0], sizes = [1, 128], strides = [1, 1]} : vector<4x128xf32> to vector<1x128xf32>
    %27 = vector.extract_strided_slice %25 {offsets = [0, 0], sizes = [4, 128], strides = [1, 1]} : vector<16x128xf32> to vector<4x128xf32>
    %28 = vector.broadcast %26 : vector<1x128xf32> to vector<4x128xf32>
    %29 = arith.mulf %28, %27 : vector<4x128xf32>
    %30 = vector.extract_strided_slice %22 {offsets = [1, 0], sizes = [1, 128], strides = [1, 1]} : vector<4x128xf32> to vector<1x128xf32>
    %31 = vector.extract_strided_slice %25 {offsets = [4, 0], sizes = [4, 128], strides = [1, 1]} : vector<16x128xf32> to vector<4x128xf32>
    %32 = vector.broadcast %30 : vector<1x128xf32> to vector<4x128xf32>
    %33 = arith.mulf %32, %31 : vector<4x128xf32>
    %34 = arith.addf %29, %33 : vector<4x128xf32>
    %35 = vector.extract_strided_slice %22 {offsets = [2, 0], sizes = [1, 128], strides = [1, 1]} : vector<4x128xf32> to vector<1x128xf32>
    %36 = vector.extract_strided_slice %25 {offsets = [8, 0], sizes = [4, 128], strides = [1, 1]} : vector<16x128xf32> to vector<4x128xf32>
    %37 = vector.broadcast %35 : vector<1x128xf32> to vector<4x128xf32>
    %38 = arith.mulf %37, %36 : vector<4x128xf32>
    %39 = arith.addf %34, %38 : vector<4x128xf32>
    %40 = vector.extract_strided_slice %22 {offsets = [3, 0], sizes = [1, 128], strides = [1, 1]} : vector<4x128xf32> to vector<1x128xf32>
    %41 = vector.extract_strided_slice %25 {offsets = [12, 0], sizes = [4, 128], strides = [1, 1]} : vector<16x128xf32> to vector<4x128xf32>
    %42 = vector.broadcast %40 : vector<1x128xf32> to vector<4x128xf32>
    %43 = arith.mulf %42, %41 : vector<4x128xf32>
    %44 = arith.addf %39, %43 : vector<4x128xf32>
    %c32 = arith.constant 32 : index
    %c0_7 = arith.constant 0 : index
    %45 = vector.load %arg2[%c32, %c0_7] : memref<256x256xbf16, #tpu.memory_space<vmem>>, vector<16x256xbf16>
    %c512 = arith.constant 512 : index
    %c0_8 = arith.constant 0 : index
    %46 = vector.load %arg1[%c512, %c0_8] : memref<4096x128xbf16, #tpu.memory_space<vmem>>, vector<256x128xbf16>
    %cst_9 = arith.constant dense<0.000000e+00> : vector<16x128xf32>
    %47 = tpu.matmul %45, %46, %cst_9 {dimension_numbers = #tpu.dot_dimension_numbers<[1], [0], [0], [1], [0, 0, 1, 1], [], []>} : vector<16x256xbf16>, vector<256x128xbf16>, vector<16x128xf32> -> vector<16x128xf32>
    %48 = vector.extract_strided_slice %44 {offsets = [0, 0], sizes = [1, 128], strides = [1, 1]} : vector<4x128xf32> to vector<1x128xf32>
    %49 = vector.extract_strided_slice %47 {offsets = [0, 0], sizes = [4, 128], strides = [1, 1]} : vector<16x128xf32> to vector<4x128xf32>
    %50 = vector.broadcast %48 : vector<1x128xf32> to vector<4x128xf32>
    %51 = arith.mulf %50, %49 : vector<4x128xf32>
    %52 = vector.extract_strided_slice %44 {offsets = [1, 0], sizes = [1, 128], strides = [1, 1]} : vector<4x128xf32> to vector<1x128xf32>
    %53 = vector.extract_strided_slice %47 {offsets = [4, 0], sizes = [4, 128], strides = [1, 1]} : vector<16x128xf32> to vector<4x128xf32>
    %54 = vector.broadcast %52 : vector<1x128xf32> to vector<4x128xf32>
    %55 = arith.mulf %54, %53 : vector<4x128xf32>
    %56 = arith.addf %51, %55 : vector<4x128xf32>
    %57 = vector.extract_strided_slice %44 {offsets = [2, 0], sizes = [1, 128], strides = [1, 1]} : vector<4x128xf32> to vector<1x128xf32>
    %58 = vector.extract_strided_slice %47 {offsets = [8, 0], sizes = [4, 128], strides = [1, 1]} : vector<16x128xf32> to vector<4x128xf32>
    %59 = vector.broadcast %57 : vector<1x128xf32> to vector<4x128xf32>
    %60 = arith.mulf %59, %58 : vector<4x128xf32>
    %61 = arith.addf %56, %60 : vector<4x128xf32>
    %62 = vector.extract_strided_slice %44 {offsets = [3, 0], sizes = [1, 128], strides = [1, 1]} : vector<4x128xf32> to vector<1x128xf32>
    %63 = vector.extract_strided_slice %47 {offsets = [12, 0], sizes = [4, 128], strides = [1, 1]} : vector<16x128xf32> to vector<4x128xf32>
    %64 = vector.broadcast %62 : vector<1x128xf32> to vector<4x128xf32>
    %65 = arith.mulf %64, %63 : vector<4x128xf32>
    %66 = arith.addf %61, %65 : vector<4x128xf32>
    %c48 = arith.constant 48 : index
    %c0_10 = arith.constant 0 : index
    %67 = vector.load %arg2[%c48, %c0_10] : memref<256x256xbf16, #tpu.memory_space<vmem>>, vector<16x256xbf16>
    %c768 = arith.constant 768 : index
    %c0_11 = arith.constant 0 : index
    %68 = vector.load %arg1[%c768, %c0_11] : memref<4096x128xbf16, #tpu.memory_space<vmem>>, vector<256x128xbf16>
    %cst_12 = arith.constant dense<0.000000e+00> : vector<16x128xf32>
    %69 = tpu.matmul %67, %68, %cst_12 {dimension_numbers = #tpu.dot_dimension_numbers<[1], [0], [0], [1], [0, 0, 1, 1], [], []>} : vector<16x256xbf16>, vector<256x128xbf16>, vector<16x128xf32> -> vector<16x128xf32>
    %70 = vector.extract_strided_slice %66 {offsets = [0, 0], sizes = [1, 128], strides = [1, 1]} : vector<4x128xf32> to vector<1x128xf32>
    %71 = vector.extract_strided_slice %69 {offsets = [0, 0], sizes = [4, 128], strides = [1, 1]} : vector<16x128xf32> to vector<4x128xf32>
    %72 = vector.broadcast %70 : vector<1x128xf32> to vector<4x128xf32>
    %73 = arith.mulf %72, %71 : vector<4x128xf32>
    %74 = vector.extract_strided_slice %66 {offsets = [1, 0], sizes = [1, 128], strides = [1, 1]} : vector<4x128xf32> to vector<1x128xf32>
    %75 = vector.extract_strided_slice %69 {offsets = [4, 0], sizes = [4, 128], strides = [1, 1]} : vector<16x128xf32> to vector<4x128xf32>
    %76 = vector.broadcast %74 : vector<1x128xf32> to vector<4x128xf32>
    %77 = arith.mulf %76, %75 : vector<4x128xf32>
    %78 = arith.addf %73, %77 : vector<4x128xf32>
    %79 = vector.extract_strided_slice %66 {offsets = [2, 0], sizes = [1, 128], strides = [1, 1]} : vector<4x128xf32> to vector<1x128xf32>
    %80 = vector.extract_strided_slice %69 {offsets = [8, 0], sizes = [4, 128], strides = [1, 1]} : vector<16x128xf32> to vector<4x128xf32>
    %81 = vector.broadcast %79 : vector<1x128xf32> to vector<4x128xf32>
    %82 = arith.mulf %81, %80 : vector<4x128xf32>
    %83 = arith.addf %78, %82 : vector<4x128xf32>
    %84 = vector.extract_strided_slice %66 {offsets = [3, 0], sizes = [1, 128], strides = [1, 1]} : vector<4x128xf32> to vector<1x128xf32>
    %85 = vector.extract_strided_slice %69 {offsets = [12, 0], sizes = [4, 128], strides = [1, 1]} : vector<16x128xf32> to vector<4x128xf32>
    %86 = vector.broadcast %84 : vector<1x128xf32> to vector<4x128xf32>
    %87 = arith.mulf %86, %85 : vector<4x128xf32>
    %88 = arith.addf %83, %87 : vector<4x128xf32>
    %c64 = arith.constant 64 : index
    %c0_13 = arith.constant 0 : index
    %89 = vector.load %arg2[%c64, %c0_13] : memref<256x256xbf16, #tpu.memory_space<vmem>>, vector<16x256xbf16>
    %c1024 = arith.constant 1024 : index
    %c0_14 = arith.constant 0 : index
    %90 = vector.load %arg1[%c1024, %c0_14] : memref<4096x128xbf16, #tpu.memory_space<vmem>>, vector<256x128xbf16>
    %cst_15 = arith.constant dense<0.000000e+00> : vector<16x128xf32>
    %91 = tpu.matmul %89, %90, %cst_15 {dimension_numbers = #tpu.dot_dimension_numbers<[1], [0], [0], [1], [0, 0, 1, 1], [], []>} : vector<16x256xbf16>, vector<256x128xbf16>, vector<16x128xf32> -> vector<16x128xf32>
    %92 = vector.extract_strided_slice %88 {offsets = [0, 0], sizes = [1, 128], strides = [1, 1]} : vector<4x128xf32> to vector<1x128xf32>
    %93 = vector.extract_strided_slice %91 {offsets = [0, 0], sizes = [4, 128], strides = [1, 1]} : vector<16x128xf32> to vector<4x128xf32>
    %94 = vector.broadcast %92 : vector<1x128xf32> to vector<4x128xf32>
    %95 = arith.mulf %94, %93 : vector<4x128xf32>
    %96 = vector.extract_strided_slice %88 {offsets = [1, 0], sizes = [1, 128], strides = [1, 1]} : vector<4x128xf32> to vector<1x128xf32>
    %97 = vector.extract_strided_slice %91 {offsets = [4, 0], sizes = [4, 128], strides = [1, 1]} : vector<16x128xf32> to vector<4x128xf32>
    %98 = vector.broadcast %96 : vector<1x128xf32> to vector<4x128xf32>
    %99 = arith.mulf %98, %97 : vector<4x128xf32>
    %100 = arith.addf %95, %99 : vector<4x128xf32>
    %101 = vector.extract_strided_slice %88 {offsets = [2, 0], sizes = [1, 128], strides = [1, 1]} : vector<4x128xf32> to vector<1x128xf32>
    %102 = vector.extract_strided_slice %91 {offsets = [8, 0], sizes = [4, 128], strides = [1, 1]} : vector<16x128xf32> to vector<4x128xf32>
    %103 = vector.broadcast %101 : vector<1x128xf32> to vector<4x128xf32>
    %104 = arith.mulf %103, %102 : vector<4x128xf32>
    %105 = arith.addf %100, %104 : vector<4x128xf32>
    %106 = vector.extract_strided_slice %88 {offsets = [3, 0], sizes = [1, 128], strides = [1, 1]} : vector<4x128xf32> to vector<1x128xf32>
    %107 = vector.extract_strided_slice %91 {offsets = [12, 0], sizes = [4, 128], strides = [1, 1]} : vector<16x128xf32> to vector<4x128xf32>
    %108 = vector.broadcast %106 : vector<1x128xf32> to vector<4x128xf32>
    %109 = arith.mulf %108, %107 : vector<4x128xf32>
    %110 = arith.addf %105, %109 : vector<4x128xf32>
    %c80 = arith.constant 80 : index
    %c0_16 = arith.constant 0 : index
    %111 = vector.load %arg2[%c80, %c0_16] : memref<256x256xbf16, #tpu.memory_space<vmem>>, vector<16x256xbf16>
    %c1280 = arith.constant 1280 : index
    %c0_17 = arith.constant 0 : index
    %112 = vector.load %arg1[%c1280, %c0_17] : memref<4096x128xbf16, #tpu.memory_space<vmem>>, vector<256x128xbf16>
    %cst_18 = arith.constant dense<0.000000e+00> : vector<16x128xf32>
    %113 = tpu.matmul %111, %112, %cst_18 {dimension_numbers = #tpu.dot_dimension_numbers<[1], [0], [0], [1], [0, 0, 1, 1], [], []>} : vector<16x256xbf16>, vector<256x128xbf16>, vector<16x128xf32> -> vector<16x128xf32>
    %114 = vector.extract_strided_slice %110 {offsets = [0, 0], sizes = [1, 128], strides = [1, 1]} : vector<4x128xf32> to vector<1x128xf32>
    %115 = vector.extract_strided_slice %113 {offsets = [0, 0], sizes = [4, 128], strides = [1, 1]} : vector<16x128xf32> to vector<4x128xf32>
    %116 = vector.broadcast %114 : vector<1x128xf32> to vector<4x128xf32>
    %117 = arith.mulf %116, %115 : vector<4x128xf32>
    %118 = vector.extract_strided_slice %110 {offsets = [1, 0], sizes = [1, 128], strides = [1, 1]} : vector<4x128xf32> to vector<1x128xf32>
    %119 = vector.extract_strided_slice %113 {offsets = [4, 0], sizes = [4, 128], strides = [1, 1]} : vector<16x128xf32> to vector<4x128xf32>
    %120 = vector.broadcast %118 : vector<1x128xf32> to vector<4x128xf32>
    %121 = arith.mulf %120, %119 : vector<4x128xf32>
    %122 = arith.addf %117, %121 : vector<4x128xf32>
    %123 = vector.extract_strided_slice %110 {offsets = [2, 0], sizes = [1, 128], strides = [1, 1]} : vector<4x128xf32> to vector<1x128xf32>
    %124 = vector.extract_strided_slice %113 {offsets = [8, 0], sizes = [4, 128], strides = [1, 1]} : vector<16x128xf32> to vector<4x128xf32>
    %125 = vector.broadcast %123 : vector<1x128xf32> to vector<4x128xf32>
    %126 = arith.mulf %125, %124 : vector<4x128xf32>
    %127 = arith.addf %122, %126 : vector<4x128xf32>
    %128 = vector.extract_strided_slice %110 {offsets = [3, 0], sizes = [1, 128], strides = [1, 1]} : vector<4x128xf32> to vector<1x128xf32>
    %129 = vector.extract_strided_slice %113 {offsets = [12, 0], sizes = [4, 128], strides = [1, 1]} : vector<16x128xf32> to vector<4x128xf32>
    %130 = vector.broadcast %128 : vector<1x128xf32> to vector<4x128xf32>
    %131 = arith.mulf %130, %129 : vector<4x128xf32>
    %132 = arith.addf %127, %131 : vector<4x128xf32>
    %c96 = arith.constant 96 : index
    %c0_19 = arith.constant 0 : index
    %133 = vector.load %arg2[%c96, %c0_19] : memref<256x256xbf16, #tpu.memory_space<vmem>>, vector<16x256xbf16>
    %c1536 = arith.constant 1536 : index
    %c0_20 = arith.constant 0 : index
    %134 = vector.load %arg1[%c1536, %c0_20] : memref<4096x128xbf16, #tpu.memory_space<vmem>>, vector<256x128xbf16>
    %cst_21 = arith.constant dense<0.000000e+00> : vector<16x128xf32>
    %135 = tpu.matmul %133, %134, %cst_21 {dimension_numbers = #tpu.dot_dimension_numbers<[1], [0], [0], [1], [0, 0, 1, 1], [], []>} : vector<16x256xbf16>, vector<256x128xbf16>, vector<16x128xf32> -> vector<16x128xf32>
    %136 = vector.extract_strided_slice %132 {offsets = [0, 0], sizes = [1, 128], strides = [1, 1]} : vector<4x128xf32> to vector<1x128xf32>
    %137 = vector.extract_strided_slice %135 {offsets = [0, 0], sizes = [4, 128], strides = [1, 1]} : vector<16x128xf32> to vector<4x128xf32>
    %138 = vector.broadcast %136 : vector<1x128xf32> to vector<4x128xf32>
    %139 = arith.mulf %138, %137 : vector<4x128xf32>
    %140 = vector.extract_strided_slice %132 {offsets = [1, 0], sizes = [1, 128], strides = [1, 1]} : vector<4x128xf32> to vector<1x128xf32>
    %141 = vector.extract_strided_slice %135 {offsets = [4, 0], sizes = [4, 128], strides = [1, 1]} : vector<16x128xf32> to vector<4x128xf32>
    %142 = vector.broadcast %140 : vector<1x128xf32> to vector<4x128xf32>
    %143 = arith.mulf %142, %141 : vector<4x128xf32>
    %144 = arith.addf %139, %143 : vector<4x128xf32>
    %145 = vector.extract_strided_slice %132 {offsets = [2, 0], sizes = [1, 128], strides = [1, 1]} : vector<4x128xf32> to vector<1x128xf32>
    %146 = vector.extract_strided_slice %135 {offsets = [8, 0], sizes = [4, 128], strides = [1, 1]} : vector<16x128xf32> to vector<4x128xf32>
    %147 = vector.broadcast %145 : vector<1x128xf32> to vector<4x128xf32>
    %148 = arith.mulf %147, %146 : vector<4x128xf32>
    %149 = arith.addf %144, %148 : vector<4x128xf32>
    %150 = vector.extract_strided_slice %132 {offsets = [3, 0], sizes = [1, 128], strides = [1, 1]} : vector<4x128xf32> to vector<1x128xf32>
    %151 = vector.extract_strided_slice %135 {offsets = [12, 0], sizes = [4, 128], strides = [1, 1]} : vector<16x128xf32> to vector<4x128xf32>
    %152 = vector.broadcast %150 : vector<1x128xf32> to vector<4x128xf32>
    %153 = arith.mulf %152, %151 : vector<4x128xf32>
    %154 = arith.addf %149, %153 : vector<4x128xf32>
    %c112 = arith.constant 112 : index
    %c0_22 = arith.constant 0 : index
    %155 = vector.load %arg2[%c112, %c0_22] : memref<256x256xbf16, #tpu.memory_space<vmem>>, vector<16x256xbf16>
    %c1792 = arith.constant 1792 : index
    %c0_23 = arith.constant 0 : index
    %156 = vector.load %arg1[%c1792, %c0_23] : memref<4096x128xbf16, #tpu.memory_space<vmem>>, vector<256x128xbf16>
    %cst_24 = arith.constant dense<0.000000e+00> : vector<16x128xf32>
    %157 = tpu.matmul %155, %156, %cst_24 {dimension_numbers = #tpu.dot_dimension_numbers<[1], [0], [0], [1], [0, 0, 1, 1], [], []>} : vector<16x256xbf16>, vector<256x128xbf16>, vector<16x128xf32> -> vector<16x128xf32>
    %158 = vector.extract_strided_slice %154 {offsets = [0, 0], sizes = [1, 128], strides = [1, 1]} : vector<4x128xf32> to vector<1x128xf32>
    %159 = vector.extract_strided_slice %157 {offsets = [0, 0], sizes = [4, 128], strides = [1, 1]} : vector<16x128xf32> to vector<4x128xf32>
    %160 = vector.broadcast %158 : vector<1x128xf32> to vector<4x128xf32>
    %161 = arith.mulf %160, %159 : vector<4x128xf32>
    %162 = vector.extract_strided_slice %154 {offsets = [1, 0], sizes = [1, 128], strides = [1, 1]} : vector<4x128xf32> to vector<1x128xf32>
    %163 = vector.extract_strided_slice %157 {offsets = [4, 0], sizes = [4, 128], strides = [1, 1]} : vector<16x128xf32> to vector<4x128xf32>
    %164 = vector.broadcast %162 : vector<1x128xf32> to vector<4x128xf32>
    %165 = arith.mulf %164, %163 : vector<4x128xf32>
    %166 = arith.addf %161, %165 : vector<4x128xf32>
    %167 = vector.extract_strided_slice %154 {offsets = [2, 0], sizes = [1, 128], strides = [1, 1]} : vector<4x128xf32> to vector<1x128xf32>
    %168 = vector.extract_strided_slice %157 {offsets = [8, 0], sizes = [4, 128], strides = [1, 1]} : vector<16x128xf32> to vector<4x128xf32>
    %169 = vector.broadcast %167 : vector<1x128xf32> to vector<4x128xf32>
    %170 = arith.mulf %169, %168 : vector<4x128xf32>
    %171 = arith.addf %166, %170 : vector<4x128xf32>
    %172 = vector.extract_strided_slice %154 {offsets = [3, 0], sizes = [1, 128], strides = [1, 1]} : vector<4x128xf32> to vector<1x128xf32>
    %173 = vector.extract_strided_slice %157 {offsets = [12, 0], sizes = [4, 128], strides = [1, 1]} : vector<16x128xf32> to vector<4x128xf32>
    %174 = vector.broadcast %172 : vector<1x128xf32> to vector<4x128xf32>
    %175 = arith.mulf %174, %173 : vector<4x128xf32>
    %176 = arith.addf %171, %175 : vector<4x128xf32>
    %cst_25 = arith.constant 1.000000e+00 : f32
    %177 = vector.broadcast %cst_25 : f32 to vector<4x128xf32>
    %c240 = arith.constant 240 : index
    %c0_26 = arith.constant 0 : index
    %178 = vector.load %arg2[%c240, %c0_26] : memref<256x256xbf16, #tpu.memory_space<vmem>>, vector<16x256xbf16>
    %c3840 = arith.constant 3840 : index
    %c0_27 = arith.constant 0 : index
    %179 = vector.load %arg1[%c3840, %c0_27] : memref<4096x128xbf16, #tpu.memory_space<vmem>>, vector<256x128xbf16>
    %cst_28 = arith.constant dense<0.000000e+00> : vector<16x128xf32>
    %180 = tpu.matmul %178, %179, %cst_28 {dimension_numbers = #tpu.dot_dimension_numbers<[1], [0], [0], [1], [0, 0, 1, 1], [], []>} : vector<16x256xbf16>, vector<256x128xbf16>, vector<16x128xf32> -> vector<16x128xf32>
    %181 = vector.extract_strided_slice %177 {offsets = [0, 0], sizes = [1, 128], strides = [1, 1]} : vector<4x128xf32> to vector<1x128xf32>
    %182 = vector.extract_strided_slice %180 {offsets = [0, 0], sizes = [4, 128], strides = [1, 1]} : vector<16x128xf32> to vector<4x128xf32>
    %183 = vector.broadcast %181 : vector<1x128xf32> to vector<4x128xf32>
    %184 = arith.mulf %183, %182 : vector<4x128xf32>
    %185 = vector.extract_strided_slice %177 {offsets = [1, 0], sizes = [1, 128], strides = [1, 1]} : vector<4x128xf32> to vector<1x128xf32>
    %186 = vector.extract_strided_slice %180 {offsets = [4, 0], sizes = [4, 128], strides = [1, 1]} : vector<16x128xf32> to vector<4x128xf32>
    %187 = vector.broadcast %185 : vector<1x128xf32> to vector<4x128xf32>
    %188 = arith.mulf %187, %186 : vector<4x128xf32>
    %189 = arith.addf %184, %188 : vector<4x128xf32>
    %190 = vector.extract_strided_slice %177 {offsets = [2, 0], sizes = [1, 128], strides = [1, 1]} : vector<4x128xf32> to vector<1x128xf32>
    %191 = vector.extract_strided_slice %180 {offsets = [8, 0], sizes = [4, 128], strides = [1, 1]} : vector<16x128xf32> to vector<4x128xf32>
    %192 = vector.broadcast %190 : vector<1x128xf32> to vector<4x128xf32>
    %193 = arith.mulf %192, %191 : vector<4x128xf32>
    %194 = arith.addf %189, %193 : vector<4x128xf32>
    %195 = vector.extract_strided_slice %177 {offsets = [3, 0], sizes = [1, 128], strides = [1, 1]} : vector<4x128xf32> to vector<1x128xf32>
    %196 = vector.extract_strided_slice %180 {offsets = [12, 0], sizes = [4, 128], strides = [1, 1]} : vector<16x128xf32> to vector<4x128xf32>
    %197 = vector.broadcast %195 : vector<1x128xf32> to vector<4x128xf32>
    %198 = arith.mulf %197, %196 : vector<4x128xf32>
    %199 = arith.addf %194, %198 : vector<4x128xf32>
    %c224 = arith.constant 224 : index
    %c0_29 = arith.constant 0 : index
    %200 = vector.load %arg2[%c224, %c0_29] : memref<256x256xbf16, #tpu.memory_space<vmem>>, vector<16x256xbf16>
    %c3584 = arith.constant 3584 : index
    %c0_30 = arith.constant 0 : index
    %201 = vector.load %arg1[%c3584, %c0_30] : memref<4096x128xbf16, #tpu.memory_space<vmem>>, vector<256x128xbf16>
    %cst_31 = arith.constant dense<0.000000e+00> : vector<16x128xf32>
    %202 = tpu.matmul %200, %201, %cst_31 {dimension_numbers = #tpu.dot_dimension_numbers<[1], [0], [0], [1], [0, 0, 1, 1], [], []>} : vector<16x256xbf16>, vector<256x128xbf16>, vector<16x128xf32> -> vector<16x128xf32>
    %203 = vector.extract_strided_slice %199 {offsets = [0, 0], sizes = [1, 128], strides = [1, 1]} : vector<4x128xf32> to vector<1x128xf32>
    %204 = vector.extract_strided_slice %202 {offsets = [0, 0], sizes = [4, 128], strides = [1, 1]} : vector<16x128xf32> to vector<4x128xf32>
    %205 = vector.broadcast %203 : vector<1x128xf32> to vector<4x128xf32>
    %206 = arith.mulf %205, %204 : vector<4x128xf32>
    %207 = vector.extract_strided_slice %199 {offsets = [1, 0], sizes = [1, 128], strides = [1, 1]} : vector<4x128xf32> to vector<1x128xf32>
    %208 = vector.extract_strided_slice %202 {offsets = [4, 0], sizes = [4, 128], strides = [1, 1]} : vector<16x128xf32> to vector<4x128xf32>
    %209 = vector.broadcast %207 : vector<1x128xf32> to vector<4x128xf32>
    %210 = arith.mulf %209, %208 : vector<4x128xf32>
    %211 = arith.addf %206, %210 : vector<4x128xf32>
    %212 = vector.extract_strided_slice %199 {offsets = [2, 0], sizes = [1, 128], strides = [1, 1]} : vector<4x128xf32> to vector<1x128xf32>
    %213 = vector.extract_strided_slice %202 {offsets = [8, 0], sizes = [4, 128], strides = [1, 1]} : vector<16x128xf32> to vector<4x128xf32>
    %214 = vector.broadcast %212 : vector<1x128xf32> to vector<4x128xf32>
    %215 = arith.mulf %214, %213 : vector<4x128xf32>
    %216 = arith.addf %211, %215 : vector<4x128xf32>
    %217 = vector.extract_strided_slice %199 {offsets = [3, 0], sizes = [1, 128], strides = [1, 1]} : vector<4x128xf32> to vector<1x128xf32>
    %218 = vector.extract_strided_slice %202 {offsets = [12, 0], sizes = [4, 128], strides = [1, 1]} : vector<16x128xf32> to vector<4x128xf32>
    %219 = vector.broadcast %217 : vector<1x128xf32> to vector<4x128xf32>
    %220 = arith.mulf %219, %218 : vector<4x128xf32>
    %221 = arith.addf %216, %220 : vector<4x128xf32>
    %c208 = arith.constant 208 : index
    %c0_32 = arith.constant 0 : index
    %222 = vector.load %arg2[%c208, %c0_32] : memref<256x256xbf16, #tpu.memory_space<vmem>>, vector<16x256xbf16>
    %c3328 = arith.constant 3328 : index
    %c0_33 = arith.constant 0 : index
    %223 = vector.load %arg1[%c3328, %c0_33] : memref<4096x128xbf16, #tpu.memory_space<vmem>>, vector<256x128xbf16>
    %cst_34 = arith.constant dense<0.000000e+00> : vector<16x128xf32>
    %224 = tpu.matmul %222, %223, %cst_34 {dimension_numbers = #tpu.dot_dimension_numbers<[1], [0], [0], [1], [0, 0, 1, 1], [], []>} : vector<16x256xbf16>, vector<256x128xbf16>, vector<16x128xf32> -> vector<16x128xf32>
    %225 = vector.extract_strided_slice %221 {offsets = [0, 0], sizes = [1, 128], strides = [1, 1]} : vector<4x128xf32> to vector<1x128xf32>
    %226 = vector.extract_strided_slice %224 {offsets = [0, 0], sizes = [4, 128], strides = [1, 1]} : vector<16x128xf32> to vector<4x128xf32>
    %227 = vector.broadcast %225 : vector<1x128xf32> to vector<4x128xf32>
    %228 = arith.mulf %227, %226 : vector<4x128xf32>
    %229 = vector.extract_strided_slice %221 {offsets = [1, 0], sizes = [1, 128], strides = [1, 1]} : vector<4x128xf32> to vector<1x128xf32>
    %230 = vector.extract_strided_slice %224 {offsets = [4, 0], sizes = [4, 128], strides = [1, 1]} : vector<16x128xf32> to vector<4x128xf32>
    %231 = vector.broadcast %229 : vector<1x128xf32> to vector<4x128xf32>
    %232 = arith.mulf %231, %230 : vector<4x128xf32>
    %233 = arith.addf %228, %232 : vector<4x128xf32>
    %234 = vector.extract_strided_slice %221 {offsets = [2, 0], sizes = [1, 128], strides = [1, 1]} : vector<4x128xf32> to vector<1x128xf32>
    %235 = vector.extract_strided_slice %224 {offsets = [8, 0], sizes = [4, 128], strides = [1, 1]} : vector<16x128xf32> to vector<4x128xf32>
    %236 = vector.broadcast %234 : vector<1x128xf32> to vector<4x128xf32>
    %237 = arith.mulf %236, %235 : vector<4x128xf32>
    %238 = arith.addf %233, %237 : vector<4x128xf32>
    %239 = vector.extract_strided_slice %221 {offsets = [3, 0], sizes = [1, 128], strides = [1, 1]} : vector<4x128xf32> to vector<1x128xf32>
    %240 = vector.extract_strided_slice %224 {offsets = [12, 0], sizes = [4, 128], strides = [1, 1]} : vector<16x128xf32> to vector<4x128xf32>
    %241 = vector.broadcast %239 : vector<1x128xf32> to vector<4x128xf32>
    %242 = arith.mulf %241, %240 : vector<4x128xf32>
    %243 = arith.addf %238, %242 : vector<4x128xf32>
    %c192 = arith.constant 192 : index
    %c0_35 = arith.constant 0 : index
    %244 = vector.load %arg2[%c192, %c0_35] : memref<256x256xbf16, #tpu.memory_space<vmem>>, vector<16x256xbf16>
    %c3072 = arith.constant 3072 : index
    %c0_36 = arith.constant 0 : index
    %245 = vector.load %arg1[%c3072, %c0_36] : memref<4096x128xbf16, #tpu.memory_space<vmem>>, vector<256x128xbf16>
    %cst_37 = arith.constant dense<0.000000e+00> : vector<16x128xf32>
    %246 = tpu.matmul %244, %245, %cst_37 {dimension_numbers = #tpu.dot_dimension_numbers<[1], [0], [0], [1], [0, 0, 1, 1], [], []>} : vector<16x256xbf16>, vector<256x128xbf16>, vector<16x128xf32> -> vector<16x128xf32>
    %247 = vector.extract_strided_slice %243 {offsets = [0, 0], sizes = [1, 128], strides = [1, 1]} : vector<4x128xf32> to vector<1x128xf32>
    %248 = vector.extract_strided_slice %246 {offsets = [0, 0], sizes = [4, 128], strides = [1, 1]} : vector<16x128xf32> to vector<4x128xf32>
    %249 = vector.broadcast %247 : vector<1x128xf32> to vector<4x128xf32>
    %250 = arith.mulf %249, %248 : vector<4x128xf32>
    %251 = vector.extract_strided_slice %243 {offsets = [1, 0], sizes = [1, 128], strides = [1, 1]} : vector<4x128xf32> to vector<1x128xf32>
    %252 = vector.extract_strided_slice %246 {offsets = [4, 0], sizes = [4, 128], strides = [1, 1]} : vector<16x128xf32> to vector<4x128xf32>
    %253 = vector.broadcast %251 : vector<1x128xf32> to vector<4x128xf32>
    %254 = arith.mulf %253, %252 : vector<4x128xf32>
    %255 = arith.addf %250, %254 : vector<4x128xf32>
    %256 = vector.extract_strided_slice %243 {offsets = [2, 0], sizes = [1, 128], strides = [1, 1]} : vector<4x128xf32> to vector<1x128xf32>
    %257 = vector.extract_strided_slice %246 {offsets = [8, 0], sizes = [4, 128], strides = [1, 1]} : vector<16x128xf32> to vector<4x128xf32>
    %258 = vector.broadcast %256 : vector<1x128xf32> to vector<4x128xf32>
    %259 = arith.mulf %258, %257 : vector<4x128xf32>
    %260 = arith.addf %255, %259 : vector<4x128xf32>
    %261 = vector.extract_strided_slice %243 {offsets = [3, 0], sizes = [1, 128], strides = [1, 1]} : vector<4x128xf32> to vector<1x128xf32>
    %262 = vector.extract_strided_slice %246 {offsets = [12, 0], sizes = [4, 128], strides = [1, 1]} : vector<16x128xf32> to vector<4x128xf32>
    %263 = vector.broadcast %261 : vector<1x128xf32> to vector<4x128xf32>
    %264 = arith.mulf %263, %262 : vector<4x128xf32>
    %265 = arith.addf %260, %264 : vector<4x128xf32>
    %c176 = arith.constant 176 : index
    %c0_38 = arith.constant 0 : index
    %266 = vector.load %arg2[%c176, %c0_38] : memref<256x256xbf16, #tpu.memory_space<vmem>>, vector<16x256xbf16>
    %c2816 = arith.constant 2816 : index
    %c0_39 = arith.constant 0 : index
    %267 = vector.load %arg1[%c2816, %c0_39] : memref<4096x128xbf16, #tpu.memory_space<vmem>>, vector<256x128xbf16>
    %cst_40 = arith.constant dense<0.000000e+00> : vector<16x128xf32>
    %268 = tpu.matmul %266, %267, %cst_40 {dimension_numbers = #tpu.dot_dimension_numbers<[1], [0], [0], [1], [0, 0, 1, 1], [], []>} : vector<16x256xbf16>, vector<256x128xbf16>, vector<16x128xf32> -> vector<16x128xf32>
    %269 = vector.extract_strided_slice %265 {offsets = [0, 0], sizes = [1, 128], strides = [1, 1]} : vector<4x128xf32> to vector<1x128xf32>
    %270 = vector.extract_strided_slice %268 {offsets = [0, 0], sizes = [4, 128], strides = [1, 1]} : vector<16x128xf32> to vector<4x128xf32>
    %271 = vector.broadcast %269 : vector<1x128xf32> to vector<4x128xf32>
    %272 = arith.mulf %271, %270 : vector<4x128xf32>
    %273 = vector.extract_strided_slice %265 {offsets = [1, 0], sizes = [1, 128], strides = [1, 1]} : vector<4x128xf32> to vector<1x128xf32>
    %274 = vector.extract_strided_slice %268 {offsets = [4, 0], sizes = [4, 128], strides = [1, 1]} : vector<16x128xf32> to vector<4x128xf32>
    %275 = vector.broadcast %273 : vector<1x128xf32> to vector<4x128xf32>
    %276 = arith.mulf %275, %274 : vector<4x128xf32>
    %277 = arith.addf %272, %276 : vector<4x128xf32>
    %278 = vector.extract_strided_slice %265 {offsets = [2, 0], sizes = [1, 128], strides = [1, 1]} : vector<4x128xf32> to vector<1x128xf32>
    %279 = vector.extract_strided_slice %268 {offsets = [8, 0], sizes = [4, 128], strides = [1, 1]} : vector<16x128xf32> to vector<4x128xf32>
    %280 = vector.broadcast %278 : vector<1x128xf32> to vector<4x128xf32>
    %281 = arith.mulf %280, %279 : vector<4x128xf32>
    %282 = arith.addf %277, %281 : vector<4x128xf32>
    %283 = vector.extract_strided_slice %265 {offsets = [3, 0], sizes = [1, 128], strides = [1, 1]} : vector<4x128xf32> to vector<1x128xf32>
    %284 = vector.extract_strided_slice %268 {offsets = [12, 0], sizes = [4, 128], strides = [1, 1]} : vector<16x128xf32> to vector<4x128xf32>
    %285 = vector.broadcast %283 : vector<1x128xf32> to vector<4x128xf32>
    %286 = arith.mulf %285, %284 : vector<4x128xf32>
    %287 = arith.addf %282, %286 : vector<4x128xf32>
    %c160 = arith.constant 160 : index
    %c0_41 = arith.constant 0 : index
    %288 = vector.load %arg2[%c160, %c0_41] : memref<256x256xbf16, #tpu.memory_space<vmem>>, vector<16x256xbf16>
    %c2560 = arith.constant 2560 : index
    %c0_42 = arith.constant 0 : index
    %289 = vector.load %arg1[%c2560, %c0_42] : memref<4096x128xbf16, #tpu.memory_space<vmem>>, vector<256x128xbf16>
    %cst_43 = arith.constant dense<0.000000e+00> : vector<16x128xf32>
    %290 = tpu.matmul %288, %289, %cst_43 {dimension_numbers = #tpu.dot_dimension_numbers<[1], [0], [0], [1], [0, 0, 1, 1], [], []>} : vector<16x256xbf16>, vector<256x128xbf16>, vector<16x128xf32> -> vector<16x128xf32>
    %291 = vector.extract_strided_slice %287 {offsets = [0, 0], sizes = [1, 128], strides = [1, 1]} : vector<4x128xf32> to vector<1x128xf32>
    %292 = vector.extract_strided_slice %290 {offsets = [0, 0], sizes = [4, 128], strides = [1, 1]} : vector<16x128xf32> to vector<4x128xf32>
    %293 = vector.broadcast %291 : vector<1x128xf32> to vector<4x128xf32>
    %294 = arith.mulf %293, %292 : vector<4x128xf32>
    %295 = vector.extract_strided_slice %287 {offsets = [1, 0], sizes = [1, 128], strides = [1, 1]} : vector<4x128xf32> to vector<1x128xf32>
    %296 = vector.extract_strided_slice %290 {offsets = [4, 0], sizes = [4, 128], strides = [1, 1]} : vector<16x128xf32> to vector<4x128xf32>
    %297 = vector.broadcast %295 : vector<1x128xf32> to vector<4x128xf32>
    %298 = arith.mulf %297, %296 : vector<4x128xf32>
    %299 = arith.addf %294, %298 : vector<4x128xf32>
    %300 = vector.extract_strided_slice %287 {offsets = [2, 0], sizes = [1, 128], strides = [1, 1]} : vector<4x128xf32> to vector<1x128xf32>
    %301 = vector.extract_strided_slice %290 {offsets = [8, 0], sizes = [4, 128], strides = [1, 1]} : vector<16x128xf32> to vector<4x128xf32>
    %302 = vector.broadcast %300 : vector<1x128xf32> to vector<4x128xf32>
    %303 = arith.mulf %302, %301 : vector<4x128xf32>
    %304 = arith.addf %299, %303 : vector<4x128xf32>
    %305 = vector.extract_strided_slice %287 {offsets = [3, 0], sizes = [1, 128], strides = [1, 1]} : vector<4x128xf32> to vector<1x128xf32>
    %306 = vector.extract_strided_slice %290 {offsets = [12, 0], sizes = [4, 128], strides = [1, 1]} : vector<16x128xf32> to vector<4x128xf32>
    %307 = vector.broadcast %305 : vector<1x128xf32> to vector<4x128xf32>
    %308 = arith.mulf %307, %306 : vector<4x128xf32>
    %309 = arith.addf %304, %308 : vector<4x128xf32>
    %c144 = arith.constant 144 : index
    %c0_44 = arith.constant 0 : index
    %310 = vector.load %arg2[%c144, %c0_44] : memref<256x256xbf16, #tpu.memory_space<vmem>>, vector<16x256xbf16>
    %c2304 = arith.constant 2304 : index
    %c0_45 = arith.constant 0 : index
    %311 = vector.load %arg1[%c2304, %c0_45] : memref<4096x128xbf16, #tpu.memory_space<vmem>>, vector<256x128xbf16>
    %cst_46 = arith.constant dense<0.000000e+00> : vector<16x128xf32>
    %312 = tpu.matmul %310, %311, %cst_46 {dimension_numbers = #tpu.dot_dimension_numbers<[1], [0], [0], [1], [0, 0, 1, 1], [], []>} : vector<16x256xbf16>, vector<256x128xbf16>, vector<16x128xf32> -> vector<16x128xf32>
    %313 = vector.extract_strided_slice %309 {offsets = [0, 0], sizes = [1, 128], strides = [1, 1]} : vector<4x128xf32> to vector<1x128xf32>
    %314 = vector.extract_strided_slice %312 {offsets = [0, 0], sizes = [4, 128], strides = [1, 1]} : vector<16x128xf32> to vector<4x128xf32>
    %315 = vector.broadcast %313 : vector<1x128xf32> to vector<4x128xf32>
    %316 = arith.mulf %315, %314 : vector<4x128xf32>
    %317 = vector.extract_strided_slice %309 {offsets = [1, 0], sizes = [1, 128], strides = [1, 1]} : vector<4x128xf32> to vector<1x128xf32>
    %318 = vector.extract_strided_slice %312 {offsets = [4, 0], sizes = [4, 128], strides = [1, 1]} : vector<16x128xf32> to vector<4x128xf32>
    %319 = vector.broadcast %317 : vector<1x128xf32> to vector<4x128xf32>
    %320 = arith.mulf %319, %318 : vector<4x128xf32>
    %321 = arith.addf %316, %320 : vector<4x128xf32>
    %322 = vector.extract_strided_slice %309 {offsets = [2, 0], sizes = [1, 128], strides = [1, 1]} : vector<4x128xf32> to vector<1x128xf32>
    %323 = vector.extract_strided_slice %312 {offsets = [8, 0], sizes = [4, 128], strides = [1, 1]} : vector<16x128xf32> to vector<4x128xf32>
    %324 = vector.broadcast %322 : vector<1x128xf32> to vector<4x128xf32>
    %325 = arith.mulf %324, %323 : vector<4x128xf32>
    %326 = arith.addf %321, %325 : vector<4x128xf32>
    %327 = vector.extract_strided_slice %309 {offsets = [3, 0], sizes = [1, 128], strides = [1, 1]} : vector<4x128xf32> to vector<1x128xf32>
    %328 = vector.extract_strided_slice %312 {offsets = [12, 0], sizes = [4, 128], strides = [1, 1]} : vector<16x128xf32> to vector<4x128xf32>
    %329 = vector.broadcast %327 : vector<1x128xf32> to vector<4x128xf32>
    %330 = arith.mulf %329, %328 : vector<4x128xf32>
    %331 = arith.addf %326, %330 : vector<4x128xf32>
    %c128 = arith.constant 128 : index
    %c0_47 = arith.constant 0 : index
    %332 = vector.load %arg2[%c128, %c0_47] : memref<256x256xbf16, #tpu.memory_space<vmem>>, vector<16x256xbf16>
    %c2048 = arith.constant 2048 : index
    %c0_48 = arith.constant 0 : index
    %333 = vector.load %arg1[%c2048, %c0_48] : memref<4096x128xbf16, #tpu.memory_space<vmem>>, vector<256x128xbf16>
    %cst_49 = arith.constant dense<0.000000e+00> : vector<16x128xf32>
    %334 = tpu.matmul %332, %333, %cst_49 {dimension_numbers = #tpu.dot_dimension_numbers<[1], [0], [0], [1], [0, 0, 1, 1], [], []>} : vector<16x256xbf16>, vector<256x128xbf16>, vector<16x128xf32> -> vector<16x128xf32>
    %335 = vector.extract_strided_slice %331 {offsets = [0, 0], sizes = [1, 128], strides = [1, 1]} : vector<4x128xf32> to vector<1x128xf32>
    %336 = vector.extract_strided_slice %334 {offsets = [0, 0], sizes = [4, 128], strides = [1, 1]} : vector<16x128xf32> to vector<4x128xf32>
    %337 = vector.broadcast %335 : vector<1x128xf32> to vector<4x128xf32>
    %338 = arith.mulf %337, %336 : vector<4x128xf32>
    %339 = vector.extract_strided_slice %331 {offsets = [1, 0], sizes = [1, 128], strides = [1, 1]} : vector<4x128xf32> to vector<1x128xf32>
    %340 = vector.extract_strided_slice %334 {offsets = [4, 0], sizes = [4, 128], strides = [1, 1]} : vector<16x128xf32> to vector<4x128xf32>
    %341 = vector.broadcast %339 : vector<1x128xf32> to vector<4x128xf32>
    %342 = arith.mulf %341, %340 : vector<4x128xf32>
    %343 = arith.addf %338, %342 : vector<4x128xf32>
    %344 = vector.extract_strided_slice %331 {offsets = [2, 0], sizes = [1, 128], strides = [1, 1]} : vector<4x128xf32> to vector<1x128xf32>
    %345 = vector.extract_strided_slice %334 {offsets = [8, 0], sizes = [4, 128], strides = [1, 1]} : vector<16x128xf32> to vector<4x128xf32>
    %346 = vector.broadcast %344 : vector<1x128xf32> to vector<4x128xf32>
    %347 = arith.mulf %346, %345 : vector<4x128xf32>
    %348 = arith.addf %343, %347 : vector<4x128xf32>
    %349 = vector.extract_strided_slice %331 {offsets = [3, 0], sizes = [1, 128], strides = [1, 1]} : vector<4x128xf32> to vector<1x128xf32>
    %350 = vector.extract_strided_slice %334 {offsets = [12, 0], sizes = [4, 128], strides = [1, 1]} : vector<16x128xf32> to vector<4x128xf32>
    %351 = vector.broadcast %349 : vector<1x128xf32> to vector<4x128xf32>
    %352 = arith.mulf %351, %350 : vector<4x128xf32>
    %353 = arith.addf %348, %352 : vector<4x128xf32>
    %c0_50 = arith.constant 0 : index
    %c0_51 = arith.constant 0 : index
    %354 = vector.load %arg3[%c0_50, %c0_51] : memref<64x4xbf16, #tpu.memory_space<vmem>>, vector<64x4xbf16>
    %355 = arith.truncf %353 : vector<4x128xf32> to vector<4x128xbf16>
    %cst_52 = arith.constant dense<0.000000e+00> : vector<64x128xf32>
    %356 = tpu.matmul %354, %355, %cst_52 {dimension_numbers = #tpu.dot_dimension_numbers<[1], [0], [0], [1], [0, 0, 1, 1], [], []>} : vector<64x4xbf16>, vector<4x128xbf16>, vector<64x128xf32> -> vector<64x128xf32>
    %357 = vector.extract_strided_slice %176 {offsets = [0, 0], sizes = [1, 128], strides = [1, 1]} : vector<4x128xf32> to vector<1x128xf32>
    %358 = vector.extract_strided_slice %356 {offsets = [0, 0], sizes = [16, 128], strides = [1, 1]} : vector<64x128xf32> to vector<16x128xf32>
    %359 = vector.broadcast %357 : vector<1x128xf32> to vector<16x128xf32>
    %360 = arith.mulf %359, %358 : vector<16x128xf32>
    %361 = vector.extract_strided_slice %176 {offsets = [1, 0], sizes = [1, 128], strides = [1, 1]} : vector<4x128xf32> to vector<1x128xf32>
    %362 = vector.extract_strided_slice %356 {offsets = [16, 0], sizes = [16, 128], strides = [1, 1]} : vector<64x128xf32> to vector<16x128xf32>
    %363 = vector.broadcast %361 : vector<1x128xf32> to vector<16x128xf32>
    %364 = arith.mulf %363, %362 : vector<16x128xf32>
    %365 = arith.addf %360, %364 : vector<16x128xf32>
    %366 = vector.extract_strided_slice %176 {offsets = [2, 0], sizes = [1, 128], strides = [1, 1]} : vector<4x128xf32> to vector<1x128xf32>
    %367 = vector.extract_strided_slice %356 {offsets = [32, 0], sizes = [16, 128], strides = [1, 1]} : vector<64x128xf32> to vector<16x128xf32>
    %368 = vector.broadcast %366 : vector<1x128xf32> to vector<16x128xf32>
    %369 = arith.mulf %368, %367 : vector<16x128xf32>
    %370 = arith.addf %365, %369 : vector<16x128xf32>
    %371 = vector.extract_strided_slice %176 {offsets = [3, 0], sizes = [1, 128], strides = [1, 1]} : vector<4x128xf32> to vector<1x128xf32>
    %372 = vector.extract_strided_slice %356 {offsets = [48, 0], sizes = [16, 128], strides = [1, 1]} : vector<64x128xf32> to vector<16x128xf32>
    %373 = vector.broadcast %371 : vector<1x128xf32> to vector<16x128xf32>
    %374 = arith.mulf %373, %372 : vector<16x128xf32>
    %375 = arith.addf %370, %374 : vector<16x128xf32>
    %c0_53 = arith.constant 0 : index
    %c0_54 = arith.constant 0 : index
    %376 = vector.load %arg4[%c0_53, %c0_54] : memref<16x128xf32, #tpu.memory_space<vmem>>, vector<16x128xf32>
    tpu.vector_store %arg4[%c0_53, %c0_54], %375 {strides = array<i32>} : memref<16x128xf32, #tpu.memory_space<vmem>>, vector<16x128xf32>,
    return
  }
  func.func @transform_0(%arg0: i32) -> (i32, i32) {
    %c0_i32 = arith.constant 0 : i32
    %c0_i32_0 = arith.constant 0 : i32
    return %c0_i32, %arg0 : i32, i32
  }
  func.func @transform_1(%arg0: i32) -> (i32, i32) {
    %c0_i32 = arith.constant 0 : i32
    %c0_i32_0 = arith.constant 0 : i32
    %c0_i32_1 = arith.constant 0 : i32
    return %c0_i32, %c0_i32_0 : i32, i32
  }
  func.func @transform_2(%arg0: i32) -> (i32, i32) {
    %c0_i32 = arith.constant 0 : i32
    %c0_i32_0 = arith.constant 0 : i32
    %c0_i32_1 = arith.constant 0 : i32
    return %c0_i32, %c0_i32_0 : i32, i32
  }
  func.func @transform_3(%arg0: i32) -> (i32, i32) {
    %c0_i32 = arith.constant 0 : i32
    %c0_i32_0 = arith.constant 0 : i32
    return %c0_i32, %arg0 : i32, i32
  }
}

</mosaic_0001>

<llo_original>
// kernel: _lambda_.1
$region0: #{_lambda_.1}
  #allocation0 [shape = 'u32[]', space=smem, size = 0x4, offset = 0x4, fixed_abs, tag = 'smem constant byte address 0x4 - core index']
  #allocation1 [shape = 'u32[144,128]{1,0:T(1,128)}', space=vmem, size = 0x12000, scoped, tag = 'internal scratch']
  %s0 = inlined_call_operand.vmem [shape: bf16[4096,128], index: 0, kind: input, shape index: {}]
  %s1 = inlined_call_operand.vmem [shape: bf16[256,256], index: 1, kind: input, shape index: {}]
  %s2 = inlined_call_operand.vmem [shape: bf16[64,4], index: 2, kind: input, shape index: {}]
  %s3 = inlined_call_operand.vmem [shape: f32[16,128], index: 3, kind: output, shape index: {}]
  %s4 = sld [smem:[#allocation0]]
  $region22: #{_lambda_.1} parent=0
    _
  %s6 = ssub.s32 1, %s4
  %s7 = scalar_select 0, %s6, %s4
  // Predicated region
  $region2: #{_lambda_.1} parent=0 // pred_check
    _
  $region3: #{_lambda_.1} parent=0 // pred_check_branch
    %9 = sbr.rel (0) target = $region5
  $region4: #{_lambda_.1} parent=0 // pred_region
    _
  $region5: #{_lambda_.1} parent=0 // pred_fallthru
    _
  // Predicated region
  $region6: #{_lambda_.1} parent=0 // pred_check
    _
  $region7: #{_lambda_.1} parent=0 // pred_check_branch
    %11 = sbr.rel (0) target = $region9
  $region8: #{_lambda_.1} parent=0 // pred_region
    _
  $region9: #{_lambda_.1} parent=0 // pred_fallthru
    _
  // Predicated region
  $region10: #{_lambda_.1} parent=0 // pred_check
    _
  $region11: #{_lambda_.1} parent=0 // pred_check_branch
    %13 = sbr.rel (0) target = $region13
  $region12: #{_lambda_.1} parent=0 // pred_region
    _
  $region13: #{_lambda_.1} parent=0 // pred_fallthru
    _
  %v15 = vld [vmem:[%s1] sm:$0xff]
  %v16 = vld [vmem:[%s1 + $0x8] sm:$0xff]
  %v17 = vld [vmem:[%s0] sm:$0xf]
  %v18 = vld [vmem:[%s0 + $0x4] sm:$0xf]
  %v19 = vld [vmem:[%s0 + $0x8] sm:$0xf]
  %v20 = vld [vmem:[%s0 + $0xc] sm:$0xf]
  %v21 = vld [vmem:[%s0 + $0x10] sm:$0xf]
  %v22 = vld [vmem:[%s0 + $0x14] sm:$0xf]
  %v23 = vld [vmem:[%s0 + $0x18] sm:$0xf]
  %v24 = vld [vmem:[%s0 + $0x1c] sm:$0xf]
  %v25 = vld [vmem:[%s0 + $0x20] sm:$0xf]
  %v26 = vld [vmem:[%s0 + $0x24] sm:$0xf]
  %v27 = vld [vmem:[%s0 + $0x28] sm:$0xf]
  %v28 = vld [vmem:[%s0 + $0x2c] sm:$0xf]
  %v29 = vld [vmem:[%s0 + $0x30] sm:$0xf]
  %v30 = vld [vmem:[%s0 + $0x34] sm:$0xf]
  %v31 = vld [vmem:[%s0 + $0x38] sm:$0xf]
  %v32 = vld [vmem:[%s0 + $0x3c] sm:$0xf]
  %v33 = vld [vmem:[%s0 + $0x40] sm:$0xf]
  %v34 = vld [vmem:[%s0 + $0x44] sm:$0xf]
  %v35 = vld [vmem:[%s0 + $0x48] sm:$0xf]
  %v36 = vld [vmem:[%s0 + $0x4c] sm:$0xf]
  %v37 = vld [vmem:[%s0 + $0x50] sm:$0xf]
  %v38 = vld [vmem:[%s0 + $0x54] sm:$0xf]
  %v39 = vld [vmem:[%s0 + $0x58] sm:$0xf]
  %v40 = vld [vmem:[%s0 + $0x5c] sm:$0xf]
  %v41 = vld [vmem:[%s0 + $0x60] sm:$0xf]
  %v42 = vld [vmem:[%s0 + $0x64] sm:$0xf]
  %v43 = vld [vmem:[%s0 + $0x68] sm:$0xf]
  %v44 = vld [vmem:[%s0 + $0x6c] sm:$0xf]
  %v45 = vld [vmem:[%s0 + $0x70] sm:$0xf]
  %v46 = vld [vmem:[%s0 + $0x74] sm:$0xf]
  %v47 = vld [vmem:[%s0 + $0x78] sm:$0xf]
  %v48 = vld [vmem:[%s0 + $0x7c] sm:$0xf]
  %v51 = vunpack.c.l.b16 %v15
  %v52 = vunpack.c.h.b16 %v15
  %v53 = vunpack.c.l.b16 %v16
  %v54 = vunpack.c.h.b16 %v16
  %v55 = vpack.c.b16 %v53, %v51
  %v56 = vpack.c.b16 %v54, %v52
  %v91 = vunpack.c.l.b16 %v17
  %v92 = vunpack.c.l.b16 %v18
  %v93 = vunpack.c.l.b16 %v19
  %v94 = vunpack.c.l.b16 %v20
  %v95 = vunpack.c.l.b16 %v21
  %v96 = vunpack.c.l.b16 %v22
  %v97 = vunpack.c.l.b16 %v23
  %v98 = vunpack.c.l.b16 %v24
  %v99 = vunpack.c.l.b16 %v25
  %v100 = vunpack.c.l.b16 %v26
  %v101 = vunpack.c.l.b16 %v27
  %v102 = vunpack.c.l.b16 %v28
  %v103 = vunpack.c.l.b16 %v29
  %v104 = vunpack.c.l.b16 %v30
  %v105 = vunpack.c.l.b16 %v31
  %v106 = vunpack.c.l.b16 %v32
  %v107 = vunpack.c.l.b16 %v33
  %v108 = vunpack.c.l.b16 %v34
  %v109 = vunpack.c.l.b16 %v35
  %v110 = vunpack.c.l.b16 %v36
  %v111 = vunpack.c.l.b16 %v37
  %v112 = vunpack.c.l.b16 %v38
  %v113 = vunpack.c.l.b16 %v39
  %v114 = vunpack.c.l.b16 %v40
  %v115 = vunpack.c.l.b16 %v41
  %v116 = vunpack.c.l.b16 %v42
  %v117 = vunpack.c.l.b16 %v43
  %v118 = vunpack.c.l.b16 %v44
  %v119 = vunpack.c.l.b16 %v45
  %v120 = vunpack.c.l.b16 %v46
  %v121 = vunpack.c.l.b16 %v47
  %v122 = vunpack.c.l.b16 %v48
  %v123 = vpack.c.b16 %v92, %v91
  %v124 = vpack.c.b16 %v94, %v93
  %v125 = vpack.c.b16 %v96, %v95
  %v126 = vpack.c.b16 %v98, %v97
  %v127 = vpack.c.b16 %v100, %v99
  %v128 = vpack.c.b16 %v102, %v101
  %v129 = vpack.c.b16 %v104, %v103
  %v130 = vpack.c.b16 %v106, %v105
  %v131 = vpack.c.b16 %v108, %v107
  %v132 = vpack.c.b16 %v110, %v109
  %v133 = vpack.c.b16 %v112, %v111
  %v134 = vpack.c.b16 %v114, %v113
  %v135 = vpack.c.b16 %v116, %v115
  %v136 = vpack.c.b16 %v118, %v117
  %v137 = vpack.c.b16 %v120, %v119
  %v138 = vpack.c.b16 %v122, %v121
  %155 = vmatprep.subr.bf16.mxu0 0
  %156 = vmatpush1.bf16.msra.mxu0 %v123
  %157 = vmatprep.subr.bf16.mxu0 0
  %158 = vmatpush1.bf16.msra.mxu0 %v124
  %159 = vmatprep.subr.bf16.mxu0 0
  %160 = vmatpush1.bf16.msra.mxu0 %v125
  %161 = vmatprep.subr.bf16.mxu0 0
  %162 = vmatpush1.bf16.msra.mxu0 %v126
  %163 = vmatprep.subr.bf16.mxu0 0
  %164 = vmatpush1.bf16.msra.mxu0 %v127
  %165 = vmatprep.subr.bf16.mxu0 0
  %166 = vmatpush1.bf16.msra.mxu0 %v128
  %167 = vmatprep.subr.bf16.mxu0 0
  %168 = vmatpush1.bf16.msra.mxu0 %v129
  %169 = vmatprep.subr.bf16.mxu0 0
  %170 = vmatpush1.bf16.msra.mxu0 %v130
  %171 = vmatprep.subr.bf16.mxu0 0
  %172 = vmatpush1.bf16.msra.mxu0 %v131
  %173 = vmatprep.subr.bf16.mxu0 0
  %174 = vmatpush1.bf16.msra.mxu0 %v132
  %175 = vmatprep.subr.bf16.mxu0 0
  %176 = vmatpush1.bf16.msra.mxu0 %v133
  %177 = vmatprep.subr.bf16.mxu0 0
  %178 = vmatpush1.bf16.msra.mxu0 %v134
  %179 = vmatprep.subr.bf16.mxu0 0
  %180 = vmatpush1.bf16.msra.mxu0 %v135
  %181 = vmatprep.subr.bf16.mxu0 0
  %182 = vmatpush1.bf16.msra.mxu0 %v136
  %183 = vmatprep.subr.bf16.mxu0 0
  %184 = vmatpush1.bf16.msra.mxu0 %v137
  %185 = vmatprep.subr.bf16.mxu0 0
  %186 = vmatpush1.bf16.msra.mxu0 %v138
  %187 = vmatprep.mubr.bf16.mxu0 %v56
  %188 = vmatmul.mubr.bf16.gmra.mrb[0].mxu0 %v55
  %v189 = vpop.f32.mrb[0].mxu0
  %v190 = vadd.f32 0.0, %v189
  %v191 = vpop.f32.mrb[0].mxu0
  %v192 = vpop.f32.mrb[0].mxu0
  %v193 = vadd.f32 0.0, %v192
  %v194 = vpop.f32.mrb[0].mxu0
  %195 = vdwg.mxu0
  %v197 = vrot.slane %v190, 4
  %v199 = vadd.f32 %v190, %v197
  %v200 = vadd.f32 %v199, %v193
  %v202 = vrot.slane %v193, 4
  %v204 = vadd.f32 %v200, %v202
  %v205 = vld [vmem:[%s1 + $0x10] sm:$0xff]
  %v206 = vld [vmem:[%s1 + $0x18] sm:$0xff]
  %v207 = vld [vmem:[%s0 + $0x80] sm:$0xf]
  %v208 = vld [vmem:[%s0 + $0x84] sm:$0xf]
  %v209 = vld [vmem:[%s0 + $0x88] sm:$0xf]
  %v210 = vld [vmem:[%s0 + $0x8c] sm:$0xf]
  %v211 = vld [vmem:[%s0 + $0x90] sm:$0xf]
  %v212 = vld [vmem:[%s0 + $0x94] sm:$0xf]
  %v213 = vld [vmem:[%s0 + $0x98] sm:$0xf]
  %v214 = vld [vmem:[%s0 + $0x9c] sm:$0xf]
  %v215 = vld [vmem:[%s0 + $0xa0] sm:$0xf]
  %v216 = vld [vmem:[%s0 + $0xa4] sm:$0xf]
  %v217 = vld [vmem:[%s0 + $0xa8] sm:$0xf]
  %v218 = vld [vmem:[%s0 + $0xac] sm:$0xf]
  %v219 = vld [vmem:[%s0 + $0xb0] sm:$0xf]
  %v220 = vld [vmem:[%s0 + $0xb4] sm:$0xf]
  %v221 = vld [vmem:[%s0 + $0xb8] sm:$0xf]
  %v222 = vld [vmem:[%s0 + $0xbc] sm:$0xf]
  %v223 = vld [vmem:[%s0 + $0xc0] sm:$0xf]
  %v224 = vld [vmem:[%s0 + $0xc4] sm:$0xf]
  %v225 = vld [vmem:[%s0 + $0xc8] sm:$0xf]
  %v226 = vld [vmem:[%s0 + $0xcc] sm:$0xf]
  %v227 = vld [vmem:[%s0 + $0xd0] sm:$0xf]
  %v228 = vld [vmem:[%s0 + $0xd4] sm:$0xf]
  %v229 = vld [vmem:[%s0 + $0xd8] sm:$0xf]
  %v230 = vld [vmem:[%s0 + $0xdc] sm:$0xf]
  %v231 = vld [vmem:[%s0 + $0xe0] sm:$0xf]
  %v232 = vld [vmem:[%s0 + $0xe4] sm:$0xf]
  %v233 = vld [vmem:[%s0 + $0xe8] sm:$0xf]
  %v234 = vld [vmem:[%s0 + $0xec] sm:$0xf]
  %v235 = vld [vmem:[%s0 + $0xf0] sm:$0xf]
  %v236 = vld [vmem:[%s0 + $0xf4] sm:$0xf]
  %v237 = vld [vmem:[%s0 + $0xf8] sm:$0xf]
  %v238 = vld [vmem:[%s0 + $0xfc] sm:$0xf]
  %v241 = vunpack.c.l.b16 %v205
  %v242 = vunpack.c.h.b16 %v205
  %v243 = vunpack.c.l.b16 %v206
  %v244 = vunpack.c.h.b16 %v206
  %v245 = vpack.c.b16 %v243, %v241
  %v246 = vpack.c.b16 %v244, %v242
  %v281 = vunpack.c.l.b16 %v207
  %v282 = vunpack.c.l.b16 %v208
  %v283 = vunpack.c.l.b16 %v209
  %v284 = vunpack.c.l.b16 %v210
  %v285 = vunpack.c.l.b16 %v211
  %v286 = vunpack.c.l.b16 %v212
  %v287 = vunpack.c.l.b16 %v213
  %v288 = vunpack.c.l.b16 %v214
  %v289 = vunpack.c.l.b16 %v215
  %v290 = vunpack.c.l.b16 %v216
  %v291 = vunpack.c.l.b16 %v217
  %v292 = vunpack.c.l.b16 %v218
  %v293 = vunpack.c.l.b16 %v219
  %v294 = vunpack.c.l.b16 %v220
  %v295 = vunpack.c.l.b16 %v221
  %v296 = vunpack.c.l.b16 %v222
  %v297 = vunpack.c.l.b16 %v223
  %v298 = vunpack.c.l.b16 %v224
  %v299 = vunpack.c.l.b16 %v225
  %v300 = vunpack.c.l.b16 %v226
  %v301 = vunpack.c.l.b16 %v227
  %v302 = vunpack.c.l.b16 %v228
  %v303 = vunpack.c.l.b16 %v229
  %v304 = vunpack.c.l.b16 %v230
  %v305 = vunpack.c.l.b16 %v231
  %v306 = vunpack.c.l.b16 %v232
  %v307 = vunpack.c.l.b16 %v233
  %v308 = vunpack.c.l.b16 %v234
  %v309 = vunpack.c.l.b16 %v235
  %v310 = vunpack.c.l.b16 %v236
  %v311 = vunpack.c.l.b16 %v237
  %v312 = vunpack.c.l.b16 %v238
  %v313 = vpack.c.b16 %v282, %v281
  %v314 = vpack.c.b16 %v284, %v283
  %v315 = vpack.c.b16 %v286, %v285
  %v316 = vpack.c.b16 %v288, %v287
  %v317 = vpack.c.b16 %v290, %v289
  %v318 = vpack.c.b16 %v292, %v291
  %v319 = vpack.c.b16 %v294, %v293
  %v320 = vpack.c.b16 %v296, %v295
  %v321 = vpack.c.b16 %v298, %v297
  %v322 = vpack.c.b16 %v300, %v299
  %v323 = vpack.c.b16 %v302, %v301
  %v324 = vpack.c.b16 %v304, %v303
  %v325 = vpack.c.b16 %v306, %v305
  %v326 = vpack.c.b16 %v308, %v307
  %v327 = vpack.c.b16 %v310, %v309
  %v328 = vpack.c.b16 %v312, %v311
  %345 = vmatprep.subr.bf16.mxu0 0
  %346 = vmatpush1.bf16.msra.mxu0 %v313
  %347 = vmatprep.subr.bf16.mxu0 0
  %348 = vmatpush1.bf16.msra.mxu0 %v314
  %349 = vmatprep.subr.bf16.mxu0 0
  %350 = vmatpush1.bf16.msra.mxu0 %v315
  %351 = vmatprep.subr.bf16.mxu0 0
  %352 = vmatpush1.bf16.msra.mxu0 %v316
  %353 = vmatprep.subr.bf16.mxu0 0
  %354 = vmatpush1.bf16.msra.mxu0 %v317
  %355 = vmatprep.subr.bf16.mxu0 0
  %356 = vmatpush1.bf16.msra.mxu0 %v318
  %357 = vmatprep.subr.bf16.mxu0 0
  %358 = vmatpush1.bf16.msra.mxu0 %v319
  %359 = vmatprep.subr.bf16.mxu0 0
  %360 = vmatpush1.bf16.msra.mxu0 %v320
  %361 = vmatprep.subr.bf16.mxu0 0
  %362 = vmatpush1.bf16.msra.mxu0 %v321
  %363 = vmatprep.subr.bf16.mxu0 0
  %364 = vmatpush1.bf16.msra.mxu0 %v322
  %365 = vmatprep.subr.bf16.mxu0 0
  %366 = vmatpush1.bf16.msra.mxu0 %v323
  %367 = vmatprep.subr.bf16.mxu0 0
  %368 = vmatpush1.bf16.msra.mxu0 %v324
  %369 = vmatprep.subr.bf16.mxu0 0
  %370 = vmatpush1.bf16.msra.mxu0 %v325
  %371 = vmatprep.subr.bf16.mxu0 0
  %372 = vmatpush1.bf16.msra.mxu0 %v326
  %373 = vmatprep.subr.bf16.mxu0 0
  %374 = vmatpush1.bf16.msra.mxu0 %v327
  %375 = vmatprep.subr.bf16.mxu0 0
  %376 = vmatpush1.bf16.msra.mxu0 %v328
  %377 = vmatprep.mubr.bf16.mxu0 %v246
  %378 = vmatmul.mubr.bf16.gmra.mrb[0].mxu0 %v245
  %v379 = vpop.f32.mrb[0].mxu0
  %v380 = vadd.f32 0.0, %v379
  %v381 = vpop.f32.mrb[0].mxu0
  %v382 = vpop.f32.mrb[0].mxu0
  %v383 = vadd.f32 0.0, %v382
  %v384 = vpop.f32.mrb[0].mxu0
  %385 = vdwg.mxu0
  %v386 = vlaneseq
  %v387 = vshrl.u32 %v386, 7
  %v388 = vsub.s32 0, %v387
  %v389 = vrot.slane %v204, %v388
  %v390 = vmul.f32 %v389, %v380
  %v391 = vlaneseq
  %v392 = vshrl.u32 %v391, 7
  %v393 = vsub.s32 1, %v392
  %v394 = vrot.slane %v204, %v393
  %v395 = vmul.f32 %v394, %v380
  %v397 = vrot.slane %v395, 4
  %v399 = vadd.f32 %v390, %v397
  %v400 = vlaneseq
  %v401 = vshrl.u32 %v400, 7
  %v402 = vsub.s32 2, %v401
  %v403 = vrot.slane %v204, %v402
  %v404 = vmul.f32 %v403, %v383
  %v405 = vadd.f32 %v399, %v404
  %v406 = vlaneseq
  %v407 = vshrl.u32 %v406, 7
  %v408 = vsub.s32 3, %v407
  %v409 = vrot.slane %v204, %v408
  %v410 = vmul.f32 %v409, %v383
  %v412 = vrot.slane %v410, 4
  %v414 = vadd.f32 %v405, %v412
  %v415 = vld [vmem:[%s1 + $0x20] sm:$0xff]
  %v416 = vld [vmem:[%s1 + $0x28] sm:$0xff]
  %v417 = vld [vmem:[%s0 + $0x100] sm:$0xf]
  %v418 = vld [vmem:[%s0 + $0x104] sm:$0xf]
  %v419 = vld [vmem:[%s0 + $0x108] sm:$0xf]
  %v420 = vld [vmem:[%s0 + $0x10c] sm:$0xf]
  %v421 = vld [vmem:[%s0 + $0x110] sm:$0xf]
  %v422 = vld [vmem:[%s0 + $0x114] sm:$0xf]
  %v423 = vld [vmem:[%s0 + $0x118] sm:$0xf]
  %v424 = vld [vmem:[%s0 + $0x11c] sm:$0xf]
  %v425 = vld [vmem:[%s0 + $0x120] sm:$0xf]
  %v426 = vld [vmem:[%s0 + $0x124] sm:$0xf]
  %v427 = vld [vmem:[%s0 + $0x128] sm:$0xf]
  %v428 = vld [vmem:[%s0 + $0x12c] sm:$0xf]
  %v429 = vld [vmem:[%s0 + $0x130] sm:$0xf]
  %v430 = vld [vmem:[%s0 + $0x134] sm:$0xf]
  %v431 = vld [vmem:[%s0 + $0x138] sm:$0xf]
  %v432 = vld [vmem:[%s0 + $0x13c] sm:$0xf]
  %v433 = vld [vmem:[%s0 + $0x140] sm:$0xf]
  %v434 = vld [vmem:[%s0 + $0x144] sm:$0xf]
  %v435 = vld [vmem:[%s0 + $0x148] sm:$0xf]
  %v436 = vld [vmem:[%s0 + $0x14c] sm:$0xf]
  %v437 = vld [vmem:[%s0 + $0x150] sm:$0xf]
  %v438 = vld [vmem:[%s0 + $0x154] sm:$0xf]
  %v439 = vld [vmem:[%s0 + $0x158] sm:$0xf]
  %v440 = vld [vmem:[%s0 + $0x15c] sm:$0xf]
  %v441 = vld [vmem:[%s0 + $0x160] sm:$0xf]
  %v442 = vld [vmem:[%s0 + $0x164] sm:$0xf]
  %v443 = vld [vmem:[%s0 + $0x168] sm:$0xf]
  %v444 = vld [vmem:[%s0 + $0x16c] sm:$0xf]
  %v445 = vld [vmem:[%s0 + $0x170] sm:$0xf]
  %v446 = vld [vmem:[%s0 + $0x174] sm:$0xf]
  %v447 = vld [vmem:[%s0 + $0x178] sm:$0xf]
  %v448 = vld [vmem:[%s0 + $0x17c] sm:$0xf]
  %v451 = vunpack.c.l.b16 %v415
  %v452 = vunpack.c.h.b16 %v415
  %v453 = vunpack.c.l.b16 %v416
  %v454 = vunpack.c.h.b16 %v416
  %v455 = vpack.c.b16 %v453, %v451
  %v456 = vpack.c.b16 %v454, %v452
  %v491 = vunpack.c.l.b16 %v417
  %v492 = vunpack.c.l.b16 %v418
  %v493 = vunpack.c.l.b16 %v419
  %v494 = vunpack.c.l.b16 %v420
  %v495 = vunpack.c.l.b16 %v421
  %v496 = vunpack.c.l.b16 %v422
  %v497 = vunpack.c.l.b16 %v423
  %v498 = vunpack.c.l.b16 %v424
  %v499 = vunpack.c.l.b16 %v425
  %v500 = vunpack.c.l.b16 %v426
  %v501 = vunpack.c.l.b16 %v427
  %v502 = vunpack.c.l.b16 %v428
  %v503 = vunpack.c.l.b16 %v429
  %v504 = vunpack.c.l.b16 %v430
  %v505 = vunpack.c.l.b16 %v431
  %v506 = vunpack.c.l.b16 %v432
  %v507 = vunpack.c.l.b16 %v433
  %v508 = vunpack.c.l.b16 %v434
  %v509 = vunpack.c.l.b16 %v435
  %v510 = vunpack.c.l.b16 %v436
  %v511 = vunpack.c.l.b16 %v437
  %v512 = vunpack.c.l.b16 %v438
  %v513 = vunpack.c.l.b16 %v439
  %v514 = vunpack.c.l.b16 %v440
  %v515 = vunpack.c.l.b16 %v441
  %v516 = vunpack.c.l.b16 %v442
  %v517 = vunpack.c.l.b16 %v443
  %v518 = vunpack.c.l.b16 %v444
  %v519 = vunpack.c.l.b16 %v445
  %v520 = vunpack.c.l.b16 %v446
  %v521 = vunpack.c.l.b16 %v447
  %v522 = vunpack.c.l.b16 %v448
  %v523 = vpack.c.b16 %v492, %v491
  %v524 = vpack.c.b16 %v494, %v493
  %v525 = vpack.c.b16 %v496, %v495
  %v526 = vpack.c.b16 %v498, %v497
  %v527 = vpack.c.b16 %v500, %v499
  %v528 = vpack.c.b16 %v502, %v501
  %v529 = vpack.c.b16 %v504, %v503
  %v530 = vpack.c.b16 %v506, %v505
  %v531 = vpack.c.b16 %v508, %v507
  %v532 = vpack.c.b16 %v510, %v509
  %v533 = vpack.c.b16 %v512, %v511
  %v534 = vpack.c.b16 %v514, %v513
  %v535 = vpack.c.b16 %v516, %v515
  %v536 = vpack.c.b16 %v518, %v517
  %v537 = vpack.c.b16 %v520, %v519
  %v538 = vpack.c.b16 %v522, %v521
  %555 = vmatprep.subr.bf16.mxu0 0
  %556 = vmatpush1.bf16.msra.mxu0 %v523
  %557 = vmatprep.subr.bf16.mxu0 0
  %558 = vmatpush1.bf16.msra.mxu0 %v524
  %559 = vmatprep.subr.bf16.mxu0 0
  %560 = vmatpush1.bf16.msra.mxu0 %v525
  %561 = vmatprep.subr.bf16.mxu0 0
  %562 = vmatpush1.bf16.msra.mxu0 %v526
  %563 = vmatprep.subr.bf16.mxu0 0
  %564 = vmatpush1.bf16.msra.mxu0 %v527
  %565 = vmatprep.subr.bf16.mxu0 0
  %566 = vmatpush1.bf16.msra.mxu0 %v528
  %567 = vmatprep.subr.bf16.mxu0 0
  %568 = vmatpush1.bf16.msra.mxu0 %v529
  %569 = vmatprep.subr.bf16.mxu0 0
  %570 = vmatpush1.bf16.msra.mxu0 %v530
  %571 = vmatprep.subr.bf16.mxu0 0
  %572 = vmatpush1.bf16.msra.mxu0 %v531
  %573 = vmatprep.subr.bf16.mxu0 0
  %574 = vmatpush1.bf16.msra.mxu0 %v532
  %575 = vmatprep.subr.bf16.mxu0 0
  %576 = vmatpush1.bf16.msra.mxu0 %v533
  %577 = vmatprep.subr.bf16.mxu0 0
  %578 = vmatpush1.bf16.msra.mxu0 %v534
  %579 = vmatprep.subr.bf16.mxu0 0
  %580 = vmatpush1.bf16.msra.mxu0 %v535
  %581 = vmatprep.subr.bf16.mxu0 0
  %582 = vmatpush1.bf16.msra.mxu0 %v536
  %583 = vmatprep.subr.bf16.mxu0 0
  %584 = vmatpush1.bf16.msra.mxu0 %v537
  %585 = vmatprep.subr.bf16.mxu0 0
  %586 = vmatpush1.bf16.msra.mxu0 %v538
  %587 = vmatprep.mubr.bf16.mxu0 %v456
  %588 = vmatmul.mubr.bf16.gmra.mrb[0].mxu0 %v455
  %v589 = vpop.f32.mrb[0].mxu0
  %v590 = vadd.f32 0.0, %v589
  %v591 = vpop.f32.mrb[0].mxu0
  %v592 = vpop.f32.mrb[0].mxu0
  %v593 = vadd.f32 0.0, %v592
  %v594 = vpop.f32.mrb[0].mxu0
  %595 = vdwg.mxu0
  %v596 = vlaneseq
  %v597 = vshrl.u32 %v596, 7
  %v598 = vsub.s32 0, %v597
  %v599 = vrot.slane %v414, %v598
  %v600 = vmul.f32 %v599, %v590
  %v601 = vlaneseq
  %v602 = vshrl.u32 %v601, 7
  %v603 = vsub.s32 1, %v602
  %v604 = vrot.slane %v414, %v603
  %v605 = vmul.f32 %v604, %v590
  %v607 = vrot.slane %v605, 4
  %v609 = vadd.f32 %v600, %v607
  %v610 = vlaneseq
  %v611 = vshrl.u32 %v610, 7
  %v612 = vsub.s32 2, %v611
  %v613 = vrot.slane %v414, %v612
  %v614 = vmul.f32 %v613, %v593
  %v615 = vadd.f32 %v609, %v614
  %v616 = vlaneseq
  %v617 = vshrl.u32 %v616, 7
  %v618 = vsub.s32 3, %v617
  %v619 = vrot.slane %v414, %v618
  %v620 = vmul.f32 %v619, %v593
  %v622 = vrot.slane %v620, 4
  %v624 = vadd.f32 %v615, %v622
  %v625 = vld [vmem:[%s1 + $0x30] sm:$0xff]
  %v626 = vld [vmem:[%s1 + $0x38] sm:$0xff]
  %v627 = vld [vmem:[%s0 + $0x180] sm:$0xf]
  %v628 = vld [vmem:[%s0 + $0x184] sm:$0xf]
  %v629 = vld [vmem:[%s0 + $0x188] sm:$0xf]
  %v630 = vld [vmem:[%s0 + $0x18c] sm:$0xf]
  %v631 = vld [vmem:[%s0 + $0x190] sm:$0xf]
  %v632 = vld [vmem:[%s0 + $0x194] sm:$0xf]
  %v633 = vld [vmem:[%s0 + $0x198] sm:$0xf]
  %v634 = vld [vmem:[%s0 + $0x19c] sm:$0xf]
  %v635 = vld [vmem:[%s0 + $0x1a0] sm:$0xf]
  %v636 = vld [vmem:[%s0 + $0x1a4] sm:$0xf]
  %v637 = vld [vmem:[%s0 + $0x1a8] sm:$0xf]
  %v638 = vld [vmem:[%s0 + $0x1ac] sm:$0xf]
  %v639 = vld [vmem:[%s0 + $0x1b0] sm:$0xf]
  %v640 = vld [vmem:[%s0 + $0x1b4] sm:$0xf]
  %v641 = vld [vmem:[%s0 + $0x1b8] sm:$0xf]
  %v642 = vld [vmem:[%s0 + $0x1bc] sm:$0xf]
  %v643 = vld [vmem:[%s0 + $0x1c0] sm:$0xf]
  %v644 = vld [vmem:[%s0 + $0x1c4] sm:$0xf]
  %v645 = vld [vmem:[%s0 + $0x1c8] sm:$0xf]
  %v646 = vld [vmem:[%s0 + $0x1cc] sm:$0xf]
  %v647 = vld [vmem:[%s0 + $0x1d0] sm:$0xf]
  %v648 = vld [vmem:[%s0 + $0x1d4] sm:$0xf]
  %v649 = vld [vmem:[%s0 + $0x1d8] sm:$0xf]
  %v650 = vld [vmem:[%s0 + $0x1dc] sm:$0xf]
  %v651 = vld [vmem:[%s0 + $0x1e0] sm:$0xf]
  %v652 = vld [vmem:[%s0 + $0x1e4] sm:$0xf]
  %v653 = vld [vmem:[%s0 + $0x1e8] sm:$0xf]
  %v654 = vld [vmem:[%s0 + $0x1ec] sm:$0xf]
  %v655 = vld [vmem:[%s0 + $0x1f0] sm:$0xf]
  %v656 = vld [vmem:[%s0 + $0x1f4] sm:$0xf]
  %v657 = vld [vmem:[%s0 + $0x1f8] sm:$0xf]
  %v658 = vld [vmem:[%s0 + $0x1fc] sm:$0xf]
  %v661 = vunpack.c.l.b16 %v625
  %v662 = vunpack.c.h.b16 %v625
  %v663 = vunpack.c.l.b16 %v626
  %v664 = vunpack.c.h.b16 %v626
  %v665 = vpack.c.b16 %v663, %v661
  %v666 = vpack.c.b16 %v664, %v662
  %v701 = vunpack.c.l.b16 %v627
  %v702 = vunpack.c.l.b16 %v628
  %v703 = vunpack.c.l.b16 %v629
  %v704 = vunpack.c.l.b16 %v630
  %v705 = vunpack.c.l.b16 %v631
  %v706 = vunpack.c.l.b16 %v632
  %v707 = vunpack.c.l.b16 %v633
  %v708 = vunpack.c.l.b16 %v634
  %v709 = vunpack.c.l.b16 %v635
  %v710 = vunpack.c.l.b16 %v636
  %v711 = vunpack.c.l.b16 %v637
  %v712 = vunpack.c.l.b16 %v638
  %v713 = vunpack.c.l.b16 %v639
  %v714 = vunpack.c.l.b16 %v640
  %v715 = vunpack.c.l.b16 %v641
  %v716 = vunpack.c.l.b16 %v642
  %v717 = vunpack.c.l.b16 %v643
  %v718 = vunpack.c.l.b16 %v644
  %v719 = vunpack.c.l.b16 %v645
  %v720 = vunpack.c.l.b16 %v646
  %v721 = vunpack.c.l.b16 %v647
  %v722 = vunpack.c.l.b16 %v648
  %v723 = vunpack.c.l.b16 %v649
  %v724 = vunpack.c.l.b16 %v650
  %v725 = vunpack.c.l.b16 %v651
  %v726 = vunpack.c.l.b16 %v652
  %v727 = vunpack.c.l.b16 %v653
  %v728 = vunpack.c.l.b16 %v654
  %v729 = vunpack.c.l.b16 %v655
  %v730 = vunpack.c.l.b16 %v656
  %v731 = vunpack.c.l.b16 %v657
  %v732 = vunpack.c.l.b16 %v658
  %v733 = vpack.c.b16 %v702, %v701
  %v734 = vpack.c.b16 %v704, %v703
  %v735 = vpack.c.b16 %v706, %v705
  %v736 = vpack.c.b16 %v708, %v707
  %v737 = vpack.c.b16 %v710, %v709
  %v738 = vpack.c.b16 %v712, %v711
  %v739 = vpack.c.b16 %v714, %v713
  %v740 = vpack.c.b16 %v716, %v715
  %v741 = vpack.c.b16 %v718, %v717
  %v742 = vpack.c.b16 %v720, %v719
  %v743 = vpack.c.b16 %v722, %v721
  %v744 = vpack.c.b16 %v724, %v723
  %v745 = vpack.c.b16 %v726, %v725
  %v746 = vpack.c.b16 %v728, %v727
  %v747 = vpack.c.b16 %v730, %v729
  %v748 = vpack.c.b16 %v732, %v731
  %765 = vmatprep.subr.bf16.mxu0 0
  %766 = vmatpush1.bf16.msra.mxu0 %v733
  %767 = vmatprep.subr.bf16.mxu0 0
  %768 = vmatpush1.bf16.msra.mxu0 %v734
  %769 = vmatprep.subr.bf16.mxu0 0
  %770 = vmatpush1.bf16.msra.mxu0 %v735
  %771 = vmatprep.subr.bf16.mxu0 0
  %772 = vmatpush1.bf16.msra.mxu0 %v736
  %773 = vmatprep.subr.bf16.mxu0 0
  %774 = vmatpush1.bf16.msra.mxu0 %v737
  %775 = vmatprep.subr.bf16.mxu0 0
  %776 = vmatpush1.bf16.msra.mxu0 %v738
  %777 = vmatprep.subr.bf16.mxu0 0
  %778 = vmatpush1.bf16.msra.mxu0 %v739
  %779 = vmatprep.subr.bf16.mxu0 0
  %780 = vmatpush1.bf16.msra.mxu0 %v740
  %781 = vmatprep.subr.bf16.mxu0 0
  %782 = vmatpush1.bf16.msra.mxu0 %v741
  %783 = vmatprep.subr.bf16.mxu0 0
  %784 = vmatpush1.bf16.msra.mxu0 %v742
  %785 = vmatprep.subr.bf16.mxu0 0
  %786 = vmatpush1.bf16.msra.mxu0 %v743
  %787 = vmatprep.subr.bf16.mxu0 0
  %788 = vmatpush1.bf16.msra.mxu0 %v744
  %789 = vmatprep.subr.bf16.mxu0 0
  %790 = vmatpush1.bf16.msra.mxu0 %v745
  %791 = vmatprep.subr.bf16.mxu0 0
  %792 = vmatpush1.bf16.msra.mxu0 %v746
  %793 = vmatprep.subr.bf16.mxu0 0
  %794 = vmatpush1.bf16.msra.mxu0 %v747
  %795 = vmatprep.subr.bf16.mxu0 0
  %796 = vmatpush1.bf16.msra.mxu0 %v748
  %797 = vmatprep.mubr.bf16.mxu0 %v666
  %798 = vmatmul.mubr.bf16.gmra.mrb[0].mxu0 %v665
  %v799 = vpop.f32.mrb[0].mxu0
  %v800 = vadd.f32 0.0, %v799
  %v801 = vpop.f32.mrb[0].mxu0
  %v802 = vpop.f32.mrb[0].mxu0
  %v803 = vadd.f32 0.0, %v802
  %v804 = vpop.f32.mrb[0].mxu0
  %805 = vdwg.mxu0
  %v806 = vlaneseq
  %v807 = vshrl.u32 %v806, 7
  %v808 = vsub.s32 0, %v807
  %v809 = vrot.slane %v624, %v808
  %v810 = vmul.f32 %v809, %v800
  %v811 = vlaneseq
  %v812 = vshrl.u32 %v811, 7
  %v813 = vsub.s32 1, %v812
  %v814 = vrot.slane %v624, %v813
  %v815 = vmul.f32 %v814, %v800
  %v817 = vrot.slane %v815, 4
  %v819 = vadd.f32 %v810, %v817
  %v820 = vlaneseq
  %v821 = vshrl.u32 %v820, 7
  %v822 = vsub.s32 2, %v821
  %v823 = vrot.slane %v624, %v822
  %v824 = vmul.f32 %v823, %v803
  %v825 = vadd.f32 %v819, %v824
  %v826 = vlaneseq
  %v827 = vshrl.u32 %v826, 7
  %v828 = vsub.s32 3, %v827
  %v829 = vrot.slane %v624, %v828
  %v830 = vmul.f32 %v829, %v803
  %v832 = vrot.slane %v830, 4
  %v834 = vadd.f32 %v825, %v832
  %v835 = vld [vmem:[%s1 + $0x40] sm:$0xff]
  %v836 = vld [vmem:[%s1 + $0x48] sm:$0xff]
  %v837 = vld [vmem:[%s0 + $0x200] sm:$0xf]
  %v838 = vld [vmem:[%s0 + $0x204] sm:$0xf]
  %v839 = vld [vmem:[%s0 + $0x208] sm:$0xf]
  %v840 = vld [vmem:[%s0 + $0x20c] sm:$0xf]
  %v841 = vld [vmem:[%s0 + $0x210] sm:$0xf]
  %v842 = vld [vmem:[%s0 + $0x214] sm:$0xf]
  %v843 = vld [vmem:[%s0 + $0x218] sm:$0xf]
  %v844 = vld [vmem:[%s0 + $0x21c] sm:$0xf]
  %v845 = vld [vmem:[%s0 + $0x220] sm:$0xf]
  %v846 = vld [vmem:[%s0 + $0x224] sm:$0xf]
  %v847 = vld [vmem:[%s0 + $0x228] sm:$0xf]
  %v848 = vld [vmem:[%s0 + $0x22c] sm:$0xf]
  %v849 = vld [vmem:[%s0 + $0x230] sm:$0xf]
  %v850 = vld [vmem:[%s0 + $0x234] sm:$0xf]
  %v851 = vld [vmem:[%s0 + $0x238] sm:$0xf]
  %v852 = vld [vmem:[%s0 + $0x23c] sm:$0xf]
  %v853 = vld [vmem:[%s0 + $0x240] sm:$0xf]
  %v854 = vld [vmem:[%s0 + $0x244] sm:$0xf]
  %v855 = vld [vmem:[%s0 + $0x248] sm:$0xf]
  %v856 = vld [vmem:[%s0 + $0x24c] sm:$0xf]
  %v857 = vld [vmem:[%s0 + $0x250] sm:$0xf]
  %v858 = vld [vmem:[%s0 + $0x254] sm:$0xf]
  %v859 = vld [vmem:[%s0 + $0x258] sm:$0xf]
  %v860 = vld [vmem:[%s0 + $0x25c] sm:$0xf]
  %v861 = vld [vmem:[%s0 + $0x260] sm:$0xf]
  %v862 = vld [vmem:[%s0 + $0x264] sm:$0xf]
  %v863 = vld [vmem:[%s0 + $0x268] sm:$0xf]
  %v864 = vld [vmem:[%s0 + $0x26c] sm:$0xf]
  %v865 = vld [vmem:[%s0 + $0x270] sm:$0xf]
  %v866 = vld [vmem:[%s0 + $0x274] sm:$0xf]
  %v867 = vld [vmem:[%s0 + $0x278] sm:$0xf]
  %v868 = vld [vmem:[%s0 + $0x27c] sm:$0xf]
  %v871 = vunpack.c.l.b16 %v835
  %v872 = vunpack.c.h.b16 %v835
  %v873 = vunpack.c.l.b16 %v836
  %v874 = vunpack.c.h.b16 %v836
  %v875 = vpack.c.b16 %v873, %v871
  %v876 = vpack.c.b16 %v874, %v872
  %v911 = vunpack.c.l.b16 %v837
  %v912 = vunpack.c.l.b16 %v838
  %v913 = vunpack.c.l.b16 %v839
  %v914 = vunpack.c.l.b16 %v840
  %v915 = vunpack.c.l.b16 %v841
  %v916 = vunpack.c.l.b16 %v842
  %v917 = vunpack.c.l.b16 %v843
  %v918 = vunpack.c.l.b16 %v844
  %v919 = vunpack.c.l.b16 %v845
  %v920 = vunpack.c.l.b16 %v846
  %v921 = vunpack.c.l.b16 %v847
  %v922 = vunpack.c.l.b16 %v848
  %v923 = vunpack.c.l.b16 %v849
  %v924 = vunpack.c.l.b16 %v850
  %v925 = vunpack.c.l.b16 %v851
  %v926 = vunpack.c.l.b16 %v852
  %v927 = vunpack.c.l.b16 %v853
  %v928 = vunpack.c.l.b16 %v854
  %v929 = vunpack.c.l.b16 %v855
  %v930 = vunpack.c.l.b16 %v856
  %v931 = vunpack.c.l.b16 %v857
  %v932 = vunpack.c.l.b16 %v858
  %v933 = vunpack.c.l.b16 %v859
  %v934 = vunpack.c.l.b16 %v860
  %v935 = vunpack.c.l.b16 %v861
  %v936 = vunpack.c.l.b16 %v862
  %v937 = vunpack.c.l.b16 %v863
  %v938 = vunpack.c.l.b16 %v864
  %v939 = vunpack.c.l.b16 %v865
  %v940 = vunpack.c.l.b16 %v866
  %v941 = vunpack.c.l.b16 %v867
  %v942 = vunpack.c.l.b16 %v868
  %v943 = vpack.c.b16 %v912, %v911
  %v944 = vpack.c.b16 %v914, %v913
  %v945 = vpack.c.b16 %v916, %v915
  %v946 = vpack.c.b16 %v918, %v917
  %v947 = vpack.c.b16 %v920, %v919
  %v948 = vpack.c.b16 %v922, %v921
  %v949 = vpack.c.b16 %v924, %v923
  %v950 = vpack.c.b16 %v926, %v925
  %v951 = vpack.c.b16 %v928, %v927
  %v952 = vpack.c.b16 %v930, %v929
  %v953 = vpack.c.b16 %v932, %v931
  %v954 = vpack.c.b16 %v934, %v933
  %v955 = vpack.c.b16 %v936, %v935
  %v956 = vpack.c.b16 %v938, %v937
  %v957 = vpack.c.b16 %v940, %v939
  %v958 = vpack.c.b16 %v942, %v941
  %975 = vmatprep.subr.bf16.mxu0 0
  %976 = vmatpush1.bf16.msra.mxu0 %v943
  %977 = vmatprep.subr.bf16.mxu0 0
  %978 = vmatpush1.bf16.msra.mxu0 %v944
  %979 = vmatprep.subr.bf16.mxu0 0
  %980 = vmatpush1.bf16.msra.mxu0 %v945
  %981 = vmatprep.subr.bf16.mxu0 0
  %982 = vmatpush1.bf16.msra.mxu0 %v946
  %983 = vmatprep.subr.bf16.mxu0 0
  %984 = vmatpush1.bf16.msra.mxu0 %v947
  %985 = vmatprep.subr.bf16.mxu0 0
  %986 = vmatpush1.bf16.msra.mxu0 %v948
  %987 = vmatprep.subr.bf16.mxu0 0
  %988 = vmatpush1.bf16.msra.mxu0 %v949
  %989 = vmatprep.subr.bf16.mxu0 0
  %990 = vmatpush1.bf16.msra.mxu0 %v950
  %991 = vmatprep.subr.bf16.mxu0 0
  %992 = vmatpush1.bf16.msra.mxu0 %v951
  %993 = vmatprep.subr.bf16.mxu0 0
  %994 = vmatpush1.bf16.msra.mxu0 %v952
  %995 = vmatprep.subr.bf16.mxu0 0
  %996 = vmatpush1.bf16.msra.mxu0 %v953
  %997 = vmatprep.subr.bf16.mxu0 0
  %998 = vmatpush1.bf16.msra.mxu0 %v954
  %999 = vmatprep.subr.bf16.mxu0 0
  %1000 = vmatpush1.bf16.msra.mxu0 %v955
  %1001 = vmatprep.subr.bf16.mxu0 0
  %1002 = vmatpush1.bf16.msra.mxu0 %v956
  %1003 = vmatprep.subr.bf16.mxu0 0
  %1004 = vmatpush1.bf16.msra.mxu0 %v957
  %1005 = vmatprep.subr.bf16.mxu0 0
  %1006 = vmatpush1.bf16.msra.mxu0 %v958
  %1007 = vmatprep.mubr.bf16.mxu0 %v876
  %1008 = vmatmul.mubr.bf16.gmra.mrb[0].mxu0 %v875
  %v1009 = vpop.f32.mrb[0].mxu0
  %v1010 = vadd.f32 0.0, %v1009
  %v1011 = vpop.f32.mrb[0].mxu0
  %v1012 = vpop.f32.mrb[0].mxu0
  %v1013 = vadd.f32 0.0, %v1012
  %v1014 = vpop.f32.mrb[0].mxu0
  %1015 = vdwg.mxu0
  %v1016 = vlaneseq
  %v1017 = vshrl.u32 %v1016, 7
  %v1018 = vsub.s32 0, %v1017
  %v1019 = vrot.slane %v834, %v1018
  %v1020 = vmul.f32 %v1019, %v1010
  %v1021 = vlaneseq
  %v1022 = vshrl.u32 %v1021, 7
  %v1023 = vsub.s32 1, %v1022
  %v1024 = vrot.slane %v834, %v1023
  %v1025 = vmul.f32 %v1024, %v1010
  %v1027 = vrot.slane %v1025, 4
  %v1029 = vadd.f32 %v1020, %v1027
  %v1030 = vlaneseq
  %v1031 = vshrl.u32 %v1030, 7
  %v1032 = vsub.s32 2, %v1031
  %v1033 = vrot.slane %v834, %v1032
  %v1034 = vmul.f32 %v1033, %v1013
  %v1035 = vadd.f32 %v1029, %v1034
  %v1036 = vlaneseq
  %v1037 = vshrl.u32 %v1036, 7
  %v1038 = vsub.s32 3, %v1037
  %v1039 = vrot.slane %v834, %v1038
  %v1040 = vmul.f32 %v1039, %v1013
  %v1042 = vrot.slane %v1040, 4
  %v1044 = vadd.f32 %v1035, %v1042
  %v1045 = vld [vmem:[%s1 + $0x50] sm:$0xff]
  %v1046 = vld [vmem:[%s1 + $0x58] sm:$0xff]
  %v1047 = vld [vmem:[%s0 + $0x280] sm:$0xf]
  %v1048 = vld [vmem:[%s0 + $0x284] sm:$0xf]
  %v1049 = vld [vmem:[%s0 + $0x288] sm:$0xf]
  %v1050 = vld [vmem:[%s0 + $0x28c] sm:$0xf]
  %v1051 = vld [vmem:[%s0 + $0x290] sm:$0xf]
  %v1052 = vld [vmem:[%s0 + $0x294] sm:$0xf]
  %v1053 = vld [vmem:[%s0 + $0x298] sm:$0xf]
  %v1054 = vld [vmem:[%s0 + $0x29c] sm:$0xf]
  %v1055 = vld [vmem:[%s0 + $0x2a0] sm:$0xf]
  %v1056 = vld [vmem:[%s0 + $0x2a4] sm:$0xf]
  %v1057 = vld [vmem:[%s0 + $0x2a8] sm:$0xf]
  %v1058 = vld [vmem:[%s0 + $0x2ac] sm:$0xf]
  %v1059 = vld [vmem:[%s0 + $0x2b0] sm:$0xf]
  %v1060 = vld [vmem:[%s0 + $0x2b4] sm:$0xf]
  %v1061 = vld [vmem:[%s0 + $0x2b8] sm:$0xf]
  %v1062 = vld [vmem:[%s0 + $0x2bc] sm:$0xf]
  %v1063 = vld [vmem:[%s0 + $0x2c0] sm:$0xf]
  %v1064 = vld [vmem:[%s0 + $0x2c4] sm:$0xf]
  %v1065 = vld [vmem:[%s0 + $0x2c8] sm:$0xf]
  %v1066 = vld [vmem:[%s0 + $0x2cc] sm:$0xf]
  %v1067 = vld [vmem:[%s0 + $0x2d0] sm:$0xf]
  %v1068 = vld [vmem:[%s0 + $0x2d4] sm:$0xf]
  %v1069 = vld [vmem:[%s0 + $0x2d8] sm:$0xf]
  %v1070 = vld [vmem:[%s0 + $0x2dc] sm:$0xf]
  %v1071 = vld [vmem:[%s0 + $0x2e0] sm:$0xf]
  %v1072 = vld [vmem:[%s0 + $0x2e4] sm:$0xf]
  %v1073 = vld [vmem:[%s0 + $0x2e8] sm:$0xf]
  %v1074 = vld [vmem:[%s0 + $0x2ec] sm:$0xf]
  %v1075 = vld [vmem:[%s0 + $0x2f0] sm:$0xf]
  %v1076 = vld [vmem:[%s0 + $0x2f4] sm:$0xf]
  %v1077 = vld [vmem:[%s0 + $0x2f8] sm:$0xf]
  %v1078 = vld [vmem:[%s0 + $0x2fc] sm:$0xf]
  %v1081 = vunpack.c.l.b16 %v1045
  %v1082 = vunpack.c.h.b16 %v1045
  %v1083 = vunpack.c.l.b16 %v1046
  %v1084 = vunpack.c.h.b16 %v1046
  %v1085 = vpack.c.b16 %v1083, %v1081
  %v1086 = vpack.c.b16 %v1084, %v1082
  %v1121 = vunpack.c.l.b16 %v1047
  %v1122 = vunpack.c.l.b16 %v1048
  %v1123 = vunpack.c.l.b16 %v1049
  %v1124 = vunpack.c.l.b16 %v1050
  %v1125 = vunpack.c.l.b16 %v1051
  %v1126 = vunpack.c.l.b16 %v1052
  %v1127 = vunpack.c.l.b16 %v1053
  %v1128 = vunpack.c.l.b16 %v1054
  %v1129 = vunpack.c.l.b16 %v1055
  %v1130 = vunpack.c.l.b16 %v1056
  %v1131 = vunpack.c.l.b16 %v1057
  %v1132 = vunpack.c.l.b16 %v1058
  %v1133 = vunpack.c.l.b16 %v1059
  %v1134 = vunpack.c.l.b16 %v1060
  %v1135 = vunpack.c.l.b16 %v1061
  %v1136 = vunpack.c.l.b16 %v1062
  %v1137 = vunpack.c.l.b16 %v1063
  %v1138 = vunpack.c.l.b16 %v1064
  %v1139 = vunpack.c.l.b16 %v1065
  %v1140 = vunpack.c.l.b16 %v1066
  %v1141 = vunpack.c.l.b16 %v1067
  %v1142 = vunpack.c.l.b16 %v1068
  %v1143 = vunpack.c.l.b16 %v1069
  %v1144 = vunpack.c.l.b16 %v1070
  %v1145 = vunpack.c.l.b16 %v1071
  %v1146 = vunpack.c.l.b16 %v1072
  %v1147 = vunpack.c.l.b16 %v1073
  %v1148 = vunpack.c.l.b16 %v1074
  %v1149 = vunpack.c.l.b16 %v1075
  %v1150 = vunpack.c.l.b16 %v1076
  %v1151 = vunpack.c.l.b16 %v1077
  %v1152 = vunpack.c.l.b16 %v1078
  %v1153 = vpack.c.b16 %v1122, %v1121
  %v1154 = vpack.c.b16 %v1124, %v1123
  %v1155 = vpack.c.b16 %v1126, %v1125
  %v1156 = vpack.c.b16 %v1128, %v1127
  %v1157 = vpack.c.b16 %v1130, %v1129
  %v1158 = vpack.c.b16 %v1132, %v1131
  %v1159 = vpack.c.b16 %v1134, %v1133
  %v1160 = vpack.c.b16 %v1136, %v1135
  %v1161 = vpack.c.b16 %v1138, %v1137
  %v1162 = vpack.c.b16 %v1140, %v1139
  %v1163 = vpack.c.b16 %v1142, %v1141
  %v1164 = vpack.c.b16 %v1144, %v1143
  %v1165 = vpack.c.b16 %v1146, %v1145
  %v1166 = vpack.c.b16 %v1148, %v1147
  %v1167 = vpack.c.b16 %v1150, %v1149
  %v1168 = vpack.c.b16 %v1152, %v1151
  %1185 = vmatprep.subr.bf16.mxu0 0
  %1186 = vmatpush1.bf16.msra.mxu0 %v1153
  %1187 = vmatprep.subr.bf16.mxu0 0
  %1188 = vmatpush1.bf16.msra.mxu0 %v1154
  %1189 = vmatprep.subr.bf16.mxu0 0
  %1190 = vmatpush1.bf16.msra.mxu0 %v1155
  %1191 = vmatprep.subr.bf16.mxu0 0
  %1192 = vmatpush1.bf16.msra.mxu0 %v1156
  %1193 = vmatprep.subr.bf16.mxu0 0
  %1194 = vmatpush1.bf16.msra.mxu0 %v1157
  %1195 = vmatprep.subr.bf16.mxu0 0
  %1196 = vmatpush1.bf16.msra.mxu0 %v1158
  %1197 = vmatprep.subr.bf16.mxu0 0
  %1198 = vmatpush1.bf16.msra.mxu0 %v1159
  %1199 = vmatprep.subr.bf16.mxu0 0
  %1200 = vmatpush1.bf16.msra.mxu0 %v1160
  %1201 = vmatprep.subr.bf16.mxu0 0
  %1202 = vmatpush1.bf16.msra.mxu0 %v1161
  %1203 = vmatprep.subr.bf16.mxu0 0
  %1204 = vmatpush1.bf16.msra.mxu0 %v1162
  %1205 = vmatprep.subr.bf16.mxu0 0
  %1206 = vmatpush1.bf16.msra.mxu0 %v1163
  %1207 = vmatprep.subr.bf16.mxu0 0
  %1208 = vmatpush1.bf16.msra.mxu0 %v1164
  %1209 = vmatprep.subr.bf16.mxu0 0
  %1210 = vmatpush1.bf16.msra.mxu0 %v1165
  %1211 = vmatprep.subr.bf16.mxu0 0
  %1212 = vmatpush1.bf16.msra.mxu0 %v1166
  %1213 = vmatprep.subr.bf16.mxu0 0
  %1214 = vmatpush1.bf16.msra.mxu0 %v1167
  %1215 = vmatprep.subr.bf16.mxu0 0
  %1216 = vmatpush1.bf16.msra.mxu0 %v1168
  %1217 = vmatprep.mubr.bf16.mxu0 %v1086
  %1218 = vmatmul.mubr.bf16.gmra.mrb[0].mxu0 %v1085
  %v1219 = vpop.f32.mrb[0].mxu0
  %v1220 = vadd.f32 0.0, %v1219
  %v1221 = vpop.f32.mrb[0].mxu0
  %v1222 = vpop.f32.mrb[0].mxu0
  %v1223 = vadd.f32 0.0, %v1222
  %v1224 = vpop.f32.mrb[0].mxu0
  %1225 = vdwg.mxu0
  %v1226 = vlaneseq
  %v1227 = vshrl.u32 %v1226, 7
  %v1228 = vsub.s32 0, %v1227
  %v1229 = vrot.slane %v1044, %v1228
  %v1230 = vmul.f32 %v1229, %v1220
  %v1231 = vlaneseq
  %v1232 = vshrl.u32 %v1231, 7
  %v1233 = vsub.s32 1, %v1232
  %v1234 = vrot.slane %v1044, %v1233
  %v1235 = vmul.f32 %v1234, %v1220
  %v1237 = vrot.slane %v1235, 4
  %v1239 = vadd.f32 %v1230, %v1237
  %v1240 = vlaneseq
  %v1241 = vshrl.u32 %v1240, 7
  %v1242 = vsub.s32 2, %v1241
  %v1243 = vrot.slane %v1044, %v1242
  %v1244 = vmul.f32 %v1243, %v1223
  %v1245 = vadd.f32 %v1239, %v1244
  %v1246 = vlaneseq
  %v1247 = vshrl.u32 %v1246, 7
  %v1248 = vsub.s32 3, %v1247
  %v1249 = vrot.slane %v1044, %v1248
  %v1250 = vmul.f32 %v1249, %v1223
  %v1252 = vrot.slane %v1250, 4
  %v1254 = vadd.f32 %v1245, %v1252
  %v1255 = vld [vmem:[%s1 + $0x60] sm:$0xff]
  %v1256 = vld [vmem:[%s1 + $0x68] sm:$0xff]
  %v1257 = vld [vmem:[%s0 + $0x300] sm:$0xf]
  %v1258 = vld [vmem:[%s0 + $0x304] sm:$0xf]
  %v1259 = vld [vmem:[%s0 + $0x308] sm:$0xf]
  %v1260 = vld [vmem:[%s0 + $0x30c] sm:$0xf]
  %v1261 = vld [vmem:[%s0 + $0x310] sm:$0xf]
  %v1262 = vld [vmem:[%s0 + $0x314] sm:$0xf]
  %v1263 = vld [vmem:[%s0 + $0x318] sm:$0xf]
  %v1264 = vld [vmem:[%s0 + $0x31c] sm:$0xf]
  %v1265 = vld [vmem:[%s0 + $0x320] sm:$0xf]
  %v1266 = vld [vmem:[%s0 + $0x324] sm:$0xf]
  %v1267 = vld [vmem:[%s0 + $0x328] sm:$0xf]
  %v1268 = vld [vmem:[%s0 + $0x32c] sm:$0xf]
  %v1269 = vld [vmem:[%s0 + $0x330] sm:$0xf]
  %v1270 = vld [vmem:[%s0 + $0x334] sm:$0xf]
  %v1271 = vld [vmem:[%s0 + $0x338] sm:$0xf]
  %v1272 = vld [vmem:[%s0 + $0x33c] sm:$0xf]
  %v1273 = vld [vmem:[%s0 + $0x340] sm:$0xf]
  %v1274 = vld [vmem:[%s0 + $0x344] sm:$0xf]
  %v1275 = vld [vmem:[%s0 + $0x348] sm:$0xf]
  %v1276 = vld [vmem:[%s0 + $0x34c] sm:$0xf]
  %v1277 = vld [vmem:[%s0 + $0x350] sm:$0xf]
  %v1278 = vld [vmem:[%s0 + $0x354] sm:$0xf]
  %v1279 = vld [vmem:[%s0 + $0x358] sm:$0xf]
  %v1280 = vld [vmem:[%s0 + $0x35c] sm:$0xf]
  %v1281 = vld [vmem:[%s0 + $0x360] sm:$0xf]
  %v1282 = vld [vmem:[%s0 + $0x364] sm:$0xf]
  %v1283 = vld [vmem:[%s0 + $0x368] sm:$0xf]
  %v1284 = vld [vmem:[%s0 + $0x36c] sm:$0xf]
  %v1285 = vld [vmem:[%s0 + $0x370] sm:$0xf]
  %v1286 = vld [vmem:[%s0 + $0x374] sm:$0xf]
  %v1287 = vld [vmem:[%s0 + $0x378] sm:$0xf]
  %v1288 = vld [vmem:[%s0 + $0x37c] sm:$0xf]
  %v1291 = vunpack.c.l.b16 %v1255
  %v1292 = vunpack.c.h.b16 %v1255
  %v1293 = vunpack.c.l.b16 %v1256
  %v1294 = vunpack.c.h.b16 %v1256
  %v1295 = vpack.c.b16 %v1293, %v1291
  %v1296 = vpack.c.b16 %v1294, %v1292
  %v1331 = vunpack.c.l.b16 %v1257
  %v1332 = vunpack.c.l.b16 %v1258
  %v1333 = vunpack.c.l.b16 %v1259
  %v1334 = vunpack.c.l.b16 %v1260
  %v1335 = vunpack.c.l.b16 %v1261
  %v1336 = vunpack.c.l.b16 %v1262
  %v1337 = vunpack.c.l.b16 %v1263
  %v1338 = vunpack.c.l.b16 %v1264
  %v1339 = vunpack.c.l.b16 %v1265
  %v1340 = vunpack.c.l.b16 %v1266
  %v1341 = vunpack.c.l.b16 %v1267
  %v1342 = vunpack.c.l.b16 %v1268
  %v1343 = vunpack.c.l.b16 %v1269
  %v1344 = vunpack.c.l.b16 %v1270
  %v1345 = vunpack.c.l.b16 %v1271
  %v1346 = vunpack.c.l.b16 %v1272
  %v1347 = vunpack.c.l.b16 %v1273
  %v1348 = vunpack.c.l.b16 %v1274
  %v1349 = vunpack.c.l.b16 %v1275
  %v1350 = vunpack.c.l.b16 %v1276
  %v1351 = vunpack.c.l.b16 %v1277
  %v1352 = vunpack.c.l.b16 %v1278
  %v1353 = vunpack.c.l.b16 %v1279
  %v1354 = vunpack.c.l.b16 %v1280
  %v1355 = vunpack.c.l.b16 %v1281
  %v1356 = vunpack.c.l.b16 %v1282
  %v1357 = vunpack.c.l.b16 %v1283
  %v1358 = vunpack.c.l.b16 %v1284
  %v1359 = vunpack.c.l.b16 %v1285
  %v1360 = vunpack.c.l.b16 %v1286
  %v1361 = vunpack.c.l.b16 %v1287
  %v1362 = vunpack.c.l.b16 %v1288
  %v1363 = vpack.c.b16 %v1332, %v1331
  %v1364 = vpack.c.b16 %v1334, %v1333
  %v1365 = vpack.c.b16 %v1336, %v1335
  %v1366 = vpack.c.b16 %v1338, %v1337
  %v1367 = vpack.c.b16 %v1340, %v1339
  %v1368 = vpack.c.b16 %v1342, %v1341
  %v1369 = vpack.c.b16 %v1344, %v1343
  %v1370 = vpack.c.b16 %v1346, %v1345
  %v1371 = vpack.c.b16 %v1348, %v1347
  %v1372 = vpack.c.b16 %v1350, %v1349
  %v1373 = vpack.c.b16 %v1352, %v1351
  %v1374 = vpack.c.b16 %v1354, %v1353
  %v1375 = vpack.c.b16 %v1356, %v1355
  %v1376 = vpack.c.b16 %v1358, %v1357
  %v1377 = vpack.c.b16 %v1360, %v1359
  %v1378 = vpack.c.b16 %v1362, %v1361
  %1395 = vmatprep.subr.bf16.mxu0 0
  %1396 = vmatpush1.bf16.msra.mxu0 %v1363
  %1397 = vmatprep.subr.bf16.mxu0 0
  %1398 = vmatpush1.bf16.msra.mxu0 %v1364
  %1399 = vmatprep.subr.bf16.mxu0 0
  %1400 = vmatpush1.bf16.msra.mxu0 %v1365
  %1401 = vmatprep.subr.bf16.mxu0 0
  %1402 = vmatpush1.bf16.msra.mxu0 %v1366
  %1403 = vmatprep.subr.bf16.mxu0 0
  %1404 = vmatpush1.bf16.msra.mxu0 %v1367
  %1405 = vmatprep.subr.bf16.mxu0 0
  %1406 = vmatpush1.bf16.msra.mxu0 %v1368
  %1407 = vmatprep.subr.bf16.mxu0 0
  %1408 = vmatpush1.bf16.msra.mxu0 %v1369
  %1409 = vmatprep.subr.bf16.mxu0 0
  %1410 = vmatpush1.bf16.msra.mxu0 %v1370
  %1411 = vmatprep.subr.bf16.mxu0 0
  %1412 = vmatpush1.bf16.msra.mxu0 %v1371
  %1413 = vmatprep.subr.bf16.mxu0 0
  %1414 = vmatpush1.bf16.msra.mxu0 %v1372
  %1415 = vmatprep.subr.bf16.mxu0 0
  %1416 = vmatpush1.bf16.msra.mxu0 %v1373
  %1417 = vmatprep.subr.bf16.mxu0 0
  %1418 = vmatpush1.bf16.msra.mxu0 %v1374
  %1419 = vmatprep.subr.bf16.mxu0 0
  %1420 = vmatpush1.bf16.msra.mxu0 %v1375
  %1421 = vmatprep.subr.bf16.mxu0 0
  %1422 = vmatpush1.bf16.msra.mxu0 %v1376
  %1423 = vmatprep.subr.bf16.mxu0 0
  %1424 = vmatpush1.bf16.msra.mxu0 %v1377
  %1425 = vmatprep.subr.bf16.mxu0 0
  %1426 = vmatpush1.bf16.msra.mxu0 %v1378
  %1427 = vmatprep.mubr.bf16.mxu0 %v1296
  %1428 = vmatmul.mubr.bf16.gmra.mrb[0].mxu0 %v1295
  %v1429 = vpop.f32.mrb[0].mxu0
  %v1430 = vadd.f32 0.0, %v1429
  %v1431 = vpop.f32.mrb[0].mxu0
  %v1432 = vpop.f32.mrb[0].mxu0
  %v1433 = vadd.f32 0.0, %v1432
  %v1434 = vpop.f32.mrb[0].mxu0
  %1435 = vdwg.mxu0
  %v1436 = vlaneseq
  %v1437 = vshrl.u32 %v1436, 7
  %v1438 = vsub.s32 0, %v1437
  %v1439 = vrot.slane %v1254, %v1438
  %v1440 = vmul.f32 %v1439, %v1430
  %v1441 = vlaneseq
  %v1442 = vshrl.u32 %v1441, 7
  %v1443 = vsub.s32 1, %v1442
  %v1444 = vrot.slane %v1254, %v1443
  %v1445 = vmul.f32 %v1444, %v1430
  %v1447 = vrot.slane %v1445, 4
  %v1449 = vadd.f32 %v1440, %v1447
  %v1450 = vlaneseq
  %v1451 = vshrl.u32 %v1450, 7
  %v1452 = vsub.s32 2, %v1451
  %v1453 = vrot.slane %v1254, %v1452
  %v1454 = vmul.f32 %v1453, %v1433
  %v1455 = vadd.f32 %v1449, %v1454
  %v1456 = vlaneseq
  %v1457 = vshrl.u32 %v1456, 7
  %v1458 = vsub.s32 3, %v1457
  %v1459 = vrot.slane %v1254, %v1458
  %v1460 = vmul.f32 %v1459, %v1433
  %v1462 = vrot.slane %v1460, 4
  %v1464 = vadd.f32 %v1455, %v1462
  %v1465 = vld [vmem:[%s1 + $0x70] sm:$0xff]
  %v1466 = vld [vmem:[%s1 + $0x78] sm:$0xff]
  %v1467 = vld [vmem:[%s0 + $0x380] sm:$0xf]
  %v1468 = vld [vmem:[%s0 + $0x384] sm:$0xf]
  %v1469 = vld [vmem:[%s0 + $0x388] sm:$0xf]
  %v1470 = vld [vmem:[%s0 + $0x38c] sm:$0xf]
  %v1471 = vld [vmem:[%s0 + $0x390] sm:$0xf]
  %v1472 = vld [vmem:[%s0 + $0x394] sm:$0xf]
  %v1473 = vld [vmem:[%s0 + $0x398] sm:$0xf]
  %v1474 = vld [vmem:[%s0 + $0x39c] sm:$0xf]
  %v1475 = vld [vmem:[%s0 + $0x3a0] sm:$0xf]
  %v1476 = vld [vmem:[%s0 + $0x3a4] sm:$0xf]
  %v1477 = vld [vmem:[%s0 + $0x3a8] sm:$0xf]
  %v1478 = vld [vmem:[%s0 + $0x3ac] sm:$0xf]
  %v1479 = vld [vmem:[%s0 + $0x3b0] sm:$0xf]
  %v1480 = vld [vmem:[%s0 + $0x3b4] sm:$0xf]
  %v1481 = vld [vmem:[%s0 + $0x3b8] sm:$0xf]
  %v1482 = vld [vmem:[%s0 + $0x3bc] sm:$0xf]
  %v1483 = vld [vmem:[%s0 + $0x3c0] sm:$0xf]
  %v1484 = vld [vmem:[%s0 + $0x3c4] sm:$0xf]
  %v1485 = vld [vmem:[%s0 + $0x3c8] sm:$0xf]
  %v1486 = vld [vmem:[%s0 + $0x3cc] sm:$0xf]
  %v1487 = vld [vmem:[%s0 + $0x3d0] sm:$0xf]
  %v1488 = vld [vmem:[%s0 + $0x3d4] sm:$0xf]
  %v1489 = vld [vmem:[%s0 + $0x3d8] sm:$0xf]
  %v1490 = vld [vmem:[%s0 + $0x3dc] sm:$0xf]
  %v1491 = vld [vmem:[%s0 + $0x3e0] sm:$0xf]
  %v1492 = vld [vmem:[%s0 + $0x3e4] sm:$0xf]
  %v1493 = vld [vmem:[%s0 + $0x3e8] sm:$0xf]
  %v1494 = vld [vmem:[%s0 + $0x3ec] sm:$0xf]
  %v1495 = vld [vmem:[%s0 + $0x3f0] sm:$0xf]
  %v1496 = vld [vmem:[%s0 + $0x3f4] sm:$0xf]
  %v1497 = vld [vmem:[%s0 + $0x3f8] sm:$0xf]
  %v1498 = vld [vmem:[%s0 + $0x3fc] sm:$0xf]
  %v1501 = vunpack.c.l.b16 %v1465
  %v1502 = vunpack.c.h.b16 %v1465
  %v1503 = vunpack.c.l.b16 %v1466
  %v1504 = vunpack.c.h.b16 %v1466
  %v1505 = vpack.c.b16 %v1503, %v1501
  %v1506 = vpack.c.b16 %v1504, %v1502
  %v1541 = vunpack.c.l.b16 %v1467
  %v1542 = vunpack.c.l.b16 %v1468
  %v1543 = vunpack.c.l.b16 %v1469
  %v1544 = vunpack.c.l.b16 %v1470
  %v1545 = vunpack.c.l.b16 %v1471
  %v1546 = vunpack.c.l.b16 %v1472
  %v1547 = vunpack.c.l.b16 %v1473
  %v1548 = vunpack.c.l.b16 %v1474
  %v1549 = vunpack.c.l.b16 %v1475
  %v1550 = vunpack.c.l.b16 %v1476
  %v1551 = vunpack.c.l.b16 %v1477
  %v1552 = vunpack.c.l.b16 %v1478
  %v1553 = vunpack.c.l.b16 %v1479
  %v1554 = vunpack.c.l.b16 %v1480
  %v1555 = vunpack.c.l.b16 %v1481
  %v1556 = vunpack.c.l.b16 %v1482
  %v1557 = vunpack.c.l.b16 %v1483
  %v1558 = vunpack.c.l.b16 %v1484
  %v1559 = vunpack.c.l.b16 %v1485
  %v1560 = vunpack.c.l.b16 %v1486
  %v1561 = vunpack.c.l.b16 %v1487
  %v1562 = vunpack.c.l.b16 %v1488
  %v1563 = vunpack.c.l.b16 %v1489
  %v1564 = vunpack.c.l.b16 %v1490
  %v1565 = vunpack.c.l.b16 %v1491
  %v1566 = vunpack.c.l.b16 %v1492
  %v1567 = vunpack.c.l.b16 %v1493
  %v1568 = vunpack.c.l.b16 %v1494
  %v1569 = vunpack.c.l.b16 %v1495
  %v1570 = vunpack.c.l.b16 %v1496
  %v1571 = vunpack.c.l.b16 %v1497
  %v1572 = vunpack.c.l.b16 %v1498
  %v1573 = vpack.c.b16 %v1542, %v1541
  %v1574 = vpack.c.b16 %v1544, %v1543
  %v1575 = vpack.c.b16 %v1546, %v1545
  %v1576 = vpack.c.b16 %v1548, %v1547
  %v1577 = vpack.c.b16 %v1550, %v1549
  %v1578 = vpack.c.b16 %v1552, %v1551
  %v1579 = vpack.c.b16 %v1554, %v1553
  %v1580 = vpack.c.b16 %v1556, %v1555
  %v1581 = vpack.c.b16 %v1558, %v1557
  %v1582 = vpack.c.b16 %v1560, %v1559
  %v1583 = vpack.c.b16 %v1562, %v1561
  %v1584 = vpack.c.b16 %v1564, %v1563
  %v1585 = vpack.c.b16 %v1566, %v1565
  %v1586 = vpack.c.b16 %v1568, %v1567
  %v1587 = vpack.c.b16 %v1570, %v1569
  %v1588 = vpack.c.b16 %v1572, %v1571
  %1605 = vmatprep.subr.bf16.mxu0 0
  %1606 = vmatpush1.bf16.msra.mxu0 %v1573
  %1607 = vmatprep.subr.bf16.mxu0 0
  %1608 = vmatpush1.bf16.msra.mxu0 %v1574
  %1609 = vmatprep.subr.bf16.mxu0 0
  %1610 = vmatpush1.bf16.msra.mxu0 %v1575
  %1611 = vmatprep.subr.bf16.mxu0 0
  %1612 = vmatpush1.bf16.msra.mxu0 %v1576
  %1613 = vmatprep.subr.bf16.mxu0 0
  %1614 = vmatpush1.bf16.msra.mxu0 %v1577
  %1615 = vmatprep.subr.bf16.mxu0 0
  %1616 = vmatpush1.bf16.msra.mxu0 %v1578
  %1617 = vmatprep.subr.bf16.mxu0 0
  %1618 = vmatpush1.bf16.msra.mxu0 %v1579
  %1619 = vmatprep.subr.bf16.mxu0 0
  %1620 = vmatpush1.bf16.msra.mxu0 %v1580
  %1621 = vmatprep.subr.bf16.mxu0 0
  %1622 = vmatpush1.bf16.msra.mxu0 %v1581
  %1623 = vmatprep.subr.bf16.mxu0 0
  %1624 = vmatpush1.bf16.msra.mxu0 %v1582
  %1625 = vmatprep.subr.bf16.mxu0 0
  %1626 = vmatpush1.bf16.msra.mxu0 %v1583
  %1627 = vmatprep.subr.bf16.mxu0 0
  %1628 = vmatpush1.bf16.msra.mxu0 %v1584
  %1629 = vmatprep.subr.bf16.mxu0 0
  %1630 = vmatpush1.bf16.msra.mxu0 %v1585
  %1631 = vmatprep.subr.bf16.mxu0 0
  %1632 = vmatpush1.bf16.msra.mxu0 %v1586
  %1633 = vmatprep.subr.bf16.mxu0 0
  %1634 = vmatpush1.bf16.msra.mxu0 %v1587
  %1635 = vmatprep.subr.bf16.mxu0 0
  %1636 = vmatpush1.bf16.msra.mxu0 %v1588
  %1637 = vmatprep.mubr.bf16.mxu0 %v1506
  %1638 = vmatmul.mubr.bf16.gmra.mrb[0].mxu0 %v1505
  %v1639 = vpop.f32.mrb[0].mxu0
  %v1640 = vadd.f32 0.0, %v1639
  %v1641 = vpop.f32.mrb[0].mxu0
  %v1642 = vpop.f32.mrb[0].mxu0
  %v1643 = vadd.f32 0.0, %v1642
  %v1644 = vpop.f32.mrb[0].mxu0
  %1645 = vdwg.mxu0
  %v1646 = vlaneseq
  %v1647 = vshrl.u32 %v1646, 7
  %v1648 = vsub.s32 0, %v1647
  %v1649 = vrot.slane %v1464, %v1648
  %v1650 = vmul.f32 %v1649, %v1640
  %v1651 = vlaneseq
  %v1652 = vshrl.u32 %v1651, 7
  %v1653 = vsub.s32 1, %v1652
  %v1654 = vrot.slane %v1464, %v1653
  %v1655 = vmul.f32 %v1654, %v1640
  %v1657 = vrot.slane %v1655, 4
  %v1659 = vadd.f32 %v1650, %v1657
  %v1660 = vlaneseq
  %v1661 = vshrl.u32 %v1660, 7
  %v1662 = vsub.s32 2, %v1661
  %v1663 = vrot.slane %v1464, %v1662
  %v1664 = vmul.f32 %v1663, %v1643
  %v1665 = vadd.f32 %v1659, %v1664
  %v1666 = vlaneseq
  %v1667 = vshrl.u32 %v1666, 7
  %v1668 = vsub.s32 3, %v1667
  %v1669 = vrot.slane %v1464, %v1668
  %v1670 = vmul.f32 %v1669, %v1643
  %v1672 = vrot.slane %v1670, 4
  %v1674 = vadd.f32 %v1665, %v1672
  %v1675 = vld [vmem:[%s1 + $0xf0] sm:$0xff]
  %v1676 = vld [vmem:[%s1 + $0xf8] sm:$0xff]
  %v1677 = vld [vmem:[%s0 + $0x780] sm:$0xf]
  %v1678 = vld [vmem:[%s0 + $0x784] sm:$0xf]
  %v1679 = vld [vmem:[%s0 + $0x788] sm:$0xf]
  %v1680 = vld [vmem:[%s0 + $0x78c] sm:$0xf]
  %v1681 = vld [vmem:[%s0 + $0x790] sm:$0xf]
  %v1682 = vld [vmem:[%s0 + $0x794] sm:$0xf]
  %v1683 = vld [vmem:[%s0 + $0x798] sm:$0xf]
  %v1684 = vld [vmem:[%s0 + $0x79c] sm:$0xf]
  %v1685 = vld [vmem:[%s0 + $0x7a0] sm:$0xf]
  %v1686 = vld [vmem:[%s0 + $0x7a4] sm:$0xf]
  %v1687 = vld [vmem:[%s0 + $0x7a8] sm:$0xf]
  %v1688 = vld [vmem:[%s0 + $0x7ac] sm:$0xf]
  %v1689 = vld [vmem:[%s0 + $0x7b0] sm:$0xf]
  %v1690 = vld [vmem:[%s0 + $0x7b4] sm:$0xf]
  %v1691 = vld [vmem:[%s0 + $0x7b8] sm:$0xf]
  %v1692 = vld [vmem:[%s0 + $0x7bc] sm:$0xf]
  %v1693 = vld [vmem:[%s0 + $0x7c0] sm:$0xf]
  %v1694 = vld [vmem:[%s0 + $0x7c4] sm:$0xf]
  %v1695 = vld [vmem:[%s0 + $0x7c8] sm:$0xf]
  %v1696 = vld [vmem:[%s0 + $0x7cc] sm:$0xf]
  %v1697 = vld [vmem:[%s0 + $0x7d0] sm:$0xf]
  %v1698 = vld [vmem:[%s0 + $0x7d4] sm:$0xf]
  %v1699 = vld [vmem:[%s0 + $0x7d8] sm:$0xf]
  %v1700 = vld [vmem:[%s0 + $0x7dc] sm:$0xf]
  %v1701 = vld [vmem:[%s0 + $0x7e0] sm:$0xf]
  %v1702 = vld [vmem:[%s0 + $0x7e4] sm:$0xf]
  %v1703 = vld [vmem:[%s0 + $0x7e8] sm:$0xf]
  %v1704 = vld [vmem:[%s0 + $0x7ec] sm:$0xf]
  %v1705 = vld [vmem:[%s0 + $0x7f0] sm:$0xf]
  %v1706 = vld [vmem:[%s0 + $0x7f4] sm:$0xf]
  %v1707 = vld [vmem:[%s0 + $0x7f8] sm:$0xf]
  %v1708 = vld [vmem:[%s0 + $0x7fc] sm:$0xf]
  %v1711 = vunpack.c.l.b16 %v1675
  %v1712 = vunpack.c.h.b16 %v1675
  %v1713 = vunpack.c.l.b16 %v1676
  %v1714 = vunpack.c.h.b16 %v1676
  %v1715 = vpack.c.b16 %v1713, %v1711
  %v1716 = vpack.c.b16 %v1714, %v1712
  %v1751 = vunpack.c.l.b16 %v1677
  %v1752 = vunpack.c.l.b16 %v1678
  %v1753 = vunpack.c.l.b16 %v1679
  %v1754 = vunpack.c.l.b16 %v1680
  %v1755 = vunpack.c.l.b16 %v1681
  %v1756 = vunpack.c.l.b16 %v1682
  %v1757 = vunpack.c.l.b16 %v1683
  %v1758 = vunpack.c.l.b16 %v1684
  %v1759 = vunpack.c.l.b16 %v1685
  %v1760 = vunpack.c.l.b16 %v1686
  %v1761 = vunpack.c.l.b16 %v1687
  %v1762 = vunpack.c.l.b16 %v1688
  %v1763 = vunpack.c.l.b16 %v1689
  %v1764 = vunpack.c.l.b16 %v1690
  %v1765 = vunpack.c.l.b16 %v1691
  %v1766 = vunpack.c.l.b16 %v1692
  %v1767 = vunpack.c.l.b16 %v1693
  %v1768 = vunpack.c.l.b16 %v1694
  %v1769 = vunpack.c.l.b16 %v1695
  %v1770 = vunpack.c.l.b16 %v1696
  %v1771 = vunpack.c.l.b16 %v1697
  %v1772 = vunpack.c.l.b16 %v1698
  %v1773 = vunpack.c.l.b16 %v1699
  %v1774 = vunpack.c.l.b16 %v1700
  %v1775 = vunpack.c.l.b16 %v1701
  %v1776 = vunpack.c.l.b16 %v1702
  %v1777 = vunpack.c.l.b16 %v1703
  %v1778 = vunpack.c.l.b16 %v1704
  %v1779 = vunpack.c.l.b16 %v1705
  %v1780 = vunpack.c.l.b16 %v1706
  %v1781 = vunpack.c.l.b16 %v1707
  %v1782 = vunpack.c.l.b16 %v1708
  %v1783 = vpack.c.b16 %v1752, %v1751
  %v1784 = vpack.c.b16 %v1754, %v1753
  %v1785 = vpack.c.b16 %v1756, %v1755
  %v1786 = vpack.c.b16 %v1758, %v1757
  %v1787 = vpack.c.b16 %v1760, %v1759
  %v1788 = vpack.c.b16 %v1762, %v1761
  %v1789 = vpack.c.b16 %v1764, %v1763
  %v1790 = vpack.c.b16 %v1766, %v1765
  %v1791 = vpack.c.b16 %v1768, %v1767
  %v1792 = vpack.c.b16 %v1770, %v1769
  %v1793 = vpack.c.b16 %v1772, %v1771
  %v1794 = vpack.c.b16 %v1774, %v1773
  %v1795 = vpack.c.b16 %v1776, %v1775
  %v1796 = vpack.c.b16 %v1778, %v1777
  %v1797 = vpack.c.b16 %v1780, %v1779
  %v1798 = vpack.c.b16 %v1782, %v1781
  %1815 = vmatprep.subr.bf16.mxu0 0
  %1816 = vmatpush1.bf16.msra.mxu0 %v1783
  %1817 = vmatprep.subr.bf16.mxu0 0
  %1818 = vmatpush1.bf16.msra.mxu0 %v1784
  %1819 = vmatprep.subr.bf16.mxu0 0
  %1820 = vmatpush1.bf16.msra.mxu0 %v1785
  %1821 = vmatprep.subr.bf16.mxu0 0
  %1822 = vmatpush1.bf16.msra.mxu0 %v1786
  %1823 = vmatprep.subr.bf16.mxu0 0
  %1824 = vmatpush1.bf16.msra.mxu0 %v1787
  %1825 = vmatprep.subr.bf16.mxu0 0
  %1826 = vmatpush1.bf16.msra.mxu0 %v1788
  %1827 = vmatprep.subr.bf16.mxu0 0
  %1828 = vmatpush1.bf16.msra.mxu0 %v1789
  %1829 = vmatprep.subr.bf16.mxu0 0
  %1830 = vmatpush1.bf16.msra.mxu0 %v1790
  %1831 = vmatprep.subr.bf16.mxu0 0
  %1832 = vmatpush1.bf16.msra.mxu0 %v1791
  %1833 = vmatprep.subr.bf16.mxu0 0
  %1834 = vmatpush1.bf16.msra.mxu0 %v1792
  %1835 = vmatprep.subr.bf16.mxu0 0
  %1836 = vmatpush1.bf16.msra.mxu0 %v1793
  %1837 = vmatprep.subr.bf16.mxu0 0
  %1838 = vmatpush1.bf16.msra.mxu0 %v1794
  %1839 = vmatprep.subr.bf16.mxu0 0
  %1840 = vmatpush1.bf16.msra.mxu0 %v1795
  %1841 = vmatprep.subr.bf16.mxu0 0
  %1842 = vmatpush1.bf16.msra.mxu0 %v1796
  %1843 = vmatprep.subr.bf16.mxu0 0
  %1844 = vmatpush1.bf16.msra.mxu0 %v1797
  %1845 = vmatprep.subr.bf16.mxu0 0
  %1846 = vmatpush1.bf16.msra.mxu0 %v1798
  %1847 = vmatprep.mubr.bf16.mxu0 %v1716
  %1848 = vmatmul.mubr.bf16.gmra.mrb[0].mxu0 %v1715
  %v1849 = vpop.f32.mrb[0].mxu0
  %v1850 = vadd.f32 0.0, %v1849
  %v1851 = vpop.f32.mrb[0].mxu0
  %v1852 = vpop.f32.mrb[0].mxu0
  %v1853 = vadd.f32 0.0, %v1852
  %v1854 = vpop.f32.mrb[0].mxu0
  %1855 = vdwg.mxu0
  %v1857 = vrot.slane %v1850, 4
  %v1859 = vadd.f32 %v1850, %v1857
  %v1860 = vadd.f32 %v1859, %v1853
  %v1862 = vrot.slane %v1853, 4
  %v1864 = vadd.f32 %v1860, %v1862
  %v1865 = vld [vmem:[%s1 + $0xe0] sm:$0xff]
  %v1866 = vld [vmem:[%s1 + $0xe8] sm:$0xff]
  %v1867 = vld [vmem:[%s0 + $0x700] sm:$0xf]
  %v1868 = vld [vmem:[%s0 + $0x704] sm:$0xf]
  %v1869 = vld [vmem:[%s0 + $0x708] sm:$0xf]
  %v1870 = vld [vmem:[%s0 + $0x70c] sm:$0xf]
  %v1871 = vld [vmem:[%s0 + $0x710] sm:$0xf]
  %v1872 = vld [vmem:[%s0 + $0x714] sm:$0xf]
  %v1873 = vld [vmem:[%s0 + $0x718] sm:$0xf]
  %v1874 = vld [vmem:[%s0 + $0x71c] sm:$0xf]
  %v1875 = vld [vmem:[%s0 + $0x720] sm:$0xf]
  %v1876 = vld [vmem:[%s0 + $0x724] sm:$0xf]
  %v1877 = vld [vmem:[%s0 + $0x728] sm:$0xf]
  %v1878 = vld [vmem:[%s0 + $0x72c] sm:$0xf]
  %v1879 = vld [vmem:[%s0 + $0x730] sm:$0xf]
  %v1880 = vld [vmem:[%s0 + $0x734] sm:$0xf]
  %v1881 = vld [vmem:[%s0 + $0x738] sm:$0xf]
  %v1882 = vld [vmem:[%s0 + $0x73c] sm:$0xf]
  %v1883 = vld [vmem:[%s0 + $0x740] sm:$0xf]
  %v1884 = vld [vmem:[%s0 + $0x744] sm:$0xf]
  %v1885 = vld [vmem:[%s0 + $0x748] sm:$0xf]
  %v1886 = vld [vmem:[%s0 + $0x74c] sm:$0xf]
  %v1887 = vld [vmem:[%s0 + $0x750] sm:$0xf]
  %v1888 = vld [vmem:[%s0 + $0x754] sm:$0xf]
  %v1889 = vld [vmem:[%s0 + $0x758] sm:$0xf]
  %v1890 = vld [vmem:[%s0 + $0x75c] sm:$0xf]
  %v1891 = vld [vmem:[%s0 + $0x760] sm:$0xf]
  %v1892 = vld [vmem:[%s0 + $0x764] sm:$0xf]
  %v1893 = vld [vmem:[%s0 + $0x768] sm:$0xf]
  %v1894 = vld [vmem:[%s0 + $0x76c] sm:$0xf]
  %v1895 = vld [vmem:[%s0 + $0x770] sm:$0xf]
  %v1896 = vld [vmem:[%s0 + $0x774] sm:$0xf]
  %v1897 = vld [vmem:[%s0 + $0x778] sm:$0xf]
  %v1898 = vld [vmem:[%s0 + $0x77c] sm:$0xf]
  %v1901 = vunpack.c.l.b16 %v1865
  %v1902 = vunpack.c.h.b16 %v1865
  %v1903 = vunpack.c.l.b16 %v1866
  %v1904 = vunpack.c.h.b16 %v1866
  %v1905 = vpack.c.b16 %v1903, %v1901
  %v1906 = vpack.c.b16 %v1904, %v1902
  %v1941 = vunpack.c.l.b16 %v1867
  %v1942 = vunpack.c.l.b16 %v1868
  %v1943 = vunpack.c.l.b16 %v1869
  %v1944 = vunpack.c.l.b16 %v1870
  %v1945 = vunpack.c.l.b16 %v1871
  %v1946 = vunpack.c.l.b16 %v1872
  %v1947 = vunpack.c.l.b16 %v1873
  %v1948 = vunpack.c.l.b16 %v1874
  %v1949 = vunpack.c.l.b16 %v1875
  %v1950 = vunpack.c.l.b16 %v1876
  %v1951 = vunpack.c.l.b16 %v1877
  %v1952 = vunpack.c.l.b16 %v1878
  %v1953 = vunpack.c.l.b16 %v1879
  %v1954 = vunpack.c.l.b16 %v1880
  %v1955 = vunpack.c.l.b16 %v1881
  %v1956 = vunpack.c.l.b16 %v1882
  %v1957 = vunpack.c.l.b16 %v1883
  %v1958 = vunpack.c.l.b16 %v1884
  %v1959 = vunpack.c.l.b16 %v1885
  %v1960 = vunpack.c.l.b16 %v1886
  %v1961 = vunpack.c.l.b16 %v1887
  %v1962 = vunpack.c.l.b16 %v1888
  %v1963 = vunpack.c.l.b16 %v1889
  %v1964 = vunpack.c.l.b16 %v1890
  %v1965 = vunpack.c.l.b16 %v1891
  %v1966 = vunpack.c.l.b16 %v1892
  %v1967 = vunpack.c.l.b16 %v1893
  %v1968 = vunpack.c.l.b16 %v1894
  %v1969 = vunpack.c.l.b16 %v1895
  %v1970 = vunpack.c.l.b16 %v1896
  %v1971 = vunpack.c.l.b16 %v1897
  %v1972 = vunpack.c.l.b16 %v1898
  %v1973 = vpack.c.b16 %v1942, %v1941
  %v1974 = vpack.c.b16 %v1944, %v1943
  %v1975 = vpack.c.b16 %v1946, %v1945
  %v1976 = vpack.c.b16 %v1948, %v1947
  %v1977 = vpack.c.b16 %v1950, %v1949
  %v1978 = vpack.c.b16 %v1952, %v1951
  %v1979 = vpack.c.b16 %v1954, %v1953
  %v1980 = vpack.c.b16 %v1956, %v1955
  %v1981 = vpack.c.b16 %v1958, %v1957
  %v1982 = vpack.c.b16 %v1960, %v1959
  %v1983 = vpack.c.b16 %v1962, %v1961
  %v1984 = vpack.c.b16 %v1964, %v1963
  %v1985 = vpack.c.b16 %v1966, %v1965
  %v1986 = vpack.c.b16 %v1968, %v1967
  %v1987 = vpack.c.b16 %v1970, %v1969
  %v1988 = vpack.c.b16 %v1972, %v1971
  %2005 = vmatprep.subr.bf16.mxu0 0
  %2006 = vmatpush1.bf16.msra.mxu0 %v1973
  %2007 = vmatprep.subr.bf16.mxu0 0
  %2008 = vmatpush1.bf16.msra.mxu0 %v1974
  %2009 = vmatprep.subr.bf16.mxu0 0
  %2010 = vmatpush1.bf16.msra.mxu0 %v1975
  %2011 = vmatprep.subr.bf16.mxu0 0
  %2012 = vmatpush1.bf16.msra.mxu0 %v1976
  %2013 = vmatprep.subr.bf16.mxu0 0
  %2014 = vmatpush1.bf16.msra.mxu0 %v1977
  %2015 = vmatprep.subr.bf16.mxu0 0
  %2016 = vmatpush1.bf16.msra.mxu0 %v1978
  %2017 = vmatprep.subr.bf16.mxu0 0
  %2018 = vmatpush1.bf16.msra.mxu0 %v1979
  %2019 = vmatprep.subr.bf16.mxu0 0
  %2020 = vmatpush1.bf16.msra.mxu0 %v1980
  %2021 = vmatprep.subr.bf16.mxu0 0
  %2022 = vmatpush1.bf16.msra.mxu0 %v1981
  %2023 = vmatprep.subr.bf16.mxu0 0
  %2024 = vmatpush1.bf16.msra.mxu0 %v1982
  %2025 = vmatprep.subr.bf16.mxu0 0
  %2026 = vmatpush1.bf16.msra.mxu0 %v1983
  %2027 = vmatprep.subr.bf16.mxu0 0
  %2028 = vmatpush1.bf16.msra.mxu0 %v1984
  %2029 = vmatprep.subr.bf16.mxu0 0
  %2030 = vmatpush1.bf16.msra.mxu0 %v1985
  %2031 = vmatprep.subr.bf16.mxu0 0
  %2032 = vmatpush1.bf16.msra.mxu0 %v1986
  %2033 = vmatprep.subr.bf16.mxu0 0
  %2034 = vmatpush1.bf16.msra.mxu0 %v1987
  %2035 = vmatprep.subr.bf16.mxu0 0
  %2036 = vmatpush1.bf16.msra.mxu0 %v1988
  %2037 = vmatprep.mubr.bf16.mxu0 %v1906
  %2038 = vmatmul.mubr.bf16.gmra.mrb[0].mxu0 %v1905
  %v2039 = vpop.f32.mrb[0].mxu0
  %v2040 = vadd.f32 0.0, %v2039
  %v2041 = vpop.f32.mrb[0].mxu0
  %v2042 = vpop.f32.mrb[0].mxu0
  %v2043 = vadd.f32 0.0, %v2042
  %v2044 = vpop.f32.mrb[0].mxu0
  %2045 = vdwg.mxu0
  %v2046 = vlaneseq
  %v2047 = vshrl.u32 %v2046, 7
  %v2048 = vsub.s32 0, %v2047
  %v2049 = vrot.slane %v1864, %v2048
  %v2050 = vmul.f32 %v2049, %v2040
  %v2051 = vlaneseq
  %v2052 = vshrl.u32 %v2051, 7
  %v2053 = vsub.s32 1, %v2052
  %v2054 = vrot.slane %v1864, %v2053
  %v2055 = vmul.f32 %v2054, %v2040
  %v2057 = vrot.slane %v2055, 4
  %v2059 = vadd.f32 %v2050, %v2057
  %v2060 = vlaneseq
  %v2061 = vshrl.u32 %v2060, 7
  %v2062 = vsub.s32 2, %v2061
  %v2063 = vrot.slane %v1864, %v2062
  %v2064 = vmul.f32 %v2063, %v2043
  %v2065 = vadd.f32 %v2059, %v2064
  %v2066 = vlaneseq
  %v2067 = vshrl.u32 %v2066, 7
  %v2068 = vsub.s32 3, %v2067
  %v2069 = vrot.slane %v1864, %v2068
  %v2070 = vmul.f32 %v2069, %v2043
  %v2072 = vrot.slane %v2070, 4
  %v2074 = vadd.f32 %v2065, %v2072
  %v2075 = vld [vmem:[%s1 + $0xd0] sm:$0xff]
  %v2076 = vld [vmem:[%s1 + $0xd8] sm:$0xff]
  %v2077 = vld [vmem:[%s0 + $0x680] sm:$0xf]
  %v2078 = vld [vmem:[%s0 + $0x684] sm:$0xf]
  %v2079 = vld [vmem:[%s0 + $0x688] sm:$0xf]
  %v2080 = vld [vmem:[%s0 + $0x68c] sm:$0xf]
  %v2081 = vld [vmem:[%s0 + $0x690] sm:$0xf]
  %v2082 = vld [vmem:[%s0 + $0x694] sm:$0xf]
  %v2083 = vld [vmem:[%s0 + $0x698] sm:$0xf]
  %v2084 = vld [vmem:[%s0 + $0x69c] sm:$0xf]
  %v2085 = vld [vmem:[%s0 + $0x6a0] sm:$0xf]
  %v2086 = vld [vmem:[%s0 + $0x6a4] sm:$0xf]
  %v2087 = vld [vmem:[%s0 + $0x6a8] sm:$0xf]
  %v2088 = vld [vmem:[%s0 + $0x6ac] sm:$0xf]
  %v2089 = vld [vmem:[%s0 + $0x6b0] sm:$0xf]
  %v2090 = vld [vmem:[%s0 + $0x6b4] sm:$0xf]
  %v2091 = vld [vmem:[%s0 + $0x6b8] sm:$0xf]
  %v2092 = vld [vmem:[%s0 + $0x6bc] sm:$0xf]
  %v2093 = vld [vmem:[%s0 + $0x6c0] sm:$0xf]
  %v2094 = vld [vmem:[%s0 + $0x6c4] sm:$0xf]
  %v2095 = vld [vmem:[%s0 + $0x6c8] sm:$0xf]
  %v2096 = vld [vmem:[%s0 + $0x6cc] sm:$0xf]
  %v2097 = vld [vmem:[%s0 + $0x6d0] sm:$0xf]
  %v2098 = vld [vmem:[%s0 + $0x6d4] sm:$0xf]
  %v2099 = vld [vmem:[%s0 + $0x6d8] sm:$0xf]
  %v2100 = vld [vmem:[%s0 + $0x6dc] sm:$0xf]
  %v2101 = vld [vmem:[%s0 + $0x6e0] sm:$0xf]
  %v2102 = vld [vmem:[%s0 + $0x6e4] sm:$0xf]
  %v2103 = vld [vmem:[%s0 + $0x6e8] sm:$0xf]
  %v2104 = vld [vmem:[%s0 + $0x6ec] sm:$0xf]
  %v2105 = vld [vmem:[%s0 + $0x6f0] sm:$0xf]
  %v2106 = vld [vmem:[%s0 + $0x6f4] sm:$0xf]
  %v2107 = vld [vmem:[%s0 + $0x6f8] sm:$0xf]
  %v2108 = vld [vmem:[%s0 + $0x6fc] sm:$0xf]
  %v2111 = vunpack.c.l.b16 %v2075
  %v2112 = vunpack.c.h.b16 %v2075
  %v2113 = vunpack.c.l.b16 %v2076
  %v2114 = vunpack.c.h.b16 %v2076
  %v2115 = vpack.c.b16 %v2113, %v2111
  %v2116 = vpack.c.b16 %v2114, %v2112
  %v2151 = vunpack.c.l.b16 %v2077
  %v2152 = vunpack.c.l.b16 %v2078
  %v2153 = vunpack.c.l.b16 %v2079
  %v2154 = vunpack.c.l.b16 %v2080
  %v2155 = vunpack.c.l.b16 %v2081
  %v2156 = vunpack.c.l.b16 %v2082
  %v2157 = vunpack.c.l.b16 %v2083
  %v2158 = vunpack.c.l.b16 %v2084
  %v2159 = vunpack.c.l.b16 %v2085
  %v2160 = vunpack.c.l.b16 %v2086
  %v2161 = vunpack.c.l.b16 %v2087
  %v2162 = vunpack.c.l.b16 %v2088
  %v2163 = vunpack.c.l.b16 %v2089
  %v2164 = vunpack.c.l.b16 %v2090
  %v2165 = vunpack.c.l.b16 %v2091
  %v2166 = vunpack.c.l.b16 %v2092
  %v2167 = vunpack.c.l.b16 %v2093
  %v2168 = vunpack.c.l.b16 %v2094
  %v2169 = vunpack.c.l.b16 %v2095
  %v2170 = vunpack.c.l.b16 %v2096
  %v2171 = vunpack.c.l.b16 %v2097
  %v2172 = vunpack.c.l.b16 %v2098
  %v2173 = vunpack.c.l.b16 %v2099
  %v2174 = vunpack.c.l.b16 %v2100
  %v2175 = vunpack.c.l.b16 %v2101
  %v2176 = vunpack.c.l.b16 %v2102
  %v2177 = vunpack.c.l.b16 %v2103
  %v2178 = vunpack.c.l.b16 %v2104
  %v2179 = vunpack.c.l.b16 %v2105
  %v2180 = vunpack.c.l.b16 %v2106
  %v2181 = vunpack.c.l.b16 %v2107
  %v2182 = vunpack.c.l.b16 %v2108
  %v2183 = vpack.c.b16 %v2152, %v2151
  %v2184 = vpack.c.b16 %v2154, %v2153
  %v2185 = vpack.c.b16 %v2156, %v2155
  %v2186 = vpack.c.b16 %v2158, %v2157
  %v2187 = vpack.c.b16 %v2160, %v2159
  %v2188 = vpack.c.b16 %v2162, %v2161
  %v2189 = vpack.c.b16 %v2164, %v2163
  %v2190 = vpack.c.b16 %v2166, %v2165
  %v2191 = vpack.c.b16 %v2168, %v2167
  %v2192 = vpack.c.b16 %v2170, %v2169
  %v2193 = vpack.c.b16 %v2172, %v2171
  %v2194 = vpack.c.b16 %v2174, %v2173
  %v2195 = vpack.c.b16 %v2176, %v2175
  %v2196 = vpack.c.b16 %v2178, %v2177
  %v2197 = vpack.c.b16 %v2180, %v2179
  %v2198 = vpack.c.b16 %v2182, %v2181
  %2215 = vmatprep.subr.bf16.mxu0 0
  %2216 = vmatpush1.bf16.msra.mxu0 %v2183
  %2217 = vmatprep.subr.bf16.mxu0 0
  %2218 = vmatpush1.bf16.msra.mxu0 %v2184
  %2219 = vmatprep.subr.bf16.mxu0 0
  %2220 = vmatpush1.bf16.msra.mxu0 %v2185
  %2221 = vmatprep.subr.bf16.mxu0 0
  %2222 = vmatpush1.bf16.msra.mxu0 %v2186
  %2223 = vmatprep.subr.bf16.mxu0 0
  %2224 = vmatpush1.bf16.msra.mxu0 %v2187
  %2225 = vmatprep.subr.bf16.mxu0 0
  %2226 = vmatpush1.bf16.msra.mxu0 %v2188
  %2227 = vmatprep.subr.bf16.mxu0 0
  %2228 = vmatpush1.bf16.msra.mxu0 %v2189
  %2229 = vmatprep.subr.bf16.mxu0 0
  %2230 = vmatpush1.bf16.msra.mxu0 %v2190
  %2231 = vmatprep.subr.bf16.mxu0 0
  %2232 = vmatpush1.bf16.msra.mxu0 %v2191
  %2233 = vmatprep.subr.bf16.mxu0 0
  %2234 = vmatpush1.bf16.msra.mxu0 %v2192
  %2235 = vmatprep.subr.bf16.mxu0 0
  %2236 = vmatpush1.bf16.msra.mxu0 %v2193
  %2237 = vmatprep.subr.bf16.mxu0 0
  %2238 = vmatpush1.bf16.msra.mxu0 %v2194
  %2239 = vmatprep.subr.bf16.mxu0 0
  %2240 = vmatpush1.bf16.msra.mxu0 %v2195
  %2241 = vmatprep.subr.bf16.mxu0 0
  %2242 = vmatpush1.bf16.msra.mxu0 %v2196
  %2243 = vmatprep.subr.bf16.mxu0 0
  %2244 = vmatpush1.bf16.msra.mxu0 %v2197
  %2245 = vmatprep.subr.bf16.mxu0 0
  %2246 = vmatpush1.bf16.msra.mxu0 %v2198
  %2247 = vmatprep.mubr.bf16.mxu0 %v2116
  %2248 = vmatmul.mubr.bf16.gmra.mrb[0].mxu0 %v2115
  %v2249 = vpop.f32.mrb[0].mxu0
  %v2250 = vadd.f32 0.0, %v2249
  %v2251 = vpop.f32.mrb[0].mxu0
  %v2252 = vpop.f32.mrb[0].mxu0
  %v2253 = vadd.f32 0.0, %v2252
  %v2254 = vpop.f32.mrb[0].mxu0
  %2255 = vdwg.mxu0
  %v2256 = vlaneseq
  %v2257 = vshrl.u32 %v2256, 7
  %v2258 = vsub.s32 0, %v2257
  %v2259 = vrot.slane %v2074, %v2258
  %v2260 = vmul.f32 %v2259, %v2250
  %v2261 = vlaneseq
  %v2262 = vshrl.u32 %v2261, 7
  %v2263 = vsub.s32 1, %v2262
  %v2264 = vrot.slane %v2074, %v2263
  %v2265 = vmul.f32 %v2264, %v2250
  %v2267 = vrot.slane %v2265, 4
  %v2269 = vadd.f32 %v2260, %v2267
  %v2270 = vlaneseq
  %v2271 = vshrl.u32 %v2270, 7
  %v2272 = vsub.s32 2, %v2271
  %v2273 = vrot.slane %v2074, %v2272
  %v2274 = vmul.f32 %v2273, %v2253
  %v2275 = vadd.f32 %v2269, %v2274
  %v2276 = vlaneseq
  %v2277 = vshrl.u32 %v2276, 7
  %v2278 = vsub.s32 3, %v2277
  %v2279 = vrot.slane %v2074, %v2278
  %v2280 = vmul.f32 %v2279, %v2253
  %v2282 = vrot.slane %v2280, 4
  %v2284 = vadd.f32 %v2275, %v2282
  %v2285 = vld [vmem:[%s1 + $0xc0] sm:$0xff]
  %v2286 = vld [vmem:[%s1 + $0xc8] sm:$0xff]
  %v2287 = vld [vmem:[%s0 + $0x600] sm:$0xf]
  %v2288 = vld [vmem:[%s0 + $0x604] sm:$0xf]
  %v2289 = vld [vmem:[%s0 + $0x608] sm:$0xf]
  %v2290 = vld [vmem:[%s0 + $0x60c] sm:$0xf]
  %v2291 = vld [vmem:[%s0 + $0x610] sm:$0xf]
  %v2292 = vld [vmem:[%s0 + $0x614] sm:$0xf]
  %v2293 = vld [vmem:[%s0 + $0x618] sm:$0xf]
  %v2294 = vld [vmem:[%s0 + $0x61c] sm:$0xf]
  %v2295 = vld [vmem:[%s0 + $0x620] sm:$0xf]
  %v2296 = vld [vmem:[%s0 + $0x624] sm:$0xf]
  %v2297 = vld [vmem:[%s0 + $0x628] sm:$0xf]
  %v2298 = vld [vmem:[%s0 + $0x62c] sm:$0xf]
  %v2299 = vld [vmem:[%s0 + $0x630] sm:$0xf]
  %v2300 = vld [vmem:[%s0 + $0x634] sm:$0xf]
  %v2301 = vld [vmem:[%s0 + $0x638] sm:$0xf]
  %v2302 = vld [vmem:[%s0 + $0x63c] sm:$0xf]
  %v2303 = vld [vmem:[%s0 + $0x640] sm:$0xf]
  %v2304 = vld [vmem:[%s0 + $0x644] sm:$0xf]
  %v2305 = vld [vmem:[%s0 + $0x648] sm:$0xf]
  %v2306 = vld [vmem:[%s0 + $0x64c] sm:$0xf]
  %v2307 = vld [vmem:[%s0 + $0x650] sm:$0xf]
  %v2308 = vld [vmem:[%s0 + $0x654] sm:$0xf]
  %v2309 = vld [vmem:[%s0 + $0x658] sm:$0xf]
  %v2310 = vld [vmem:[%s0 + $0x65c] sm:$0xf]
  %v2311 = vld [vmem:[%s0 + $0x660] sm:$0xf]
  %v2312 = vld [vmem:[%s0 + $0x664] sm:$0xf]
  %v2313 = vld [vmem:[%s0 + $0x668] sm:$0xf]
  %v2314 = vld [vmem:[%s0 + $0x66c] sm:$0xf]
  %v2315 = vld [vmem:[%s0 + $0x670] sm:$0xf]
  %v2316 = vld [vmem:[%s0 + $0x674] sm:$0xf]
  %v2317 = vld [vmem:[%s0 + $0x678] sm:$0xf]
  %v2318 = vld [vmem:[%s0 + $0x67c] sm:$0xf]
  %v2321 = vunpack.c.l.b16 %v2285
  %v2322 = vunpack.c.h.b16 %v2285
  %v2323 = vunpack.c.l.b16 %v2286
  %v2324 = vunpack.c.h.b16 %v2286
  %v2325 = vpack.c.b16 %v2323, %v2321
  %v2326 = vpack.c.b16 %v2324, %v2322
  %v2361 = vunpack.c.l.b16 %v2287
  %v2362 = vunpack.c.l.b16 %v2288
  %v2363 = vunpack.c.l.b16 %v2289
  %v2364 = vunpack.c.l.b16 %v2290
  %v2365 = vunpack.c.l.b16 %v2291
  %v2366 = vunpack.c.l.b16 %v2292
  %v2367 = vunpack.c.l.b16 %v2293
  %v2368 = vunpack.c.l.b16 %v2294
  %v2369 = vunpack.c.l.b16 %v2295
  %v2370 = vunpack.c.l.b16 %v2296
  %v2371 = vunpack.c.l.b16 %v2297
  %v2372 = vunpack.c.l.b16 %v2298
  %v2373 = vunpack.c.l.b16 %v2299
  %v2374 = vunpack.c.l.b16 %v2300
  %v2375 = vunpack.c.l.b16 %v2301
  %v2376 = vunpack.c.l.b16 %v2302
  %v2377 = vunpack.c.l.b16 %v2303
  %v2378 = vunpack.c.l.b16 %v2304
  %v2379 = vunpack.c.l.b16 %v2305
  %v2380 = vunpack.c.l.b16 %v2306
  %v2381 = vunpack.c.l.b16 %v2307
  %v2382 = vunpack.c.l.b16 %v2308
  %v2383 = vunpack.c.l.b16 %v2309
  %v2384 = vunpack.c.l.b16 %v2310
  %v2385 = vunpack.c.l.b16 %v2311
  %v2386 = vunpack.c.l.b16 %v2312
  %v2387 = vunpack.c.l.b16 %v2313
  %v2388 = vunpack.c.l.b16 %v2314
  %v2389 = vunpack.c.l.b16 %v2315
  %v2390 = vunpack.c.l.b16 %v2316
  %v2391 = vunpack.c.l.b16 %v2317
  %v2392 = vunpack.c.l.b16 %v2318
  %v2393 = vpack.c.b16 %v2362, %v2361
  %v2394 = vpack.c.b16 %v2364, %v2363
  %v2395 = vpack.c.b16 %v2366, %v2365
  %v2396 = vpack.c.b16 %v2368, %v2367
  %v2397 = vpack.c.b16 %v2370, %v2369
  %v2398 = vpack.c.b16 %v2372, %v2371
  %v2399 = vpack.c.b16 %v2374, %v2373
  %v2400 = vpack.c.b16 %v2376, %v2375
  %v2401 = vpack.c.b16 %v2378, %v2377
  %v2402 = vpack.c.b16 %v2380, %v2379
  %v2403 = vpack.c.b16 %v2382, %v2381
  %v2404 = vpack.c.b16 %v2384, %v2383
  %v2405 = vpack.c.b16 %v2386, %v2385
  %v2406 = vpack.c.b16 %v2388, %v2387
  %v2407 = vpack.c.b16 %v2390, %v2389
  %v2408 = vpack.c.b16 %v2392, %v2391
  %2425 = vmatprep.subr.bf16.mxu0 0
  %2426 = vmatpush1.bf16.msra.mxu0 %v2393
  %2427 = vmatprep.subr.bf16.mxu0 0
  %2428 = vmatpush1.bf16.msra.mxu0 %v2394
  %2429 = vmatprep.subr.bf16.mxu0 0
  %2430 = vmatpush1.bf16.msra.mxu0 %v2395
  %2431 = vmatprep.subr.bf16.mxu0 0
  %2432 = vmatpush1.bf16.msra.mxu0 %v2396
  %2433 = vmatprep.subr.bf16.mxu0 0
  %2434 = vmatpush1.bf16.msra.mxu0 %v2397
  %2435 = vmatprep.subr.bf16.mxu0 0
  %2436 = vmatpush1.bf16.msra.mxu0 %v2398
  %2437 = vmatprep.subr.bf16.mxu0 0
  %2438 = vmatpush1.bf16.msra.mxu0 %v2399
  %2439 = vmatprep.subr.bf16.mxu0 0
  %2440 = vmatpush1.bf16.msra.mxu0 %v2400
  %2441 = vmatprep.subr.bf16.mxu0 0
  %2442 = vmatpush1.bf16.msra.mxu0 %v2401
  %2443 = vmatprep.subr.bf16.mxu0 0
  %2444 = vmatpush1.bf16.msra.mxu0 %v2402
  %2445 = vmatprep.subr.bf16.mxu0 0
  %2446 = vmatpush1.bf16.msra.mxu0 %v2403
  %2447 = vmatprep.subr.bf16.mxu0 0
  %2448 = vmatpush1.bf16.msra.mxu0 %v2404
  %2449 = vmatprep.subr.bf16.mxu0 0
  %2450 = vmatpush1.bf16.msra.mxu0 %v2405
  %2451 = vmatprep.subr.bf16.mxu0 0
  %2452 = vmatpush1.bf16.msra.mxu0 %v2406
  %2453 = vmatprep.subr.bf16.mxu0 0
  %2454 = vmatpush1.bf16.msra.mxu0 %v2407
  %2455 = vmatprep.subr.bf16.mxu0 0
  %2456 = vmatpush1.bf16.msra.mxu0 %v2408
  %2457 = vmatprep.mubr.bf16.mxu0 %v2326
  %2458 = vmatmul.mubr.bf16.gmra.mrb[0].mxu0 %v2325
  %v2459 = vpop.f32.mrb[0].mxu0
  %v2460 = vadd.f32 0.0, %v2459
  %v2461 = vpop.f32.mrb[0].mxu0
  %v2462 = vpop.f32.mrb[0].mxu0
  %v2463 = vadd.f32 0.0, %v2462
  %v2464 = vpop.f32.mrb[0].mxu0
  %2465 = vdwg.mxu0
  %v2466 = vlaneseq
  %v2467 = vshrl.u32 %v2466, 7
  %v2468 = vsub.s32 0, %v2467
  %v2469 = vrot.slane %v2284, %v2468
  %v2470 = vmul.f32 %v2469, %v2460
  %v2471 = vlaneseq
  %v2472 = vshrl.u32 %v2471, 7
  %v2473 = vsub.s32 1, %v2472
  %v2474 = vrot.slane %v2284, %v2473
  %v2475 = vmul.f32 %v2474, %v2460
  %v2477 = vrot.slane %v2475, 4
  %v2479 = vadd.f32 %v2470, %v2477
  %v2480 = vlaneseq
  %v2481 = vshrl.u32 %v2480, 7
  %v2482 = vsub.s32 2, %v2481
  %v2483 = vrot.slane %v2284, %v2482
  %v2484 = vmul.f32 %v2483, %v2463
  %v2485 = vadd.f32 %v2479, %v2484
  %v2486 = vlaneseq
  %v2487 = vshrl.u32 %v2486, 7
  %v2488 = vsub.s32 3, %v2487
  %v2489 = vrot.slane %v2284, %v2488
  %v2490 = vmul.f32 %v2489, %v2463
  %v2492 = vrot.slane %v2490, 4
  %v2494 = vadd.f32 %v2485, %v2492
  %v2495 = vld [vmem:[%s1 + $0xb0] sm:$0xff]
  %v2496 = vld [vmem:[%s1 + $0xb8] sm:$0xff]
  %v2497 = vld [vmem:[%s0 + $0x580] sm:$0xf]
  %v2498 = vld [vmem:[%s0 + $0x584] sm:$0xf]
  %v2499 = vld [vmem:[%s0 + $0x588] sm:$0xf]
  %v2500 = vld [vmem:[%s0 + $0x58c] sm:$0xf]
  %v2501 = vld [vmem:[%s0 + $0x590] sm:$0xf]
  %v2502 = vld [vmem:[%s0 + $0x594] sm:$0xf]
  %v2503 = vld [vmem:[%s0 + $0x598] sm:$0xf]
  %v2504 = vld [vmem:[%s0 + $0x59c] sm:$0xf]
  %v2505 = vld [vmem:[%s0 + $0x5a0] sm:$0xf]
  %v2506 = vld [vmem:[%s0 + $0x5a4] sm:$0xf]
  %v2507 = vld [vmem:[%s0 + $0x5a8] sm:$0xf]
  %v2508 = vld [vmem:[%s0 + $0x5ac] sm:$0xf]
  %v2509 = vld [vmem:[%s0 + $0x5b0] sm:$0xf]
  %v2510 = vld [vmem:[%s0 + $0x5b4] sm:$0xf]
  %v2511 = vld [vmem:[%s0 + $0x5b8] sm:$0xf]
  %v2512 = vld [vmem:[%s0 + $0x5bc] sm:$0xf]
  %v2513 = vld [vmem:[%s0 + $0x5c0] sm:$0xf]
  %v2514 = vld [vmem:[%s0 + $0x5c4] sm:$0xf]
  %v2515 = vld [vmem:[%s0 + $0x5c8] sm:$0xf]
  %v2516 = vld [vmem:[%s0 + $0x5cc] sm:$0xf]
  %v2517 = vld [vmem:[%s0 + $0x5d0] sm:$0xf]
  %v2518 = vld [vmem:[%s0 + $0x5d4] sm:$0xf]
  %v2519 = vld [vmem:[%s0 + $0x5d8] sm:$0xf]
  %v2520 = vld [vmem:[%s0 + $0x5dc] sm:$0xf]
  %v2521 = vld [vmem:[%s0 + $0x5e0] sm:$0xf]
  %v2522 = vld [vmem:[%s0 + $0x5e4] sm:$0xf]
  %v2523 = vld [vmem:[%s0 + $0x5e8] sm:$0xf]
  %v2524 = vld [vmem:[%s0 + $0x5ec] sm:$0xf]
  %v2525 = vld [vmem:[%s0 + $0x5f0] sm:$0xf]
  %v2526 = vld [vmem:[%s0 + $0x5f4] sm:$0xf]
  %v2527 = vld [vmem:[%s0 + $0x5f8] sm:$0xf]
  %v2528 = vld [vmem:[%s0 + $0x5fc] sm:$0xf]
  %v2531 = vunpack.c.l.b16 %v2495
  %v2532 = vunpack.c.h.b16 %v2495
  %v2533 = vunpack.c.l.b16 %v2496
  %v2534 = vunpack.c.h.b16 %v2496
  %v2535 = vpack.c.b16 %v2533, %v2531
  %v2536 = vpack.c.b16 %v2534, %v2532
  %v2571 = vunpack.c.l.b16 %v2497
  %v2572 = vunpack.c.l.b16 %v2498
  %v2573 = vunpack.c.l.b16 %v2499
  %v2574 = vunpack.c.l.b16 %v2500
  %v2575 = vunpack.c.l.b16 %v2501
  %v2576 = vunpack.c.l.b16 %v2502
  %v2577 = vunpack.c.l.b16 %v2503
  %v2578 = vunpack.c.l.b16 %v2504
  %v2579 = vunpack.c.l.b16 %v2505
  %v2580 = vunpack.c.l.b16 %v2506
  %v2581 = vunpack.c.l.b16 %v2507
  %v2582 = vunpack.c.l.b16 %v2508
  %v2583 = vunpack.c.l.b16 %v2509
  %v2584 = vunpack.c.l.b16 %v2510
  %v2585 = vunpack.c.l.b16 %v2511
  %v2586 = vunpack.c.l.b16 %v2512
  %v2587 = vunpack.c.l.b16 %v2513
  %v2588 = vunpack.c.l.b16 %v2514
  %v2589 = vunpack.c.l.b16 %v2515
  %v2590 = vunpack.c.l.b16 %v2516
  %v2591 = vunpack.c.l.b16 %v2517
  %v2592 = vunpack.c.l.b16 %v2518
  %v2593 = vunpack.c.l.b16 %v2519
  %v2594 = vunpack.c.l.b16 %v2520
  %v2595 = vunpack.c.l.b16 %v2521
  %v2596 = vunpack.c.l.b16 %v2522
  %v2597 = vunpack.c.l.b16 %v2523
  %v2598 = vunpack.c.l.b16 %v2524
  %v2599 = vunpack.c.l.b16 %v2525
  %v2600 = vunpack.c.l.b16 %v2526
  %v2601 = vunpack.c.l.b16 %v2527
  %v2602 = vunpack.c.l.b16 %v2528
  %v2603 = vpack.c.b16 %v2572, %v2571
  %v2604 = vpack.c.b16 %v2574, %v2573
  %v2605 = vpack.c.b16 %v2576, %v2575
  %v2606 = vpack.c.b16 %v2578, %v2577
  %v2607 = vpack.c.b16 %v2580, %v2579
  %v2608 = vpack.c.b16 %v2582, %v2581
  %v2609 = vpack.c.b16 %v2584, %v2583
  %v2610 = vpack.c.b16 %v2586, %v2585
  %v2611 = vpack.c.b16 %v2588, %v2587
  %v2612 = vpack.c.b16 %v2590, %v2589
  %v2613 = vpack.c.b16 %v2592, %v2591
  %v2614 = vpack.c.b16 %v2594, %v2593
  %v2615 = vpack.c.b16 %v2596, %v2595
  %v2616 = vpack.c.b16 %v2598, %v2597
  %v2617 = vpack.c.b16 %v2600, %v2599
  %v2618 = vpack.c.b16 %v2602, %v2601
  %2635 = vmatprep.subr.bf16.mxu0 0
  %2636 = vmatpush1.bf16.msra.mxu0 %v2603
  %2637 = vmatprep.subr.bf16.mxu0 0
  %2638 = vmatpush1.bf16.msra.mxu0 %v2604
  %2639 = vmatprep.subr.bf16.mxu0 0
  %2640 = vmatpush1.bf16.msra.mxu0 %v2605
  %2641 = vmatprep.subr.bf16.mxu0 0
  %2642 = vmatpush1.bf16.msra.mxu0 %v2606
  %2643 = vmatprep.subr.bf16.mxu0 0
  %2644 = vmatpush1.bf16.msra.mxu0 %v2607
  %2645 = vmatprep.subr.bf16.mxu0 0
  %2646 = vmatpush1.bf16.msra.mxu0 %v2608
  %2647 = vmatprep.subr.bf16.mxu0 0
  %2648 = vmatpush1.bf16.msra.mxu0 %v2609
  %2649 = vmatprep.subr.bf16.mxu0 0
  %2650 = vmatpush1.bf16.msra.mxu0 %v2610
  %2651 = vmatprep.subr.bf16.mxu0 0
  %2652 = vmatpush1.bf16.msra.mxu0 %v2611
  %2653 = vmatprep.subr.bf16.mxu0 0
  %2654 = vmatpush1.bf16.msra.mxu0 %v2612
  %2655 = vmatprep.subr.bf16.mxu0 0
  %2656 = vmatpush1.bf16.msra.mxu0 %v2613
  %2657 = vmatprep.subr.bf16.mxu0 0
  %2658 = vmatpush1.bf16.msra.mxu0 %v2614
  %2659 = vmatprep.subr.bf16.mxu0 0
  %2660 = vmatpush1.bf16.msra.mxu0 %v2615
  %2661 = vmatprep.subr.bf16.mxu0 0
  %2662 = vmatpush1.bf16.msra.mxu0 %v2616
  %2663 = vmatprep.subr.bf16.mxu0 0
  %2664 = vmatpush1.bf16.msra.mxu0 %v2617
  %2665 = vmatprep.subr.bf16.mxu0 0
  %2666 = vmatpush1.bf16.msra.mxu0 %v2618
  %2667 = vmatprep.mubr.bf16.mxu0 %v2536
  %2668 = vmatmul.mubr.bf16.gmra.mrb[0].mxu0 %v2535
  %v2669 = vpop.f32.mrb[0].mxu0
  %v2670 = vadd.f32 0.0, %v2669
  %v2671 = vpop.f32.mrb[0].mxu0
  %v2672 = vpop.f32.mrb[0].mxu0
  %v2673 = vadd.f32 0.0, %v2672
  %v2674 = vpop.f32.mrb[0].mxu0
  %2675 = vdwg.mxu0
  %v2676 = vlaneseq
  %v2677 = vshrl.u32 %v2676, 7
  %v2678 = vsub.s32 0, %v2677
  %v2679 = vrot.slane %v2494, %v2678
  %v2680 = vmul.f32 %v2679, %v2670
  %v2681 = vlaneseq
  %v2682 = vshrl.u32 %v2681, 7
  %v2683 = vsub.s32 1, %v2682
  %v2684 = vrot.slane %v2494, %v2683
  %v2685 = vmul.f32 %v2684, %v2670
  %v2687 = vrot.slane %v2685, 4
  %v2689 = vadd.f32 %v2680, %v2687
  %v2690 = vlaneseq
  %v2691 = vshrl.u32 %v2690, 7
  %v2692 = vsub.s32 2, %v2691
  %v2693 = vrot.slane %v2494, %v2692
  %v2694 = vmul.f32 %v2693, %v2673
  %v2695 = vadd.f32 %v2689, %v2694
  %v2696 = vlaneseq
  %v2697 = vshrl.u32 %v2696, 7
  %v2698 = vsub.s32 3, %v2697
  %v2699 = vrot.slane %v2494, %v2698
  %v2700 = vmul.f32 %v2699, %v2673
  %v2702 = vrot.slane %v2700, 4
  %v2704 = vadd.f32 %v2695, %v2702
  %v2705 = vld [vmem:[%s1 + $0xa0] sm:$0xff]
  %v2706 = vld [vmem:[%s1 + $0xa8] sm:$0xff]
  %v2707 = vld [vmem:[%s0 + $0x500] sm:$0xf]
  %v2708 = vld [vmem:[%s0 + $0x504] sm:$0xf]
  %v2709 = vld [vmem:[%s0 + $0x508] sm:$0xf]
  %v2710 = vld [vmem:[%s0 + $0x50c] sm:$0xf]
  %v2711 = vld [vmem:[%s0 + $0x510] sm:$0xf]
  %v2712 = vld [vmem:[%s0 + $0x514] sm:$0xf]
  %v2713 = vld [vmem:[%s0 + $0x518] sm:$0xf]
  %v2714 = vld [vmem:[%s0 + $0x51c] sm:$0xf]
  %v2715 = vld [vmem:[%s0 + $0x520] sm:$0xf]
  %v2716 = vld [vmem:[%s0 + $0x524] sm:$0xf]
  %v2717 = vld [vmem:[%s0 + $0x528] sm:$0xf]
  %v2718 = vld [vmem:[%s0 + $0x52c] sm:$0xf]
  %v2719 = vld [vmem:[%s0 + $0x530] sm:$0xf]
  %v2720 = vld [vmem:[%s0 + $0x534] sm:$0xf]
  %v2721 = vld [vmem:[%s0 + $0x538] sm:$0xf]
  %v2722 = vld [vmem:[%s0 + $0x53c] sm:$0xf]
  %v2723 = vld [vmem:[%s0 + $0x540] sm:$0xf]
  %v2724 = vld [vmem:[%s0 + $0x544] sm:$0xf]
  %v2725 = vld [vmem:[%s0 + $0x548] sm:$0xf]
  %v2726 = vld [vmem:[%s0 + $0x54c] sm:$0xf]
  %v2727 = vld [vmem:[%s0 + $0x550] sm:$0xf]
  %v2728 = vld [vmem:[%s0 + $0x554] sm:$0xf]
  %v2729 = vld [vmem:[%s0 + $0x558] sm:$0xf]
  %v2730 = vld [vmem:[%s0 + $0x55c] sm:$0xf]
  %v2731 = vld [vmem:[%s0 + $0x560] sm:$0xf]
  %v2732 = vld [vmem:[%s0 + $0x564] sm:$0xf]
  %v2733 = vld [vmem:[%s0 + $0x568] sm:$0xf]
  %v2734 = vld [vmem:[%s0 + $0x56c] sm:$0xf]
  %v2735 = vld [vmem:[%s0 + $0x570] sm:$0xf]
  %v2736 = vld [vmem:[%s0 + $0x574] sm:$0xf]
  %v2737 = vld [vmem:[%s0 + $0x578] sm:$0xf]
  %v2738 = vld [vmem:[%s0 + $0x57c] sm:$0xf]
  %v2741 = vunpack.c.l.b16 %v2705
  %v2742 = vunpack.c.h.b16 %v2705
  %v2743 = vunpack.c.l.b16 %v2706
  %v2744 = vunpack.c.h.b16 %v2706
  %v2745 = vpack.c.b16 %v2743, %v2741
  %v2746 = vpack.c.b16 %v2744, %v2742
  %v2781 = vunpack.c.l.b16 %v2707
  %v2782 = vunpack.c.l.b16 %v2708
  %v2783 = vunpack.c.l.b16 %v2709
  %v2784 = vunpack.c.l.b16 %v2710
  %v2785 = vunpack.c.l.b16 %v2711
  %v2786 = vunpack.c.l.b16 %v2712
  %v2787 = vunpack.c.l.b16 %v2713
  %v2788 = vunpack.c.l.b16 %v2714
  %v2789 = vunpack.c.l.b16 %v2715
  %v2790 = vunpack.c.l.b16 %v2716
  %v2791 = vunpack.c.l.b16 %v2717
  %v2792 = vunpack.c.l.b16 %v2718
  %v2793 = vunpack.c.l.b16 %v2719
  %v2794 = vunpack.c.l.b16 %v2720
  %v2795 = vunpack.c.l.b16 %v2721
  %v2796 = vunpack.c.l.b16 %v2722
  %v2797 = vunpack.c.l.b16 %v2723
  %v2798 = vunpack.c.l.b16 %v2724
  %v2799 = vunpack.c.l.b16 %v2725
  %v2800 = vunpack.c.l.b16 %v2726
  %v2801 = vunpack.c.l.b16 %v2727
  %v2802 = vunpack.c.l.b16 %v2728
  %v2803 = vunpack.c.l.b16 %v2729
  %v2804 = vunpack.c.l.b16 %v2730
  %v2805 = vunpack.c.l.b16 %v2731
  %v2806 = vunpack.c.l.b16 %v2732
  %v2807 = vunpack.c.l.b16 %v2733
  %v2808 = vunpack.c.l.b16 %v2734
  %v2809 = vunpack.c.l.b16 %v2735
  %v2810 = vunpack.c.l.b16 %v2736
  %v2811 = vunpack.c.l.b16 %v2737
  %v2812 = vunpack.c.l.b16 %v2738
  %v2813 = vpack.c.b16 %v2782, %v2781
  %v2814 = vpack.c.b16 %v2784, %v2783
  %v2815 = vpack.c.b16 %v2786, %v2785
  %v2816 = vpack.c.b16 %v2788, %v2787
  %v2817 = vpack.c.b16 %v2790, %v2789
  %v2818 = vpack.c.b16 %v2792, %v2791
  %v2819 = vpack.c.b16 %v2794, %v2793
  %v2820 = vpack.c.b16 %v2796, %v2795
  %v2821 = vpack.c.b16 %v2798, %v2797
  %v2822 = vpack.c.b16 %v2800, %v2799
  %v2823 = vpack.c.b16 %v2802, %v2801
  %v2824 = vpack.c.b16 %v2804, %v2803
  %v2825 = vpack.c.b16 %v2806, %v2805
  %v2826 = vpack.c.b16 %v2808, %v2807
  %v2827 = vpack.c.b16 %v2810, %v2809
  %v2828 = vpack.c.b16 %v2812, %v2811
  %2845 = vmatprep.subr.bf16.mxu0 0
  %2846 = vmatpush1.bf16.msra.mxu0 %v2813
  %2847 = vmatprep.subr.bf16.mxu0 0
  %2848 = vmatpush1.bf16.msra.mxu0 %v2814
  %2849 = vmatprep.subr.bf16.mxu0 0
  %2850 = vmatpush1.bf16.msra.mxu0 %v2815
  %2851 = vmatprep.subr.bf16.mxu0 0
  %2852 = vmatpush1.bf16.msra.mxu0 %v2816
  %2853 = vmatprep.subr.bf16.mxu0 0
  %2854 = vmatpush1.bf16.msra.mxu0 %v2817
  %2855 = vmatprep.subr.bf16.mxu0 0
  %2856 = vmatpush1.bf16.msra.mxu0 %v2818
  %2857 = vmatprep.subr.bf16.mxu0 0
  %2858 = vmatpush1.bf16.msra.mxu0 %v2819
  %2859 = vmatprep.subr.bf16.mxu0 0
  %2860 = vmatpush1.bf16.msra.mxu0 %v2820
  %2861 = vmatprep.subr.bf16.mxu0 0
  %2862 = vmatpush1.bf16.msra.mxu0 %v2821
  %2863 = vmatprep.subr.bf16.mxu0 0
  %2864 = vmatpush1.bf16.msra.mxu0 %v2822
  %2865 = vmatprep.subr.bf16.mxu0 0
  %2866 = vmatpush1.bf16.msra.mxu0 %v2823
  %2867 = vmatprep.subr.bf16.mxu0 0
  %2868 = vmatpush1.bf16.msra.mxu0 %v2824
  %2869 = vmatprep.subr.bf16.mxu0 0
  %2870 = vmatpush1.bf16.msra.mxu0 %v2825
  %2871 = vmatprep.subr.bf16.mxu0 0
  %2872 = vmatpush1.bf16.msra.mxu0 %v2826
  %2873 = vmatprep.subr.bf16.mxu0 0
  %2874 = vmatpush1.bf16.msra.mxu0 %v2827
  %2875 = vmatprep.subr.bf16.mxu0 0
  %2876 = vmatpush1.bf16.msra.mxu0 %v2828
  %2877 = vmatprep.mubr.bf16.mxu0 %v2746
  %2878 = vmatmul.mubr.bf16.gmra.mrb[0].mxu0 %v2745
  %v2879 = vpop.f32.mrb[0].mxu0
  %v2880 = vadd.f32 0.0, %v2879
  %v2881 = vpop.f32.mrb[0].mxu0
  %v2882 = vpop.f32.mrb[0].mxu0
  %v2883 = vadd.f32 0.0, %v2882
  %v2884 = vpop.f32.mrb[0].mxu0
  %2885 = vdwg.mxu0
  %v2886 = vlaneseq
  %v2887 = vshrl.u32 %v2886, 7
  %v2888 = vsub.s32 0, %v2887
  %v2889 = vrot.slane %v2704, %v2888
  %v2890 = vmul.f32 %v2889, %v2880
  %v2891 = vlaneseq
  %v2892 = vshrl.u32 %v2891, 7
  %v2893 = vsub.s32 1, %v2892
  %v2894 = vrot.slane %v2704, %v2893
  %v2895 = vmul.f32 %v2894, %v2880
  %v2897 = vrot.slane %v2895, 4
  %v2899 = vadd.f32 %v2890, %v2897
  %v2900 = vlaneseq
  %v2901 = vshrl.u32 %v2900, 7
  %v2902 = vsub.s32 2, %v2901
  %v2903 = vrot.slane %v2704, %v2902
  %v2904 = vmul.f32 %v2903, %v2883
  %v2905 = vadd.f32 %v2899, %v2904
  %v2906 = vlaneseq
  %v2907 = vshrl.u32 %v2906, 7
  %v2908 = vsub.s32 3, %v2907
  %v2909 = vrot.slane %v2704, %v2908
  %v2910 = vmul.f32 %v2909, %v2883
  %v2912 = vrot.slane %v2910, 4
  %v2914 = vadd.f32 %v2905, %v2912
  %v2915 = vld [vmem:[%s1 + $0x90] sm:$0xff]
  %v2916 = vld [vmem:[%s1 + $0x98] sm:$0xff]
  %v2917 = vld [vmem:[%s0 + $0x480] sm:$0xf]
  %v2918 = vld [vmem:[%s0 + $0x484] sm:$0xf]
  %v2919 = vld [vmem:[%s0 + $0x488] sm:$0xf]
  %v2920 = vld [vmem:[%s0 + $0x48c] sm:$0xf]
  %v2921 = vld [vmem:[%s0 + $0x490] sm:$0xf]
  %v2922 = vld [vmem:[%s0 + $0x494] sm:$0xf]
  %v2923 = vld [vmem:[%s0 + $0x498] sm:$0xf]
  %v2924 = vld [vmem:[%s0 + $0x49c] sm:$0xf]
  %v2925 = vld [vmem:[%s0 + $0x4a0] sm:$0xf]
  %v2926 = vld [vmem:[%s0 + $0x4a4] sm:$0xf]
  %v2927 = vld [vmem:[%s0 + $0x4a8] sm:$0xf]
  %v2928 = vld [vmem:[%s0 + $0x4ac] sm:$0xf]
  %v2929 = vld [vmem:[%s0 + $0x4b0] sm:$0xf]
  %v2930 = vld [vmem:[%s0 + $0x4b4] sm:$0xf]
  %v2931 = vld [vmem:[%s0 + $0x4b8] sm:$0xf]
  %v2932 = vld [vmem:[%s0 + $0x4bc] sm:$0xf]
  %v2933 = vld [vmem:[%s0 + $0x4c0] sm:$0xf]
  %v2934 = vld [vmem:[%s0 + $0x4c4] sm:$0xf]
  %v2935 = vld [vmem:[%s0 + $0x4c8] sm:$0xf]
  %v2936 = vld [vmem:[%s0 + $0x4cc] sm:$0xf]
  %v2937 = vld [vmem:[%s0 + $0x4d0] sm:$0xf]
  %v2938 = vld [vmem:[%s0 + $0x4d4] sm:$0xf]
  %v2939 = vld [vmem:[%s0 + $0x4d8] sm:$0xf]
  %v2940 = vld [vmem:[%s0 + $0x4dc] sm:$0xf]
  %v2941 = vld [vmem:[%s0 + $0x4e0] sm:$0xf]
  %v2942 = vld [vmem:[%s0 + $0x4e4] sm:$0xf]
  %v2943 = vld [vmem:[%s0 + $0x4e8] sm:$0xf]
  %v2944 = vld [vmem:[%s0 + $0x4ec] sm:$0xf]
  %v2945 = vld [vmem:[%s0 + $0x4f0] sm:$0xf]
  %v2946 = vld [vmem:[%s0 + $0x4f4] sm:$0xf]
  %v2947 = vld [vmem:[%s0 + $0x4f8] sm:$0xf]
  %v2948 = vld [vmem:[%s0 + $0x4fc] sm:$0xf]
  %v2951 = vunpack.c.l.b16 %v2915
  %v2952 = vunpack.c.h.b16 %v2915
  %v2953 = vunpack.c.l.b16 %v2916
  %v2954 = vunpack.c.h.b16 %v2916
  %v2955 = vpack.c.b16 %v2953, %v2951
  %v2956 = vpack.c.b16 %v2954, %v2952
  %v2991 = vunpack.c.l.b16 %v2917
  %v2992 = vunpack.c.l.b16 %v2918
  %v2993 = vunpack.c.l.b16 %v2919
  %v2994 = vunpack.c.l.b16 %v2920
  %v2995 = vunpack.c.l.b16 %v2921
  %v2996 = vunpack.c.l.b16 %v2922
  %v2997 = vunpack.c.l.b16 %v2923
  %v2998 = vunpack.c.l.b16 %v2924
  %v2999 = vunpack.c.l.b16 %v2925
  %v3000 = vunpack.c.l.b16 %v2926
  %v3001 = vunpack.c.l.b16 %v2927
  %v3002 = vunpack.c.l.b16 %v2928
  %v3003 = vunpack.c.l.b16 %v2929
  %v3004 = vunpack.c.l.b16 %v2930
  %v3005 = vunpack.c.l.b16 %v2931
  %v3006 = vunpack.c.l.b16 %v2932
  %v3007 = vunpack.c.l.b16 %v2933
  %v3008 = vunpack.c.l.b16 %v2934
  %v3009 = vunpack.c.l.b16 %v2935
  %v3010 = vunpack.c.l.b16 %v2936
  %v3011 = vunpack.c.l.b16 %v2937
  %v3012 = vunpack.c.l.b16 %v2938
  %v3013 = vunpack.c.l.b16 %v2939
  %v3014 = vunpack.c.l.b16 %v2940
  %v3015 = vunpack.c.l.b16 %v2941
  %v3016 = vunpack.c.l.b16 %v2942
  %v3017 = vunpack.c.l.b16 %v2943
  %v3018 = vunpack.c.l.b16 %v2944
  %v3019 = vunpack.c.l.b16 %v2945
  %v3020 = vunpack.c.l.b16 %v2946
  %v3021 = vunpack.c.l.b16 %v2947
  %v3022 = vunpack.c.l.b16 %v2948
  %v3023 = vpack.c.b16 %v2992, %v2991
  %v3024 = vpack.c.b16 %v2994, %v2993
  %v3025 = vpack.c.b16 %v2996, %v2995
  %v3026 = vpack.c.b16 %v2998, %v2997
  %v3027 = vpack.c.b16 %v3000, %v2999
  %v3028 = vpack.c.b16 %v3002, %v3001
  %v3029 = vpack.c.b16 %v3004, %v3003
  %v3030 = vpack.c.b16 %v3006, %v3005
  %v3031 = vpack.c.b16 %v3008, %v3007
  %v3032 = vpack.c.b16 %v3010, %v3009
  %v3033 = vpack.c.b16 %v3012, %v3011
  %v3034 = vpack.c.b16 %v3014, %v3013
  %v3035 = vpack.c.b16 %v3016, %v3015
  %v3036 = vpack.c.b16 %v3018, %v3017
  %v3037 = vpack.c.b16 %v3020, %v3019
  %v3038 = vpack.c.b16 %v3022, %v3021
  %3055 = vmatprep.subr.bf16.mxu0 0
  %3056 = vmatpush1.bf16.msra.mxu0 %v3023
  %3057 = vmatprep.subr.bf16.mxu0 0
  %3058 = vmatpush1.bf16.msra.mxu0 %v3024
  %3059 = vmatprep.subr.bf16.mxu0 0
  %3060 = vmatpush1.bf16.msra.mxu0 %v3025
  %3061 = vmatprep.subr.bf16.mxu0 0
  %3062 = vmatpush1.bf16.msra.mxu0 %v3026
  %3063 = vmatprep.subr.bf16.mxu0 0
  %3064 = vmatpush1.bf16.msra.mxu0 %v3027
  %3065 = vmatprep.subr.bf16.mxu0 0
  %3066 = vmatpush1.bf16.msra.mxu0 %v3028
  %3067 = vmatprep.subr.bf16.mxu0 0
  %3068 = vmatpush1.bf16.msra.mxu0 %v3029
  %3069 = vmatprep.subr.bf16.mxu0 0
  %3070 = vmatpush1.bf16.msra.mxu0 %v3030
  %3071 = vmatprep.subr.bf16.mxu0 0
  %3072 = vmatpush1.bf16.msra.mxu0 %v3031
  %3073 = vmatprep.subr.bf16.mxu0 0
  %3074 = vmatpush1.bf16.msra.mxu0 %v3032
  %3075 = vmatprep.subr.bf16.mxu0 0
  %3076 = vmatpush1.bf16.msra.mxu0 %v3033
  %3077 = vmatprep.subr.bf16.mxu0 0
  %3078 = vmatpush1.bf16.msra.mxu0 %v3034
  %3079 = vmatprep.subr.bf16.mxu0 0
  %3080 = vmatpush1.bf16.msra.mxu0 %v3035
  %3081 = vmatprep.subr.bf16.mxu0 0
  %3082 = vmatpush1.bf16.msra.mxu0 %v3036
  %3083 = vmatprep.subr.bf16.mxu0 0
  %3084 = vmatpush1.bf16.msra.mxu0 %v3037
  %3085 = vmatprep.subr.bf16.mxu0 0
  %3086 = vmatpush1.bf16.msra.mxu0 %v3038
  %3087 = vmatprep.mubr.bf16.mxu0 %v2956
  %3088 = vmatmul.mubr.bf16.gmra.mrb[0].mxu0 %v2955
  %v3089 = vpop.f32.mrb[0].mxu0
  %v3090 = vadd.f32 0.0, %v3089
  %v3091 = vpop.f32.mrb[0].mxu0
  %v3092 = vpop.f32.mrb[0].mxu0
  %v3093 = vadd.f32 0.0, %v3092
  %v3094 = vpop.f32.mrb[0].mxu0
  %3095 = vdwg.mxu0
  %v3096 = vlaneseq
  %v3097 = vshrl.u32 %v3096, 7
  %v3098 = vsub.s32 0, %v3097
  %v3099 = vrot.slane %v2914, %v3098
  %v3100 = vmul.f32 %v3099, %v3090
  %v3101 = vlaneseq
  %v3102 = vshrl.u32 %v3101, 7
  %v3103 = vsub.s32 1, %v3102
  %v3104 = vrot.slane %v2914, %v3103
  %v3105 = vmul.f32 %v3104, %v3090
  %v3107 = vrot.slane %v3105, 4
  %v3109 = vadd.f32 %v3100, %v3107
  %v3110 = vlaneseq
  %v3111 = vshrl.u32 %v3110, 7
  %v3112 = vsub.s32 2, %v3111
  %v3113 = vrot.slane %v2914, %v3112
  %v3114 = vmul.f32 %v3113, %v3093
  %v3115 = vadd.f32 %v3109, %v3114
  %v3116 = vlaneseq
  %v3117 = vshrl.u32 %v3116, 7
  %v3118 = vsub.s32 3, %v3117
  %v3119 = vrot.slane %v2914, %v3118
  %v3120 = vmul.f32 %v3119, %v3093
  %v3122 = vrot.slane %v3120, 4
  %v3124 = vadd.f32 %v3115, %v3122
  %v3125 = vld [vmem:[%s1 + $0x80] sm:$0xff]
  %v3126 = vld [vmem:[%s1 + $0x88] sm:$0xff]
  %v3127 = vld [vmem:[%s0 + $0x400] sm:$0xf]
  %v3128 = vld [vmem:[%s0 + $0x404] sm:$0xf]
  %v3129 = vld [vmem:[%s0 + $0x408] sm:$0xf]
  %v3130 = vld [vmem:[%s0 + $0x40c] sm:$0xf]
  %v3131 = vld [vmem:[%s0 + $0x410] sm:$0xf]
  %v3132 = vld [vmem:[%s0 + $0x414] sm:$0xf]
  %v3133 = vld [vmem:[%s0 + $0x418] sm:$0xf]
  %v3134 = vld [vmem:[%s0 + $0x41c] sm:$0xf]
  %v3135 = vld [vmem:[%s0 + $0x420] sm:$0xf]
  %v3136 = vld [vmem:[%s0 + $0x424] sm:$0xf]
  %v3137 = vld [vmem:[%s0 + $0x428] sm:$0xf]
  %v3138 = vld [vmem:[%s0 + $0x42c] sm:$0xf]
  %v3139 = vld [vmem:[%s0 + $0x430] sm:$0xf]
  %v3140 = vld [vmem:[%s0 + $0x434] sm:$0xf]
  %v3141 = vld [vmem:[%s0 + $0x438] sm:$0xf]
  %v3142 = vld [vmem:[%s0 + $0x43c] sm:$0xf]
  %v3143 = vld [vmem:[%s0 + $0x440] sm:$0xf]
  %v3144 = vld [vmem:[%s0 + $0x444] sm:$0xf]
  %v3145 = vld [vmem:[%s0 + $0x448] sm:$0xf]
  %v3146 = vld [vmem:[%s0 + $0x44c] sm:$0xf]
  %v3147 = vld [vmem:[%s0 + $0x450] sm:$0xf]
  %v3148 = vld [vmem:[%s0 + $0x454] sm:$0xf]
  %v3149 = vld [vmem:[%s0 + $0x458] sm:$0xf]
  %v3150 = vld [vmem:[%s0 + $0x45c] sm:$0xf]
  %v3151 = vld [vmem:[%s0 + $0x460] sm:$0xf]
  %v3152 = vld [vmem:[%s0 + $0x464] sm:$0xf]
  %v3153 = vld [vmem:[%s0 + $0x468] sm:$0xf]
  %v3154 = vld [vmem:[%s0 + $0x46c] sm:$0xf]
  %v3155 = vld [vmem:[%s0 + $0x470] sm:$0xf]
  %v3156 = vld [vmem:[%s0 + $0x474] sm:$0xf]
  %v3157 = vld [vmem:[%s0 + $0x478] sm:$0xf]
  %v3158 = vld [vmem:[%s0 + $0x47c] sm:$0xf]
  %v3161 = vunpack.c.l.b16 %v3125
  %v3162 = vunpack.c.h.b16 %v3125
  %v3163 = vunpack.c.l.b16 %v3126
  %v3164 = vunpack.c.h.b16 %v3126
  %v3165 = vpack.c.b16 %v3163, %v3161
  %v3166 = vpack.c.b16 %v3164, %v3162
  %v3201 = vunpack.c.l.b16 %v3127
  %v3202 = vunpack.c.l.b16 %v3128
  %v3203 = vunpack.c.l.b16 %v3129
  %v3204 = vunpack.c.l.b16 %v3130
  %v3205 = vunpack.c.l.b16 %v3131
  %v3206 = vunpack.c.l.b16 %v3132
  %v3207 = vunpack.c.l.b16 %v3133
  %v3208 = vunpack.c.l.b16 %v3134
  %v3209 = vunpack.c.l.b16 %v3135
  %v3210 = vunpack.c.l.b16 %v3136
  %v3211 = vunpack.c.l.b16 %v3137
  %v3212 = vunpack.c.l.b16 %v3138
  %v3213 = vunpack.c.l.b16 %v3139
  %v3214 = vunpack.c.l.b16 %v3140
  %v3215 = vunpack.c.l.b16 %v3141
  %v3216 = vunpack.c.l.b16 %v3142
  %v3217 = vunpack.c.l.b16 %v3143
  %v3218 = vunpack.c.l.b16 %v3144
  %v3219 = vunpack.c.l.b16 %v3145
  %v3220 = vunpack.c.l.b16 %v3146
  %v3221 = vunpack.c.l.b16 %v3147
  %v3222 = vunpack.c.l.b16 %v3148
  %v3223 = vunpack.c.l.b16 %v3149
  %v3224 = vunpack.c.l.b16 %v3150
  %v3225 = vunpack.c.l.b16 %v3151
  %v3226 = vunpack.c.l.b16 %v3152
  %v3227 = vunpack.c.l.b16 %v3153
  %v3228 = vunpack.c.l.b16 %v3154
  %v3229 = vunpack.c.l.b16 %v3155
  %v3230 = vunpack.c.l.b16 %v3156
  %v3231 = vunpack.c.l.b16 %v3157
  %v3232 = vunpack.c.l.b16 %v3158
  %v3233 = vpack.c.b16 %v3202, %v3201
  %v3234 = vpack.c.b16 %v3204, %v3203
  %v3235 = vpack.c.b16 %v3206, %v3205
  %v3236 = vpack.c.b16 %v3208, %v3207
  %v3237 = vpack.c.b16 %v3210, %v3209
  %v3238 = vpack.c.b16 %v3212, %v3211
  %v3239 = vpack.c.b16 %v3214, %v3213
  %v3240 = vpack.c.b16 %v3216, %v3215
  %v3241 = vpack.c.b16 %v3218, %v3217
  %v3242 = vpack.c.b16 %v3220, %v3219
  %v3243 = vpack.c.b16 %v3222, %v3221
  %v3244 = vpack.c.b16 %v3224, %v3223
  %v3245 = vpack.c.b16 %v3226, %v3225
  %v3246 = vpack.c.b16 %v3228, %v3227
  %v3247 = vpack.c.b16 %v3230, %v3229
  %v3248 = vpack.c.b16 %v3232, %v3231
  %3265 = vmatprep.subr.bf16.mxu0 0
  %3266 = vmatpush1.bf16.msra.mxu0 %v3233
  %3267 = vmatprep.subr.bf16.mxu0 0
  %3268 = vmatpush1.bf16.msra.mxu0 %v3234
  %3269 = vmatprep.subr.bf16.mxu0 0
  %3270 = vmatpush1.bf16.msra.mxu0 %v3235
  %3271 = vmatprep.subr.bf16.mxu0 0
  %3272 = vmatpush1.bf16.msra.mxu0 %v3236
  %3273 = vmatprep.subr.bf16.mxu0 0
  %3274 = vmatpush1.bf16.msra.mxu0 %v3237
  %3275 = vmatprep.subr.bf16.mxu0 0
  %3276 = vmatpush1.bf16.msra.mxu0 %v3238
  %3277 = vmatprep.subr.bf16.mxu0 0
  %3278 = vmatpush1.bf16.msra.mxu0 %v3239
  %3279 = vmatprep.subr.bf16.mxu0 0
  %3280 = vmatpush1.bf16.msra.mxu0 %v3240
  %3281 = vmatprep.subr.bf16.mxu0 0
  %3282 = vmatpush1.bf16.msra.mxu0 %v3241
  %3283 = vmatprep.subr.bf16.mxu0 0
  %3284 = vmatpush1.bf16.msra.mxu0 %v3242
  %3285 = vmatprep.subr.bf16.mxu0 0
  %3286 = vmatpush1.bf16.msra.mxu0 %v3243
  %3287 = vmatprep.subr.bf16.mxu0 0
  %3288 = vmatpush1.bf16.msra.mxu0 %v3244
  %3289 = vmatprep.subr.bf16.mxu0 0
  %3290 = vmatpush1.bf16.msra.mxu0 %v3245
  %3291 = vmatprep.subr.bf16.mxu0 0
  %3292 = vmatpush1.bf16.msra.mxu0 %v3246
  %3293 = vmatprep.subr.bf16.mxu0 0
  %3294 = vmatpush1.bf16.msra.mxu0 %v3247
  %3295 = vmatprep.subr.bf16.mxu0 0
  %3296 = vmatpush1.bf16.msra.mxu0 %v3248
  %3297 = vmatprep.mubr.bf16.mxu0 %v3166
  %3298 = vmatmul.mubr.bf16.gmra.mrb[0].mxu0 %v3165
  %v3299 = vpop.f32.mrb[0].mxu0
  %v3300 = vadd.f32 0.0, %v3299
  %v3301 = vpop.f32.mrb[0].mxu0
  %v3302 = vpop.f32.mrb[0].mxu0
  %v3303 = vadd.f32 0.0, %v3302
  %v3304 = vpop.f32.mrb[0].mxu0
  %3305 = vdwg.mxu0
  %v3306 = vlaneseq
  %v3307 = vshrl.u32 %v3306, 7
  %v3308 = vsub.s32 0, %v3307
  %v3309 = vrot.slane %v3124, %v3308
  %v3310 = vmul.f32 %v3309, %v3300
  %v3311 = vlaneseq
  %v3312 = vshrl.u32 %v3311, 7
  %v3313 = vsub.s32 1, %v3312
  %v3314 = vrot.slane %v3124, %v3313
  %v3315 = vmul.f32 %v3314, %v3300
  %v3317 = vrot.slane %v3315, 4
  %v3319 = vadd.f32 %v3310, %v3317
  %v3320 = vlaneseq
  %v3321 = vshrl.u32 %v3320, 7
  %v3322 = vsub.s32 2, %v3321
  %v3323 = vrot.slane %v3124, %v3322
  %v3324 = vmul.f32 %v3323, %v3303
  %v3325 = vadd.f32 %v3319, %v3324
  %v3326 = vlaneseq
  %v3327 = vshrl.u32 %v3326, 7
  %v3328 = vsub.s32 3, %v3327
  %v3329 = vrot.slane %v3124, %v3328
  %v3330 = vmul.f32 %v3329, %v3303
  %v3332 = vrot.slane %v3330, 4
  %v3334 = vadd.f32 %v3325, %v3332
  %v3335 = vld [vmem:[%s2] sm:$0xf]
  %v3336 = vld [vmem:[%s2 + $0x4] sm:$0xf]
  %v3337 = vld [vmem:[%s2 + $0x8] sm:$0xf]
  %v3338 = vld [vmem:[%s2 + $0xc] sm:$0xf]
  %v3339 = vld [vmem:[%s2 + $0x10] sm:$0xf]
  %v3340 = vld [vmem:[%s2 + $0x14] sm:$0xf]
  %v3341 = vld [vmem:[%s2 + $0x18] sm:$0xf]
  %v3342 = vld [vmem:[%s2 + $0x1c] sm:$0xf]
  %v3343 = vpack.c.bf16 %v3334, %v3334
  %v3352 = vunpack.c.l.b16 %v3335
  %v3353 = vunpack.c.l.b16 %v3336
  %v3354 = vunpack.c.l.b16 %v3337
  %v3355 = vunpack.c.l.b16 %v3338
  %v3356 = vunpack.c.l.b16 %v3339
  %v3357 = vunpack.c.l.b16 %v3340
  %v3358 = vunpack.c.l.b16 %v3341
  %v3359 = vunpack.c.l.b16 %v3342
  %v3360 = vpack.c.b16 %v3353, %v3352
  %v3361 = vpack.c.b16 %v3355, %v3354
  %v3362 = vpack.c.b16 %v3357, %v3356
  %v3363 = vpack.c.b16 %v3359, %v3358
  %vm3364 = vcmask 31744
  %v3366 = vsel %vm3364, %v3360, 0
  %v3369 = vsel %vm3364, %v3361, 0
  %v3372 = vsel %vm3364, %v3362, 0
  %v3375 = vsel %vm3364, %v3363, 0
  %vm3377 = vcmask 1041408
  %v3379 = vsel %vm3377, %v3343, 0
  %3381 = vmatprep.subr.bf16.mxu0 0
  %3382 = vmatpush1.bf16.msra.mxu0 %v3379
  %3383 = vmatprep.subr.bf16.mxu0 0
  %3384 = vmatpush1.bf16.msra.mxu0 0
  %3385 = vmatprep.subr.bf16.mxu0 0
  %3386 = vmatpush1.bf16.msra.mxu0 0
  %3387 = vmatprep.subr.bf16.mxu0 0
  %3388 = vmatpush1.bf16.msra.mxu0 0
  %3389 = vmatprep.subr.bf16.mxu0 0
  %3390 = vmatpush1.bf16.msra.mxu0 0
  %3391 = vmatprep.subr.bf16.mxu0 0
  %3392 = vmatpush1.bf16.msra.mxu0 0
  %3393 = vmatprep.subr.bf16.mxu0 0
  %3394 = vmatpush1.bf16.msra.mxu0 0
  %3395 = vmatprep.subr.bf16.mxu0 0
  %3396 = vmatpush1.bf16.msra.mxu0 0
  %3397 = vmatprep.subr.bf16.mxu0 0
  %3398 = vmatpush1.bf16.msra.mxu0 0
  %3399 = vmatprep.subr.bf16.mxu0 0
  %3400 = vmatpush1.bf16.msra.mxu0 0
  %3401 = vmatprep.subr.bf16.mxu0 0
  %3402 = vmatpush1.bf16.msra.mxu0 0
  %3403 = vmatprep.subr.bf16.mxu0 0
  %3404 = vmatpush1.bf16.msra.mxu0 0
  %3405 = vmatprep.subr.bf16.mxu0 0
  %3406 = vmatpush1.bf16.msra.mxu0 0
  %3407 = vmatprep.subr.bf16.mxu0 0
  %3408 = vmatpush1.bf16.msra.mxu0 0
  %3409 = vmatprep.subr.bf16.mxu0 0
  %3410 = vmatpush1.bf16.msra.mxu0 0
  %3411 = vmatprep.subr.bf16.mxu0 0
  %3412 = vmatpush1.bf16.msra.mxu0 0
  %3413 = vmatprep.mubr.bf16.mxu0 0
  %3414 = vmatmul.mubr.bf16.gmra.mrb[0].mxu0 %v3366
  %v3415 = vpop.f32.mrb[0].mxu0
  %v3416 = vadd.f32 0.0, %v3415
  %v3417 = vpop.f32.mrb[0].mxu0
  %v3418 = vpop.f32.mrb[0].mxu0
  %v3419 = vadd.f32 0.0, %v3418
  %v3420 = vpop.f32.mrb[0].mxu0
  %3421 = vmatprep.mubr.bf16.mxu0 0
  %3422 = vmatmul.mubr.bf16.gmra.mrb[0].mxu0 %v3369
  %v3423 = vpop.f32.mrb[0].mxu0
  %v3424 = vadd.f32 0.0, %v3423
  %v3425 = vpop.f32.mrb[0].mxu0
  %v3426 = vpop.f32.mrb[0].mxu0
  %v3427 = vadd.f32 0.0, %v3426
  %v3428 = vpop.f32.mrb[0].mxu0
  %3429 = vmatprep.mubr.bf16.mxu0 0
  %3430 = vmatmul.mubr.bf16.gmra.mrb[0].mxu0 %v3372
  %v3431 = vpop.f32.mrb[0].mxu0
  %v3432 = vadd.f32 0.0, %v3431
  %v3433 = vpop.f32.mrb[0].mxu0
  %v3434 = vpop.f32.mrb[0].mxu0
  %v3435 = vadd.f32 0.0, %v3434
  %v3436 = vpop.f32.mrb[0].mxu0
  %3437 = vmatprep.mubr.bf16.mxu0 0
  %3438 = vmatmul.mubr.bf16.gmra.mrb[0].mxu0 %v3375
  %v3439 = vpop.f32.mrb[0].mxu0
  %v3440 = vadd.f32 0.0, %v3439
  %v3441 = vpop.f32.mrb[0].mxu0
  %v3442 = vpop.f32.mrb[0].mxu0
  %v3443 = vadd.f32 0.0, %v3442
  %v3444 = vpop.f32.mrb[0].mxu0
  %3445 = vdwg.mxu0
  %v3446 = vlaneseq
  %v3447 = vshrl.u32 %v3446, 7
  %v3448 = vsub.s32 0, %v3447
  %v3449 = vrot.slane %v1674, %v3448
  %v3450 = vmul.f32 %v3449, %v3416
  %v3451 = vmul.f32 %v3449, %v3419
  %v3452 = vlaneseq
  %v3453 = vshrl.u32 %v3452, 7
  %v3454 = vsub.s32 1, %v3453
  %v3455 = vrot.slane %v1674, %v3454
  %v3456 = vmul.f32 %v3455, %v3424
  %v3457 = vmul.f32 %v3455, %v3427
  %v3458 = vadd.f32 %v3450, %v3456
  %v3459 = vadd.f32 %v3451, %v3457
  %v3460 = vlaneseq
  %v3461 = vshrl.u32 %v3460, 7
  %v3462 = vsub.s32 2, %v3461
  %v3463 = vrot.slane %v1674, %v3462
  %v3464 = vmul.f32 %v3463, %v3432
  %v3465 = vmul.f32 %v3463, %v3435
  %v3466 = vadd.f32 %v3458, %v3464
  %v3467 = vadd.f32 %v3459, %v3465
  %v3468 = vlaneseq
  %v3469 = vshrl.u32 %v3468, 7
  %v3470 = vsub.s32 3, %v3469
  %v3471 = vrot.slane %v1674, %v3470
  %v3472 = vmul.f32 %v3471, %v3440
  %v3473 = vmul.f32 %v3471, %v3443
  %v3474 = vadd.f32 %v3466, %v3472
  %v3475 = vadd.f32 %v3467, %v3473
  %3476 = vst [vmem:[%s3] sm:$0xff] %v3474
  %3477 = vst [vmem:[%s3 + $0x8] sm:$0xff] %v3475
  // Predicated region
  $region14: #{_lambda_.1} parent=0 // pred_check
    _
  $region15: #{_lambda_.1} parent=0 // pred_check_branch
    %3479 = sbr.rel (0) target = $region17
  $region16: #{_lambda_.1} parent=0 // pred_region
    _
  $region17: #{_lambda_.1} parent=0 // pred_fallthru
    _
  // Predicated region
  $region18: #{_lambda_.1} parent=0 // pred_check
    _
  $region19: #{_lambda_.1} parent=0 // pred_check_branch
    %3481 = sbr.rel (0) target = $region21
  $region20: #{_lambda_.1} parent=0 // pred_region
    _
  $region21: #{_lambda_.1} parent=0 // pred_fallthru
    _

</llo_original>
